<compile_context>
chip_gen: v7x
topology: tpu7x:2x2x1
jax: 0.10.0
libtpu: 0.0.40
codegen_flags: <defaults>
</compile_context>

<pallas_src>
import functools

import jax
import jax.numpy as jnp
from jax import lax
from jax.experimental import pallas as pl
from jax.experimental.pallas import tpu as pltpu

BOS = 1
_NEG_BIG = -1e9          # bias for padded vocab columns (finite, never argmax)
_SUBLANE = 8
_LANE = 128
_ENC_TS = 8              # encoder time-steps per grid block
_VMEM_LIMIT = 48 * 1024 * 1024   # explicit scoped-VMEM budget (< 64 MiB v7x)


def _round_up(x, m):
    return ((x + m - 1) // m) * m


# -----------------------------------------------------------------------------
# Encoder kernel.  grid=(S_pad // TS,).  Per grid step:
#   gi_all = reshape(feat_blk, [TS*Bp, D]) @ W_comb + b_comb   (ONE fused matmul
#            — vid2hid Linear + GRU input projection, hoisted out of the loop)
#   for i in range(TS):  gh = h @ W_hh_fused + b_hh ; gates ; h update ; store
# h is carried across grid steps in VMEM scratch.
# -----------------------------------------------------------------------------
def _encoder_kernel(feat_ref, wcomb_ref, bcomb_ref, whh_ref, bhh_ref,
                    out_ref, h_sc):
    @pl.when(pl.program_id(0) == 0)
    def _():
        h_sc[...] = jnp.zeros_like(h_sc)

    ts, bp, d = feat_ref.shape
    h_dim = whh_ref.shape[0]

    # Hoisted, gate-fused input projection for the whole TS-block (M = TS*Bp).
    x = feat_ref[...].reshape(ts * bp, d).astype(jnp.bfloat16)
    gi_all = jnp.dot(x, wcomb_ref[...],
                     preferred_element_type=jnp.float32) + bcomb_ref[...]

    h = h_sc[...]
    for i in range(ts):                       # short static loop
        gi = gi_all[i * bp:(i + 1) * bp]      # [Bp, 3H], contiguous slice
        gh = jnp.dot(h.astype(jnp.bfloat16), whh_ref[...],
                     preferred_element_type=jnp.float32) + bhh_ref[...]
        r = jax.nn.sigmoid(gi[:, 0:h_dim] + gh[:, 0:h_dim])
        z = jax.nn.sigmoid(gi[:, h_dim:2 * h_dim] + gh[:, h_dim:2 * h_dim])
        n = jnp.tanh(gi[:, 2 * h_dim:3 * h_dim] + r * gh[:, 2 * h_dim:3 * h_dim])
        h = (1.0 - z) * n + z * h
        out_ref[i] = h
    h_sc[...] = h


def encoder_forward(pp, feats):
    """feats: [Bp, S, dim_vid] f32, batch already padded to a sublane multiple."""
    Bp, S, D = feats.shape
    H = pp["enc_whh"].shape[0]
    TS = _ENC_TS
    S_pad = _round_up(S, TS)

    feats_t = jnp.transpose(feats, (1, 0, 2))                 # [S, Bp, D]
    feats_t = jnp.pad(feats_t, ((0, S_pad - S), (0, 0), (0, 0)))

    c2 = lambda s: (0, 0)
    out_tbh = pl.pallas_call(
        _encoder_kernel,
        grid=(S_pad // TS,),
        in_specs=[
            pl.BlockSpec((TS, Bp, D), lambda s: (s, 0, 0)),   # per-block feats
            pl.BlockSpec((D, 3 * H), c2),                     # resident weights
            pl.BlockSpec((1, 3 * H), c2),
            pl.BlockSpec((H, 3 * H), c2),
            pl.BlockSpec((1, 3 * H), c2),
        ],
        out_specs=pl.BlockSpec((TS, Bp, H), lambda s: (s, 0, 0)),
        out_shape=jax.ShapeDtypeStruct((S_pad, Bp, H), jnp.float32),
        scratch_shapes=[pltpu.VMEM((Bp, H), jnp.float32)],
        compiler_params=pltpu.CompilerParams(
            dimension_semantics=("arbitrary",),
            vmem_limit_bytes=_VMEM_LIMIT),
    )(feats_t, pp["enc_wcomb"], pp["enc_bcomb"], pp["enc_whh"], pp["enc_bhh"])

    enc_out = jnp.transpose(out_tbh[:S], (1, 0, 2)).astype(jnp.bfloat16)
    enc_hidden = out_tbh[S - 1]                               # [Bp, H] f32
    return enc_out, enc_hidden


# -----------------------------------------------------------------------------
# Decoder kernel.  grid=(T,), one decode step per grid iteration.
# Hidden state (h_sc) and previous-token embedding (e_sc, greedy only) are
# carried in VMEM scratch; enc_out / embedding / weights are resident via
# constant index_maps.  Output block is lane-dense [Bp, Vp] per step.
# -----------------------------------------------------------------------------
def _make_decoder_kernel(teacher):
    def kernel(*refs):
        if teacher:
            (enc_ref, h0_ref, tgt_ref, emb_ref, wie_ref, wic_ref, whh_ref,
             bih_ref, bhh_ref, wo_ref, bo_ref, out_ref, h_sc, e_sc) = refs
        else:
            (enc_ref, h0_ref, emb_ref, wie_ref, wic_ref, whh_ref,
             bih_ref, bhh_ref, wo_ref, bo_ref, out_ref, h_sc, e_sc) = refs

        t = pl.program_id(0)
        Bp = h0_ref.shape[0]
        Vp, E = emb_ref.shape
        H = whh_ref.shape[0]

        @pl.when(t == 0)
        def _():
            h_sc[...] = h0_ref[...]
            if not teacher:
                bos = emb_ref[pl.ds(BOS, 1), :].astype(jnp.float32)   # [1, E]
                e_sc[...] = jnp.broadcast_to(bos, (Bp, E))

        h = h_sc[...]
        iota_v = lax.broadcasted_iota(jnp.int32, (Bp, Vp), 1)

        # Previous-token embedding (teacher: iota one-hot of int targets).
        if teacher:
            onehot = (iota_v == tgt_ref[...]).astype(jnp.bfloat16)    # [Bp, Vp]
            e = jnp.dot(onehot, emb_ref[...],
                        preferred_element_type=jnp.float32)           # [Bp, E]
        else:
            e = e_sc[...]

        # Dot-product attention over encoder outputs (bf16 MXU, f32 softmax).
        enc = enc_ref[...]                                            # bf16
        q = h.astype(jnp.bfloat16)[:, None, :]                        # [Bp,1,H]
        scores = jnp.einsum("bqh,bkh->bqk", q, enc,
                            preferred_element_type=jnp.float32)       # [Bp,1,S]
        scores = scores - jnp.max(scores, axis=-1, keepdims=True)
        w = jnp.exp(scores)
        alpha = w / jnp.sum(w, axis=-1, keepdims=True)
        ctx = jnp.einsum("bqk,bkh->bqh", alpha.astype(jnp.bfloat16), enc,
                         preferred_element_type=jnp.float32)[:, 0, :]  # [Bp,H]

        # GRU cell, gate-fused: one matmul per input side + one for hidden.
        gi = (jnp.dot(e.astype(jnp.bfloat16), wie_ref[...],
                      preferred_element_type=jnp.float32)
              + jnp.dot(ctx.astype(jnp.bfloat16), wic_ref[...],
                        preferred_element_type=jnp.float32)
              + bih_ref[...])
        gh = jnp.dot(h.astype(jnp.bfloat16), whh_ref[...],
                     preferred_element_type=jnp.float32) + bhh_ref[...]
        r = jax.nn.sigmoid(gi[:, 0:H] + gh[:, 0:H])
        z = jax.nn.sigmoid(gi[:, H:2 * H] + gh[:, H:2 * H])
        n = jnp.tanh(gi[:, 2 * H:3 * H] + r * gh[:, 2 * H:3 * H])
        h_new = (1.0 - z) * n + z * h

        # Output projection + log_softmax (padded vocab columns carry -1e9).
        logits = jnp.dot(h_new.astype(jnp.bfloat16), wo_ref[...],
                         preferred_element_type=jnp.float32) + bo_ref[...]
        m = jnp.max(logits, axis=-1, keepdims=True)
        s = logits - m
        lse = jnp.log(jnp.sum(jnp.exp(s), axis=-1, keepdims=True))
        logp = s - lse

        if not teacher:
            # Greedy argmax -> embedding of the next token, carried in scratch.
            mx = jnp.max(logp, axis=-1, keepdims=True)
            cand = jnp.where(logp >= mx, iota_v, Vp)
            idx = jnp.min(cand, axis=-1, keepdims=True)
            onehot_next = (iota_v == idx).astype(jnp.bfloat16)
            e_sc[...] = jnp.dot(onehot_next, emb_ref[...],
                                preferred_element_type=jnp.float32)

        h_sc[...] = h_new
        out_ref[...] = logp

    return kernel


def _decode(pp, enc_out, enc_hidden, T, targets_tb1=None):
    Bp, S, H = enc_out.shape
    Vp, E = pp["embedding"].shape
    teacher = targets_tb1 is not None

    c2 = lambda t: (0, 0)
    c3 = lambda t: (0, 0, 0)

    inputs = [enc_out, enc_hidden]
    in_specs = [pl.BlockSpec((Bp, S, H), c3),
                pl.BlockSpec((Bp, H), c2)]
    if teacher:
        inputs.append(targets_tb1)                              # [T, Bp, 1] i32
        in_specs.append(pl.BlockSpec((None, Bp, 1), lambda t: (t, 0, 0)))
    weights = [pp["embedding"], pp["dec_wih_e"], pp["dec_wih_c"], pp["dec_whh"],
               pp["dec_bih"], pp["dec_bhh"], pp["out_w"], pp["out_b"]]
    inputs += weights
    in_specs += [pl.BlockSpec(w.shape, c2) for w in weights]

    probs_flat = pl.pallas_call(
        _make_decoder_kernel(teacher),
        grid=(T,),
        in_specs=in_specs,
        # Lane-dense streaming output: [Bp, T*Vp], one [Bp, Vp] block per step.
        out_specs=pl.BlockSpec((Bp, Vp), lambda t: (0, t)),
        out_shape=jax.ShapeDtypeStruct((Bp, T * Vp), jnp.float32),
        scratch_shapes=[pltpu.VMEM((Bp, H), jnp.float32),       # hidden state
                        pltpu.VMEM((Bp, E), jnp.float32)],      # prev embedding
        compiler_params=pltpu.CompilerParams(
            dimension_semantics=("arbitrary",),
            vmem_limit_bytes=_VMEM_LIMIT),
    )(*inputs)
    return probs_flat.reshape(Bp, T, Vp)        # free reshape, no transpose


# -----------------------------------------------------------------------------
# Parameters (deterministic synthetic init, gate-FUSED [in, 3H] GRU layout).
# -----------------------------------------------------------------------------
def init_params(key, dim_vid, hidden, emb, vocab):
    ks = jax.random.split(key, 8)
    sc = 0.1
    H3 = 3 * hidden

    def rnd(k, shape):
        return sc * jax.random.normal(k, shape, jnp.float32)

    return {
        # encoder: Linear(dim_vid -> H) + GRU(H -> H)
        "vid2hid_w": rnd(ks[0], (dim_vid, hidden)),
        "vid2hid_b": jnp.zeros((1, hidden), jnp.float32),
        "enc_wih": rnd(ks[1], (hidden, H3)),
        "enc_whh": rnd(ks[2], (hidden, H3)),
        "enc_bih": jnp.zeros((1, H3), jnp.float32),
        "enc_bhh": jnp.zeros((1, H3), jnp.float32),
        # decoder: embedding + GRUCell(emb+H -> H) + Linear(H -> vocab)
        "embedding": rnd(ks[3], (vocab, emb)),
        "dec_wih_e": rnd(ks[4], (emb, H3)),
        "dec_wih_c": rnd(ks[5], (hidden, H3)),
        "dec_whh": rnd(ks[6], (hidden, H3)),
        "dec_bih": jnp.zeros((1, H3), jnp.float32),
        "dec_bhh": jnp.zeros((1, H3), jnp.float32),
        "out_w": rnd(ks[7], (hidden, vocab)),
        "out_b": jnp.zeros((1, vocab), jnp.float32),
    }


def _prepare_params(p):
    """Fold vid2hid into the encoder GRU input weights, pad vocab to a lane
    multiple, and cast matmul weights to bf16 (biases stay f32)."""
    V, _ = p["embedding"].shape
    Vp = _round_up(V, _LANE)

    wcomb = jnp.dot(p["vid2hid_w"], p["enc_wih"])                   # [D, 3H]
    bcomb = jnp.dot(p["vid2hid_b"], p["enc_wih"]) + p["enc_bih"]    # [1, 3H]

    pp = {
        "enc_wcomb": wcomb.astype(jnp.bfloat16),
        "enc_bcomb": bcomb,
        "enc_whh": p["enc_whh"].astype(jnp.bfloat16),
        "enc_bhh": p["enc_bhh"],
        "embedding": jnp.pad(p["embedding"],
                             ((0, Vp - V), (0, 0))).astype(jnp.bfloat16),
        "dec_wih_e": p["dec_wih_e"].astype(jnp.bfloat16),
        "dec_wih_c": p["dec_wih_c"].astype(jnp.bfloat16),
        "dec_whh": p["dec_whh"].astype(jnp.bfloat16),
        "dec_bih": p["dec_bih"],
        "dec_bhh": p["dec_bhh"],
        "out_w": jnp.pad(p["out_w"], ((0, 0), (0, Vp - V))).astype(jnp.bfloat16),
        "out_b": jnp.pad(p["out_b"], ((0, 0), (0, Vp - V)),
                         constant_values=_NEG_BIG),
    }
    return pp, V, Vp


# -----------------------------------------------------------------------------
# S2VTAttentionModel.forward equivalent.
# -----------------------------------------------------------------------------
@functools.partial(jax.jit, static_argnames=("mode", "max_len"))
def s2vt_attention_forward(p, features, targets=None, mode="no_teacher",
                           max_len=6):
    B, _, _ = features.shape
    Bp = _round_up(max(B, _SUBLANE), _SUBLANE)
    feats = jnp.pad(features.astype(jnp.float32),
                    ((0, Bp - B), (0, 0), (0, 0)))
    pp, V, Vp = _prepare_params(p)

    enc_out, enc_hidden = encoder_forward(pp, feats)

    if mode == "teacher_forcing":
        T = targets.shape[1] - 1
        tgt = jnp.pad(targets.astype(jnp.int32), ((0, Bp - B), (0, 0)))
        tgt_tb1 = jnp.transpose(tgt[:, :T])[:, :, None]          # [T, Bp, 1]
        probs = _decode(pp, enc_out, enc_hidden, T, targets_tb1=tgt_tb1)
        seq_prob = probs[:B, :, :V]
        return seq_prob, []
    elif mode in ("no_teacher", "inference"):
        # TODO(synk): beam-search 'inference' variant not implemented; greedy
        # decoding is used for both 'no_teacher' and 'inference'.
        T = max_len - 1
        probs = _decode(pp, enc_out, enc_hidden, T)
        seq_prob = probs[:B, :, :V]
        seq_preds = jnp.argmax(seq_prob, axis=-1).astype(jnp.int32)
        return seq_prob, seq_preds
    else:
        raise ValueError(mode)


if __name__ == "__main__":
    B, S, DIM_VID = 2, 8, 64
    HIDDEN, EMB, VOCAB, MAX_LEN = 32, 32, 48, 6

    key = jax.random.PRNGKey(0)
    k_feat, k_par = jax.random.split(key)
    features = jax.random.normal(k_feat, (B, S, DIM_VID), jnp.float32)
    params = init_params(k_par, DIM_VID, HIDDEN, EMB, VOCAB)

    # greedy ("no_teacher") decoding
    seq_prob, seq_preds = s2vt_attention_forward(
        params, features, mode="no_teacher", max_len=MAX_LEN)
    seq_prob = jax.block_until_ready(seq_prob)
    seq_preds = jax.block_until_ready(seq_preds)

    assert seq_prob.shape == (B, MAX_LEN - 1, VOCAB)
    assert seq_preds.shape == (B, MAX_LEN - 1)
    assert bool(jnp.all(jnp.isfinite(seq_prob)))
    # log_softmax rows must sum to 1 in prob space
    assert bool(jnp.allclose(jnp.sum(jnp.exp(seq_prob), axis=-1), 1.0,
                             atol=1e-4))

    # teacher forcing smoke test (same streaming decoder, int targets in)
    targets = jax.random.randint(jax.random.PRNGKey(1), (B, MAX_LEN), 0, VOCAB,
                                 dtype=jnp.int32)
    tf_prob, tf_preds = s2vt_attention_forward(
        params, features, targets=targets, mode="teacher_forcing",
        max_len=MAX_LEN)
    tf_prob = jax.block_until_ready(tf_prob)
    assert tf_prob.shape == (B, MAX_LEN - 1, VOCAB)
    assert bool(jnp.all(jnp.isfinite(tf_prob)))
    assert bool(jnp.allclose(jnp.sum(jnp.exp(tf_prob), axis=-1), 1.0,
                             atol=1e-4))
    assert tf_preds == []

    print("KERNEL_OK")
</pallas_src>

<mosaic_0001>
module attributes {stable_mosaic.version = 11 : i64} {
  func.func @_encoder_kernel(%arg0: i32, %arg1: memref<8x8x64xf32, #tpu.memory_space<vmem>>, %arg2: memref<64x96xbf16, #tpu.memory_space<vmem>>, %arg3: memref<1x96xf32, #tpu.memory_space<vmem>>, %arg4: memref<32x96xbf16, #tpu.memory_space<vmem>>, %arg5: memref<1x96xf32, #tpu.memory_space<vmem>>, %arg6: memref<8x8x32xf32, #tpu.memory_space<vmem>>, %arg7: memref<8x32xf32, #tpu.memory_space<vmem>>) attributes {dimension_semantics = [#tpu.dimension_semantics<arbitrary>], iteration_bounds = array<i64: 1>, scalar_prefetch = 0 : i64, scratch_operands = 1 : i64, tpu.core_type = #tpu.core_type<tc>, window_params = [{transform_indices = @transform_0, window_bounds = array<i64: 8, 8, 64>}, {pipeline_mode = #tpu.pipeline_mode<synchronous>, transform_indices = @transform_1, window_bounds = array<i64: 64, 96>}, {pipeline_mode = #tpu.pipeline_mode<synchronous>, transform_indices = @transform_2, window_bounds = array<i64: 1, 96>}, {pipeline_mode = #tpu.pipeline_mode<synchronous>, transform_indices = @transform_3, window_bounds = array<i64: 32, 96>}, {pipeline_mode = #tpu.pipeline_mode<synchronous>, transform_indices = @transform_4, window_bounds = array<i64: 1, 96>}, {transform_indices = @transform_5, window_bounds = array<i64: 8, 8, 32>}]} {
    %c0_i32 = arith.constant 0 : i32
    %0 = arith.cmpi eq, %arg0, %c0_i32 : i32
    %1 = arith.extui %0 : i1 to i32
    %c0_i32_0 = arith.constant 0 : i32
    %2 = arith.cmpi ne, %1, %c0_i32_0 : i32
    scf.if %2 {
      %cst_92 = arith.constant 0.000000e+00 : f32
      %301 = vector.broadcast %cst_92 : f32 to vector<8x32xf32>
      %c0_93 = arith.constant 0 : index
      %c0_94 = arith.constant 0 : index
      %302 = vector.load %arg7[%c0_93, %c0_94] : memref<8x32xf32, #tpu.memory_space<vmem>>, vector<8x32xf32>
      tpu.vector_store %arg7[%c0_93, %c0_94], %301 {strides = array<i32>} : memref<8x32xf32, #tpu.memory_space<vmem>>, vector<8x32xf32>,
    } else {
    }
    %c0 = arith.constant 0 : index
    %c0_1 = arith.constant 0 : index
    %c0_2 = arith.constant 0 : index
    %3 = vector.load %arg1[%c0, %c0_1, %c0_2] : memref<8x8x64xf32, #tpu.memory_space<vmem>>, vector<8x8x64xf32>
    %4 = vector.shape_cast %3 : vector<8x8x64xf32> to vector<64x64xf32>
    %5 = arith.truncf %4 : vector<64x64xf32> to vector<64x64xbf16>
    %c0_3 = arith.constant 0 : index
    %c0_4 = arith.constant 0 : index
    %6 = vector.load %arg2[%c0_3, %c0_4] : memref<64x96xbf16, #tpu.memory_space<vmem>>, vector<64x96xbf16>
    %cst = arith.constant dense<0.000000e+00> : vector<64x96xf32>
    %7 = tpu.matmul %5, %6, %cst {dimension_numbers = #tpu.dot_dimension_numbers<[1], [0], [0], [1], [0, 0, 1, 1], [], []>} : vector<64x64xbf16>, vector<64x96xbf16>, vector<64x96xf32> -> vector<64x96xf32>
    %c0_5 = arith.constant 0 : index
    %c0_6 = arith.constant 0 : index
    %8 = vector.load %arg3[%c0_5, %c0_6] : memref<1x96xf32, #tpu.memory_space<vmem>>, vector<1x96xf32>
    %9 = vector.broadcast %8 : vector<1x96xf32> to vector<64x96xf32>
    %10 = arith.addf %7, %9 : vector<64x96xf32>
    %c0_7 = arith.constant 0 : index
    %c0_8 = arith.constant 0 : index
    %11 = vector.load %arg7[%c0_7, %c0_8] : memref<8x32xf32, #tpu.memory_space<vmem>>, vector<8x32xf32>
    %12 = vector.extract_strided_slice %10 {offsets = [0, 0], sizes = [8, 96], strides = [1, 1]} : vector<64x96xf32> to vector<8x96xf32>
    %13 = arith.truncf %11 : vector<8x32xf32> to vector<8x32xbf16>
    %c0_9 = arith.constant 0 : index
    %c0_10 = arith.constant 0 : index
    %14 = vector.load %arg4[%c0_9, %c0_10] : memref<32x96xbf16, #tpu.memory_space<vmem>>, vector<32x96xbf16>
    %cst_11 = arith.constant dense<0.000000e+00> : vector<8x96xf32>
    %15 = tpu.matmul %13, %14, %cst_11 {dimension_numbers = #tpu.dot_dimension_numbers<[1], [0], [0], [1], [0, 0, 1, 1], [], []>} : vector<8x32xbf16>, vector<32x96xbf16>, vector<8x96xf32> -> vector<8x96xf32>
    %c0_12 = arith.constant 0 : index
    %c0_13 = arith.constant 0 : index
    %16 = vector.load %arg5[%c0_12, %c0_13] : memref<1x96xf32, #tpu.memory_space<vmem>>, vector<1x96xf32>
    %17 = vector.broadcast %16 : vector<1x96xf32> to vector<8x96xf32>
    %18 = arith.addf %15, %17 : vector<8x96xf32>
    %19 = vector.extract_strided_slice %12 {offsets = [0, 0], sizes = [8, 32], strides = [1, 1]} : vector<8x96xf32> to vector<8x32xf32>
    %20 = vector.extract_strided_slice %18 {offsets = [0, 0], sizes = [8, 32], strides = [1, 1]} : vector<8x96xf32> to vector<8x32xf32>
    %21 = arith.addf %19, %20 : vector<8x32xf32>
    %22 = arith.negf %21 : vector<8x32xf32>
    %23 = math.exp %22 : vector<8x32xf32>
    %cst_14 = arith.constant 1.000000e+00 : f32
    %24 = vector.broadcast %cst_14 : f32 to vector<8x32xf32>
    %25 = arith.addf %24, %23 : vector<8x32xf32>
    %26 = arith.divf %24, %25 : vector<8x32xf32>
    %27 = vector.extract_strided_slice %12 {offsets = [0, 32], sizes = [8, 32], strides = [1, 1]} : vector<8x96xf32> to vector<8x32xf32>
    %28 = vector.extract_strided_slice %18 {offsets = [0, 32], sizes = [8, 32], strides = [1, 1]} : vector<8x96xf32> to vector<8x32xf32>
    %29 = arith.addf %27, %28 : vector<8x32xf32>
    %30 = arith.negf %29 : vector<8x32xf32>
    %31 = math.exp %30 : vector<8x32xf32>
    %cst_15 = arith.constant 1.000000e+00 : f32
    %32 = vector.broadcast %cst_15 : f32 to vector<8x32xf32>
    %33 = arith.addf %32, %31 : vector<8x32xf32>
    %34 = arith.divf %32, %33 : vector<8x32xf32>
    %35 = vector.extract_strided_slice %12 {offsets = [0, 64], sizes = [8, 32], strides = [1, 1]} : vector<8x96xf32> to vector<8x32xf32>
    %36 = vector.extract_strided_slice %18 {offsets = [0, 64], sizes = [8, 32], strides = [1, 1]} : vector<8x96xf32> to vector<8x32xf32>
    %37 = arith.mulf %26, %36 : vector<8x32xf32>
    %38 = arith.addf %35, %37 : vector<8x32xf32>
    %39 = math.tanh %38 : vector<8x32xf32>
    %cst_16 = arith.constant 1.000000e+00 : f32
    %40 = vector.broadcast %cst_16 : f32 to vector<8x32xf32>
    %41 = arith.subf %40, %34 : vector<8x32xf32>
    %42 = arith.mulf %41, %39 : vector<8x32xf32>
    %43 = arith.mulf %34, %11 : vector<8x32xf32>
    %44 = arith.addf %42, %43 : vector<8x32xf32>
    %c0_17 = arith.constant 0 : index
    %c0_18 = arith.constant 0 : index
    %c0_19 = arith.constant 0 : index
    %45 = vector.load %arg6[%c0_17, %c0_18, %c0_19] : memref<8x8x32xf32, #tpu.memory_space<vmem>>, vector<1x8x32xf32>
    %46 = vector.shape_cast %45 : vector<1x8x32xf32> to vector<8x32xf32>
    %47 = vector.shape_cast %44 : vector<8x32xf32> to vector<1x8x32xf32>
    tpu.vector_store %arg6[%c0_17, %c0_18, %c0_19], %47 {strides = array<i32>} : memref<8x8x32xf32, #tpu.memory_space<vmem>>, vector<1x8x32xf32>,
    %48 = vector.extract_strided_slice %10 {offsets = [8, 0], sizes = [8, 96], strides = [1, 1]} : vector<64x96xf32> to vector<8x96xf32>
    %49 = arith.truncf %44 : vector<8x32xf32> to vector<8x32xbf16>
    %c0_20 = arith.constant 0 : index
    %c0_21 = arith.constant 0 : index
    %50 = vector.load %arg4[%c0_20, %c0_21] : memref<32x96xbf16, #tpu.memory_space<vmem>>, vector<32x96xbf16>
    %cst_22 = arith.constant dense<0.000000e+00> : vector<8x96xf32>
    %51 = tpu.matmul %49, %50, %cst_22 {dimension_numbers = #tpu.dot_dimension_numbers<[1], [0], [0], [1], [0, 0, 1, 1], [], []>} : vector<8x32xbf16>, vector<32x96xbf16>, vector<8x96xf32> -> vector<8x96xf32>
    %c0_23 = arith.constant 0 : index
    %c0_24 = arith.constant 0 : index
    %52 = vector.load %arg5[%c0_23, %c0_24] : memref<1x96xf32, #tpu.memory_space<vmem>>, vector<1x96xf32>
    %53 = vector.broadcast %52 : vector<1x96xf32> to vector<8x96xf32>
    %54 = arith.addf %51, %53 : vector<8x96xf32>
    %55 = vector.extract_strided_slice %48 {offsets = [0, 0], sizes = [8, 32], strides = [1, 1]} : vector<8x96xf32> to vector<8x32xf32>
    %56 = vector.extract_strided_slice %54 {offsets = [0, 0], sizes = [8, 32], strides = [1, 1]} : vector<8x96xf32> to vector<8x32xf32>
    %57 = arith.addf %55, %56 : vector<8x32xf32>
    %58 = arith.negf %57 : vector<8x32xf32>
    %59 = math.exp %58 : vector<8x32xf32>
    %cst_25 = arith.constant 1.000000e+00 : f32
    %60 = vector.broadcast %cst_25 : f32 to vector<8x32xf32>
    %61 = arith.addf %60, %59 : vector<8x32xf32>
    %62 = arith.divf %60, %61 : vector<8x32xf32>
    %63 = vector.extract_strided_slice %48 {offsets = [0, 32], sizes = [8, 32], strides = [1, 1]} : vector<8x96xf32> to vector<8x32xf32>
    %64 = vector.extract_strided_slice %54 {offsets = [0, 32], sizes = [8, 32], strides = [1, 1]} : vector<8x96xf32> to vector<8x32xf32>
    %65 = arith.addf %63, %64 : vector<8x32xf32>
    %66 = arith.negf %65 : vector<8x32xf32>
    %67 = math.exp %66 : vector<8x32xf32>
    %cst_26 = arith.constant 1.000000e+00 : f32
    %68 = vector.broadcast %cst_26 : f32 to vector<8x32xf32>
    %69 = arith.addf %68, %67 : vector<8x32xf32>
    %70 = arith.divf %68, %69 : vector<8x32xf32>
    %71 = vector.extract_strided_slice %48 {offsets = [0, 64], sizes = [8, 32], strides = [1, 1]} : vector<8x96xf32> to vector<8x32xf32>
    %72 = vector.extract_strided_slice %54 {offsets = [0, 64], sizes = [8, 32], strides = [1, 1]} : vector<8x96xf32> to vector<8x32xf32>
    %73 = arith.mulf %62, %72 : vector<8x32xf32>
    %74 = arith.addf %71, %73 : vector<8x32xf32>
    %75 = math.tanh %74 : vector<8x32xf32>
    %cst_27 = arith.constant 1.000000e+00 : f32
    %76 = vector.broadcast %cst_27 : f32 to vector<8x32xf32>
    %77 = arith.subf %76, %70 : vector<8x32xf32>
    %78 = arith.mulf %77, %75 : vector<8x32xf32>
    %79 = arith.mulf %70, %44 : vector<8x32xf32>
    %80 = arith.addf %78, %79 : vector<8x32xf32>
    %c1 = arith.constant 1 : index
    %c0_28 = arith.constant 0 : index
    %c0_29 = arith.constant 0 : index
    %81 = vector.load %arg6[%c1, %c0_28, %c0_29] : memref<8x8x32xf32, #tpu.memory_space<vmem>>, vector<1x8x32xf32>
    %82 = vector.shape_cast %81 : vector<1x8x32xf32> to vector<8x32xf32>
    %83 = vector.shape_cast %80 : vector<8x32xf32> to vector<1x8x32xf32>
    tpu.vector_store %arg6[%c1, %c0_28, %c0_29], %83 {strides = array<i32>} : memref<8x8x32xf32, #tpu.memory_space<vmem>>, vector<1x8x32xf32>,
    %84 = vector.extract_strided_slice %10 {offsets = [16, 0], sizes = [8, 96], strides = [1, 1]} : vector<64x96xf32> to vector<8x96xf32>
    %85 = arith.truncf %80 : vector<8x32xf32> to vector<8x32xbf16>
    %c0_30 = arith.constant 0 : index
    %c0_31 = arith.constant 0 : index
    %86 = vector.load %arg4[%c0_30, %c0_31] : memref<32x96xbf16, #tpu.memory_space<vmem>>, vector<32x96xbf16>
    %cst_32 = arith.constant dense<0.000000e+00> : vector<8x96xf32>
    %87 = tpu.matmul %85, %86, %cst_32 {dimension_numbers = #tpu.dot_dimension_numbers<[1], [0], [0], [1], [0, 0, 1, 1], [], []>} : vector<8x32xbf16>, vector<32x96xbf16>, vector<8x96xf32> -> vector<8x96xf32>
    %c0_33 = arith.constant 0 : index
    %c0_34 = arith.constant 0 : index
    %88 = vector.load %arg5[%c0_33, %c0_34] : memref<1x96xf32, #tpu.memory_space<vmem>>, vector<1x96xf32>
    %89 = vector.broadcast %88 : vector<1x96xf32> to vector<8x96xf32>
    %90 = arith.addf %87, %89 : vector<8x96xf32>
    %91 = vector.extract_strided_slice %84 {offsets = [0, 0], sizes = [8, 32], strides = [1, 1]} : vector<8x96xf32> to vector<8x32xf32>
    %92 = vector.extract_strided_slice %90 {offsets = [0, 0], sizes = [8, 32], strides = [1, 1]} : vector<8x96xf32> to vector<8x32xf32>
    %93 = arith.addf %91, %92 : vector<8x32xf32>
    %94 = arith.negf %93 : vector<8x32xf32>
    %95 = math.exp %94 : vector<8x32xf32>
    %cst_35 = arith.constant 1.000000e+00 : f32
    %96 = vector.broadcast %cst_35 : f32 to vector<8x32xf32>
    %97 = arith.addf %96, %95 : vector<8x32xf32>
    %98 = arith.divf %96, %97 : vector<8x32xf32>
    %99 = vector.extract_strided_slice %84 {offsets = [0, 32], sizes = [8, 32], strides = [1, 1]} : vector<8x96xf32> to vector<8x32xf32>
    %100 = vector.extract_strided_slice %90 {offsets = [0, 32], sizes = [8, 32], strides = [1, 1]} : vector<8x96xf32> to vector<8x32xf32>
    %101 = arith.addf %99, %100 : vector<8x32xf32>
    %102 = arith.negf %101 : vector<8x32xf32>
    %103 = math.exp %102 : vector<8x32xf32>
    %cst_36 = arith.constant 1.000000e+00 : f32
    %104 = vector.broadcast %cst_36 : f32 to vector<8x32xf32>
    %105 = arith.addf %104, %103 : vector<8x32xf32>
    %106 = arith.divf %104, %105 : vector<8x32xf32>
    %107 = vector.extract_strided_slice %84 {offsets = [0, 64], sizes = [8, 32], strides = [1, 1]} : vector<8x96xf32> to vector<8x32xf32>
    %108 = vector.extract_strided_slice %90 {offsets = [0, 64], sizes = [8, 32], strides = [1, 1]} : vector<8x96xf32> to vector<8x32xf32>
    %109 = arith.mulf %98, %108 : vector<8x32xf32>
    %110 = arith.addf %107, %109 : vector<8x32xf32>
    %111 = math.tanh %110 : vector<8x32xf32>
    %cst_37 = arith.constant 1.000000e+00 : f32
    %112 = vector.broadcast %cst_37 : f32 to vector<8x32xf32>
    %113 = arith.subf %112, %106 : vector<8x32xf32>
    %114 = arith.mulf %113, %111 : vector<8x32xf32>
    %115 = arith.mulf %106, %80 : vector<8x32xf32>
    %116 = arith.addf %114, %115 : vector<8x32xf32>
    %c2 = arith.constant 2 : index
    %c0_38 = arith.constant 0 : index
    %c0_39 = arith.constant 0 : index
    %117 = vector.load %arg6[%c2, %c0_38, %c0_39] : memref<8x8x32xf32, #tpu.memory_space<vmem>>, vector<1x8x32xf32>
    %118 = vector.shape_cast %117 : vector<1x8x32xf32> to vector<8x32xf32>
    %119 = vector.shape_cast %116 : vector<8x32xf32> to vector<1x8x32xf32>
    tpu.vector_store %arg6[%c2, %c0_38, %c0_39], %119 {strides = array<i32>} : memref<8x8x32xf32, #tpu.memory_space<vmem>>, vector<1x8x32xf32>,
    %120 = vector.extract_strided_slice %10 {offsets = [24, 0], sizes = [8, 96], strides = [1, 1]} : vector<64x96xf32> to vector<8x96xf32>
    %121 = arith.truncf %116 : vector<8x32xf32> to vector<8x32xbf16>
    %c0_40 = arith.constant 0 : index
    %c0_41 = arith.constant 0 : index
    %122 = vector.load %arg4[%c0_40, %c0_41] : memref<32x96xbf16, #tpu.memory_space<vmem>>, vector<32x96xbf16>
    %cst_42 = arith.constant dense<0.000000e+00> : vector<8x96xf32>
    %123 = tpu.matmul %121, %122, %cst_42 {dimension_numbers = #tpu.dot_dimension_numbers<[1], [0], [0], [1], [0, 0, 1, 1], [], []>} : vector<8x32xbf16>, vector<32x96xbf16>, vector<8x96xf32> -> vector<8x96xf32>
    %c0_43 = arith.constant 0 : index
    %c0_44 = arith.constant 0 : index
    %124 = vector.load %arg5[%c0_43, %c0_44] : memref<1x96xf32, #tpu.memory_space<vmem>>, vector<1x96xf32>
    %125 = vector.broadcast %124 : vector<1x96xf32> to vector<8x96xf32>
    %126 = arith.addf %123, %125 : vector<8x96xf32>
    %127 = vector.extract_strided_slice %120 {offsets = [0, 0], sizes = [8, 32], strides = [1, 1]} : vector<8x96xf32> to vector<8x32xf32>
    %128 = vector.extract_strided_slice %126 {offsets = [0, 0], sizes = [8, 32], strides = [1, 1]} : vector<8x96xf32> to vector<8x32xf32>
    %129 = arith.addf %127, %128 : vector<8x32xf32>
    %130 = arith.negf %129 : vector<8x32xf32>
    %131 = math.exp %130 : vector<8x32xf32>
    %cst_45 = arith.constant 1.000000e+00 : f32
    %132 = vector.broadcast %cst_45 : f32 to vector<8x32xf32>
    %133 = arith.addf %132, %131 : vector<8x32xf32>
    %134 = arith.divf %132, %133 : vector<8x32xf32>
    %135 = vector.extract_strided_slice %120 {offsets = [0, 32], sizes = [8, 32], strides = [1, 1]} : vector<8x96xf32> to vector<8x32xf32>
    %136 = vector.extract_strided_slice %126 {offsets = [0, 32], sizes = [8, 32], strides = [1, 1]} : vector<8x96xf32> to vector<8x32xf32>
    %137 = arith.addf %135, %136 : vector<8x32xf32>
    %138 = arith.negf %137 : vector<8x32xf32>
    %139 = math.exp %138 : vector<8x32xf32>
    %cst_46 = arith.constant 1.000000e+00 : f32
    %140 = vector.broadcast %cst_46 : f32 to vector<8x32xf32>
    %141 = arith.addf %140, %139 : vector<8x32xf32>
    %142 = arith.divf %140, %141 : vector<8x32xf32>
    %143 = vector.extract_strided_slice %120 {offsets = [0, 64], sizes = [8, 32], strides = [1, 1]} : vector<8x96xf32> to vector<8x32xf32>
    %144 = vector.extract_strided_slice %126 {offsets = [0, 64], sizes = [8, 32], strides = [1, 1]} : vector<8x96xf32> to vector<8x32xf32>
    %145 = arith.mulf %134, %144 : vector<8x32xf32>
    %146 = arith.addf %143, %145 : vector<8x32xf32>
    %147 = math.tanh %146 : vector<8x32xf32>
    %cst_47 = arith.constant 1.000000e+00 : f32
    %148 = vector.broadcast %cst_47 : f32 to vector<8x32xf32>
    %149 = arith.subf %148, %142 : vector<8x32xf32>
    %150 = arith.mulf %149, %147 : vector<8x32xf32>
    %151 = arith.mulf %142, %116 : vector<8x32xf32>
    %152 = arith.addf %150, %151 : vector<8x32xf32>
    %c3 = arith.constant 3 : index
    %c0_48 = arith.constant 0 : index
    %c0_49 = arith.constant 0 : index
    %153 = vector.load %arg6[%c3, %c0_48, %c0_49] : memref<8x8x32xf32, #tpu.memory_space<vmem>>, vector<1x8x32xf32>
    %154 = vector.shape_cast %153 : vector<1x8x32xf32> to vector<8x32xf32>
    %155 = vector.shape_cast %152 : vector<8x32xf32> to vector<1x8x32xf32>
    tpu.vector_store %arg6[%c3, %c0_48, %c0_49], %155 {strides = array<i32>} : memref<8x8x32xf32, #tpu.memory_space<vmem>>, vector<1x8x32xf32>,
    %156 = vector.extract_strided_slice %10 {offsets = [32, 0], sizes = [8, 96], strides = [1, 1]} : vector<64x96xf32> to vector<8x96xf32>
    %157 = arith.truncf %152 : vector<8x32xf32> to vector<8x32xbf16>
    %c0_50 = arith.constant 0 : index
    %c0_51 = arith.constant 0 : index
    %158 = vector.load %arg4[%c0_50, %c0_51] : memref<32x96xbf16, #tpu.memory_space<vmem>>, vector<32x96xbf16>
    %cst_52 = arith.constant dense<0.000000e+00> : vector<8x96xf32>
    %159 = tpu.matmul %157, %158, %cst_52 {dimension_numbers = #tpu.dot_dimension_numbers<[1], [0], [0], [1], [0, 0, 1, 1], [], []>} : vector<8x32xbf16>, vector<32x96xbf16>, vector<8x96xf32> -> vector<8x96xf32>
    %c0_53 = arith.constant 0 : index
    %c0_54 = arith.constant 0 : index
    %160 = vector.load %arg5[%c0_53, %c0_54] : memref<1x96xf32, #tpu.memory_space<vmem>>, vector<1x96xf32>
    %161 = vector.broadcast %160 : vector<1x96xf32> to vector<8x96xf32>
    %162 = arith.addf %159, %161 : vector<8x96xf32>
    %163 = vector.extract_strided_slice %156 {offsets = [0, 0], sizes = [8, 32], strides = [1, 1]} : vector<8x96xf32> to vector<8x32xf32>
    %164 = vector.extract_strided_slice %162 {offsets = [0, 0], sizes = [8, 32], strides = [1, 1]} : vector<8x96xf32> to vector<8x32xf32>
    %165 = arith.addf %163, %164 : vector<8x32xf32>
    %166 = arith.negf %165 : vector<8x32xf32>
    %167 = math.exp %166 : vector<8x32xf32>
    %cst_55 = arith.constant 1.000000e+00 : f32
    %168 = vector.broadcast %cst_55 : f32 to vector<8x32xf32>
    %169 = arith.addf %168, %167 : vector<8x32xf32>
    %170 = arith.divf %168, %169 : vector<8x32xf32>
    %171 = vector.extract_strided_slice %156 {offsets = [0, 32], sizes = [8, 32], strides = [1, 1]} : vector<8x96xf32> to vector<8x32xf32>
    %172 = vector.extract_strided_slice %162 {offsets = [0, 32], sizes = [8, 32], strides = [1, 1]} : vector<8x96xf32> to vector<8x32xf32>
    %173 = arith.addf %171, %172 : vector<8x32xf32>
    %174 = arith.negf %173 : vector<8x32xf32>
    %175 = math.exp %174 : vector<8x32xf32>
    %cst_56 = arith.constant 1.000000e+00 : f32
    %176 = vector.broadcast %cst_56 : f32 to vector<8x32xf32>
    %177 = arith.addf %176, %175 : vector<8x32xf32>
    %178 = arith.divf %176, %177 : vector<8x32xf32>
    %179 = vector.extract_strided_slice %156 {offsets = [0, 64], sizes = [8, 32], strides = [1, 1]} : vector<8x96xf32> to vector<8x32xf32>
    %180 = vector.extract_strided_slice %162 {offsets = [0, 64], sizes = [8, 32], strides = [1, 1]} : vector<8x96xf32> to vector<8x32xf32>
    %181 = arith.mulf %170, %180 : vector<8x32xf32>
    %182 = arith.addf %179, %181 : vector<8x32xf32>
    %183 = math.tanh %182 : vector<8x32xf32>
    %cst_57 = arith.constant 1.000000e+00 : f32
    %184 = vector.broadcast %cst_57 : f32 to vector<8x32xf32>
    %185 = arith.subf %184, %178 : vector<8x32xf32>
    %186 = arith.mulf %185, %183 : vector<8x32xf32>
    %187 = arith.mulf %178, %152 : vector<8x32xf32>
    %188 = arith.addf %186, %187 : vector<8x32xf32>
    %c4 = arith.constant 4 : index
    %c0_58 = arith.constant 0 : index
    %c0_59 = arith.constant 0 : index
    %189 = vector.load %arg6[%c4, %c0_58, %c0_59] : memref<8x8x32xf32, #tpu.memory_space<vmem>>, vector<1x8x32xf32>
    %190 = vector.shape_cast %189 : vector<1x8x32xf32> to vector<8x32xf32>
    %191 = vector.shape_cast %188 : vector<8x32xf32> to vector<1x8x32xf32>
    tpu.vector_store %arg6[%c4, %c0_58, %c0_59], %191 {strides = array<i32>} : memref<8x8x32xf32, #tpu.memory_space<vmem>>, vector<1x8x32xf32>,
    %192 = vector.extract_strided_slice %10 {offsets = [40, 0], sizes = [8, 96], strides = [1, 1]} : vector<64x96xf32> to vector<8x96xf32>
    %193 = arith.truncf %188 : vector<8x32xf32> to vector<8x32xbf16>
    %c0_60 = arith.constant 0 : index
    %c0_61 = arith.constant 0 : index
    %194 = vector.load %arg4[%c0_60, %c0_61] : memref<32x96xbf16, #tpu.memory_space<vmem>>, vector<32x96xbf16>
    %cst_62 = arith.constant dense<0.000000e+00> : vector<8x96xf32>
    %195 = tpu.matmul %193, %194, %cst_62 {dimension_numbers = #tpu.dot_dimension_numbers<[1], [0], [0], [1], [0, 0, 1, 1], [], []>} : vector<8x32xbf16>, vector<32x96xbf16>, vector<8x96xf32> -> vector<8x96xf32>
    %c0_63 = arith.constant 0 : index
    %c0_64 = arith.constant 0 : index
    %196 = vector.load %arg5[%c0_63, %c0_64] : memref<1x96xf32, #tpu.memory_space<vmem>>, vector<1x96xf32>
    %197 = vector.broadcast %196 : vector<1x96xf32> to vector<8x96xf32>
    %198 = arith.addf %195, %197 : vector<8x96xf32>
    %199 = vector.extract_strided_slice %192 {offsets = [0, 0], sizes = [8, 32], strides = [1, 1]} : vector<8x96xf32> to vector<8x32xf32>
    %200 = vector.extract_strided_slice %198 {offsets = [0, 0], sizes = [8, 32], strides = [1, 1]} : vector<8x96xf32> to vector<8x32xf32>
    %201 = arith.addf %199, %200 : vector<8x32xf32>
    %202 = arith.negf %201 : vector<8x32xf32>
    %203 = math.exp %202 : vector<8x32xf32>
    %cst_65 = arith.constant 1.000000e+00 : f32
    %204 = vector.broadcast %cst_65 : f32 to vector<8x32xf32>
    %205 = arith.addf %204, %203 : vector<8x32xf32>
    %206 = arith.divf %204, %205 : vector<8x32xf32>
    %207 = vector.extract_strided_slice %192 {offsets = [0, 32], sizes = [8, 32], strides = [1, 1]} : vector<8x96xf32> to vector<8x32xf32>
    %208 = vector.extract_strided_slice %198 {offsets = [0, 32], sizes = [8, 32], strides = [1, 1]} : vector<8x96xf32> to vector<8x32xf32>
    %209 = arith.addf %207, %208 : vector<8x32xf32>
    %210 = arith.negf %209 : vector<8x32xf32>
    %211 = math.exp %210 : vector<8x32xf32>
    %cst_66 = arith.constant 1.000000e+00 : f32
    %212 = vector.broadcast %cst_66 : f32 to vector<8x32xf32>
    %213 = arith.addf %212, %211 : vector<8x32xf32>
    %214 = arith.divf %212, %213 : vector<8x32xf32>
    %215 = vector.extract_strided_slice %192 {offsets = [0, 64], sizes = [8, 32], strides = [1, 1]} : vector<8x96xf32> to vector<8x32xf32>
    %216 = vector.extract_strided_slice %198 {offsets = [0, 64], sizes = [8, 32], strides = [1, 1]} : vector<8x96xf32> to vector<8x32xf32>
    %217 = arith.mulf %206, %216 : vector<8x32xf32>
    %218 = arith.addf %215, %217 : vector<8x32xf32>
    %219 = math.tanh %218 : vector<8x32xf32>
    %cst_67 = arith.constant 1.000000e+00 : f32
    %220 = vector.broadcast %cst_67 : f32 to vector<8x32xf32>
    %221 = arith.subf %220, %214 : vector<8x32xf32>
    %222 = arith.mulf %221, %219 : vector<8x32xf32>
    %223 = arith.mulf %214, %188 : vector<8x32xf32>
    %224 = arith.addf %222, %223 : vector<8x32xf32>
    %c5 = arith.constant 5 : index
    %c0_68 = arith.constant 0 : index
    %c0_69 = arith.constant 0 : index
    %225 = vector.load %arg6[%c5, %c0_68, %c0_69] : memref<8x8x32xf32, #tpu.memory_space<vmem>>, vector<1x8x32xf32>
    %226 = vector.shape_cast %225 : vector<1x8x32xf32> to vector<8x32xf32>
    %227 = vector.shape_cast %224 : vector<8x32xf32> to vector<1x8x32xf32>
    tpu.vector_store %arg6[%c5, %c0_68, %c0_69], %227 {strides = array<i32>} : memref<8x8x32xf32, #tpu.memory_space<vmem>>, vector<1x8x32xf32>,
    %228 = vector.extract_strided_slice %10 {offsets = [48, 0], sizes = [8, 96], strides = [1, 1]} : vector<64x96xf32> to vector<8x96xf32>
    %229 = arith.truncf %224 : vector<8x32xf32> to vector<8x32xbf16>
    %c0_70 = arith.constant 0 : index
    %c0_71 = arith.constant 0 : index
    %230 = vector.load %arg4[%c0_70, %c0_71] : memref<32x96xbf16, #tpu.memory_space<vmem>>, vector<32x96xbf16>
    %cst_72 = arith.constant dense<0.000000e+00> : vector<8x96xf32>
    %231 = tpu.matmul %229, %230, %cst_72 {dimension_numbers = #tpu.dot_dimension_numbers<[1], [0], [0], [1], [0, 0, 1, 1], [], []>} : vector<8x32xbf16>, vector<32x96xbf16>, vector<8x96xf32> -> vector<8x96xf32>
    %c0_73 = arith.constant 0 : index
    %c0_74 = arith.constant 0 : index
    %232 = vector.load %arg5[%c0_73, %c0_74] : memref<1x96xf32, #tpu.memory_space<vmem>>, vector<1x96xf32>
    %233 = vector.broadcast %232 : vector<1x96xf32> to vector<8x96xf32>
    %234 = arith.addf %231, %233 : vector<8x96xf32>
    %235 = vector.extract_strided_slice %228 {offsets = [0, 0], sizes = [8, 32], strides = [1, 1]} : vector<8x96xf32> to vector<8x32xf32>
    %236 = vector.extract_strided_slice %234 {offsets = [0, 0], sizes = [8, 32], strides = [1, 1]} : vector<8x96xf32> to vector<8x32xf32>
    %237 = arith.addf %235, %236 : vector<8x32xf32>
    %238 = arith.negf %237 : vector<8x32xf32>
    %239 = math.exp %238 : vector<8x32xf32>
    %cst_75 = arith.constant 1.000000e+00 : f32
    %240 = vector.broadcast %cst_75 : f32 to vector<8x32xf32>
    %241 = arith.addf %240, %239 : vector<8x32xf32>
    %242 = arith.divf %240, %241 : vector<8x32xf32>
    %243 = vector.extract_strided_slice %228 {offsets = [0, 32], sizes = [8, 32], strides = [1, 1]} : vector<8x96xf32> to vector<8x32xf32>
    %244 = vector.extract_strided_slice %234 {offsets = [0, 32], sizes = [8, 32], strides = [1, 1]} : vector<8x96xf32> to vector<8x32xf32>
    %245 = arith.addf %243, %244 : vector<8x32xf32>
    %246 = arith.negf %245 : vector<8x32xf32>
    %247 = math.exp %246 : vector<8x32xf32>
    %cst_76 = arith.constant 1.000000e+00 : f32
    %248 = vector.broadcast %cst_76 : f32 to vector<8x32xf32>
    %249 = arith.addf %248, %247 : vector<8x32xf32>
    %250 = arith.divf %248, %249 : vector<8x32xf32>
    %251 = vector.extract_strided_slice %228 {offsets = [0, 64], sizes = [8, 32], strides = [1, 1]} : vector<8x96xf32> to vector<8x32xf32>
    %252 = vector.extract_strided_slice %234 {offsets = [0, 64], sizes = [8, 32], strides = [1, 1]} : vector<8x96xf32> to vector<8x32xf32>
    %253 = arith.mulf %242, %252 : vector<8x32xf32>
    %254 = arith.addf %251, %253 : vector<8x32xf32>
    %255 = math.tanh %254 : vector<8x32xf32>
    %cst_77 = arith.constant 1.000000e+00 : f32
    %256 = vector.broadcast %cst_77 : f32 to vector<8x32xf32>
    %257 = arith.subf %256, %250 : vector<8x32xf32>
    %258 = arith.mulf %257, %255 : vector<8x32xf32>
    %259 = arith.mulf %250, %224 : vector<8x32xf32>
    %260 = arith.addf %258, %259 : vector<8x32xf32>
    %c6 = arith.constant 6 : index
    %c0_78 = arith.constant 0 : index
    %c0_79 = arith.constant 0 : index
    %261 = vector.load %arg6[%c6, %c0_78, %c0_79] : memref<8x8x32xf32, #tpu.memory_space<vmem>>, vector<1x8x32xf32>
    %262 = vector.shape_cast %261 : vector<1x8x32xf32> to vector<8x32xf32>
    %263 = vector.shape_cast %260 : vector<8x32xf32> to vector<1x8x32xf32>
    tpu.vector_store %arg6[%c6, %c0_78, %c0_79], %263 {strides = array<i32>} : memref<8x8x32xf32, #tpu.memory_space<vmem>>, vector<1x8x32xf32>,
    %264 = vector.extract_strided_slice %10 {offsets = [56, 0], sizes = [8, 96], strides = [1, 1]} : vector<64x96xf32> to vector<8x96xf32>
    %265 = arith.truncf %260 : vector<8x32xf32> to vector<8x32xbf16>
    %c0_80 = arith.constant 0 : index
    %c0_81 = arith.constant 0 : index
    %266 = vector.load %arg4[%c0_80, %c0_81] : memref<32x96xbf16, #tpu.memory_space<vmem>>, vector<32x96xbf16>
    %cst_82 = arith.constant dense<0.000000e+00> : vector<8x96xf32>
    %267 = tpu.matmul %265, %266, %cst_82 {dimension_numbers = #tpu.dot_dimension_numbers<[1], [0], [0], [1], [0, 0, 1, 1], [], []>} : vector<8x32xbf16>, vector<32x96xbf16>, vector<8x96xf32> -> vector<8x96xf32>
    %c0_83 = arith.constant 0 : index
    %c0_84 = arith.constant 0 : index
    %268 = vector.load %arg5[%c0_83, %c0_84] : memref<1x96xf32, #tpu.memory_space<vmem>>, vector<1x96xf32>
    %269 = vector.broadcast %268 : vector<1x96xf32> to vector<8x96xf32>
    %270 = arith.addf %267, %269 : vector<8x96xf32>
    %271 = vector.extract_strided_slice %264 {offsets = [0, 0], sizes = [8, 32], strides = [1, 1]} : vector<8x96xf32> to vector<8x32xf32>
    %272 = vector.extract_strided_slice %270 {offsets = [0, 0], sizes = [8, 32], strides = [1, 1]} : vector<8x96xf32> to vector<8x32xf32>
    %273 = arith.addf %271, %272 : vector<8x32xf32>
    %274 = arith.negf %273 : vector<8x32xf32>
    %275 = math.exp %274 : vector<8x32xf32>
    %cst_85 = arith.constant 1.000000e+00 : f32
    %276 = vector.broadcast %cst_85 : f32 to vector<8x32xf32>
    %277 = arith.addf %276, %275 : vector<8x32xf32>
    %278 = arith.divf %276, %277 : vector<8x32xf32>
    %279 = vector.extract_strided_slice %264 {offsets = [0, 32], sizes = [8, 32], strides = [1, 1]} : vector<8x96xf32> to vector<8x32xf32>
    %280 = vector.extract_strided_slice %270 {offsets = [0, 32], sizes = [8, 32], strides = [1, 1]} : vector<8x96xf32> to vector<8x32xf32>
    %281 = arith.addf %279, %280 : vector<8x32xf32>
    %282 = arith.negf %281 : vector<8x32xf32>
    %283 = math.exp %282 : vector<8x32xf32>
    %cst_86 = arith.constant 1.000000e+00 : f32
    %284 = vector.broadcast %cst_86 : f32 to vector<8x32xf32>
    %285 = arith.addf %284, %283 : vector<8x32xf32>
    %286 = arith.divf %284, %285 : vector<8x32xf32>
    %287 = vector.extract_strided_slice %264 {offsets = [0, 64], sizes = [8, 32], strides = [1, 1]} : vector<8x96xf32> to vector<8x32xf32>
    %288 = vector.extract_strided_slice %270 {offsets = [0, 64], sizes = [8, 32], strides = [1, 1]} : vector<8x96xf32> to vector<8x32xf32>
    %289 = arith.mulf %278, %288 : vector<8x32xf32>
    %290 = arith.addf %287, %289 : vector<8x32xf32>
    %291 = math.tanh %290 : vector<8x32xf32>
    %cst_87 = arith.constant 1.000000e+00 : f32
    %292 = vector.broadcast %cst_87 : f32 to vector<8x32xf32>
    %293 = arith.subf %292, %286 : vector<8x32xf32>
    %294 = arith.mulf %293, %291 : vector<8x32xf32>
    %295 = arith.mulf %286, %260 : vector<8x32xf32>
    %296 = arith.addf %294, %295 : vector<8x32xf32>
    %c7 = arith.constant 7 : index
    %c0_88 = arith.constant 0 : index
    %c0_89 = arith.constant 0 : index
    %297 = vector.load %arg6[%c7, %c0_88, %c0_89] : memref<8x8x32xf32, #tpu.memory_space<vmem>>, vector<1x8x32xf32>
    %298 = vector.shape_cast %297 : vector<1x8x32xf32> to vector<8x32xf32>
    %299 = vector.shape_cast %296 : vector<8x32xf32> to vector<1x8x32xf32>
    tpu.vector_store %arg6[%c7, %c0_88, %c0_89], %299 {strides = array<i32>} : memref<8x8x32xf32, #tpu.memory_space<vmem>>, vector<1x8x32xf32>,
    %c0_90 = arith.constant 0 : index
    %c0_91 = arith.constant 0 : index
    %300 = vector.load %arg7[%c0_90, %c0_91] : memref<8x32xf32, #tpu.memory_space<vmem>>, vector<8x32xf32>
    tpu.vector_store %arg7[%c0_90, %c0_91], %296 {strides = array<i32>} : memref<8x32xf32, #tpu.memory_space<vmem>>, vector<8x32xf32>,
    return
  }
  func.func @transform_0(%arg0: i32) -> (i32, i32, i32) {
    %c0_i32 = arith.constant 0 : i32
    %c0_i32_0 = arith.constant 0 : i32
    %c0_i32_1 = arith.constant 0 : i32
    return %arg0, %c0_i32, %c0_i32_0 : i32, i32, i32
  }
  func.func @transform_1(%arg0: i32) -> (i32, i32) {
    %c0_i32 = arith.constant 0 : i32
    %c0_i32_0 = arith.constant 0 : i32
    %c0_i32_1 = arith.constant 0 : i32
    return %c0_i32, %c0_i32_0 : i32, i32
  }
  func.func @transform_2(%arg0: i32) -> (i32, i32) {
    %c0_i32 = arith.constant 0 : i32
    %c0_i32_0 = arith.constant 0 : i32
    %c0_i32_1 = arith.constant 0 : i32
    return %c0_i32, %c0_i32_0 : i32, i32
  }
  func.func @transform_3(%arg0: i32) -> (i32, i32) {
    %c0_i32 = arith.constant 0 : i32
    %c0_i32_0 = arith.constant 0 : i32
    %c0_i32_1 = arith.constant 0 : i32
    return %c0_i32, %c0_i32_0 : i32, i32
  }
  func.func @transform_4(%arg0: i32) -> (i32, i32) {
    %c0_i32 = arith.constant 0 : i32
    %c0_i32_0 = arith.constant 0 : i32
    %c0_i32_1 = arith.constant 0 : i32
    return %c0_i32, %c0_i32_0 : i32, i32
  }
  func.func @transform_5(%arg0: i32) -> (i32, i32, i32) {
    %c0_i32 = arith.constant 0 : i32
    %c0_i32_0 = arith.constant 0 : i32
    %c0_i32_1 = arith.constant 0 : i32
    return %arg0, %c0_i32, %c0_i32_0 : i32, i32, i32
  }
}

module attributes {stable_mosaic.version = 11 : i64} {
  func.func @kernel(%arg0: i32, %arg1: memref<8x8x32xbf16, #tpu.memory_space<vmem>>, %arg2: memref<8x32xf32, #tpu.memory_space<vmem>>, %arg3: memref<128x32xbf16, #tpu.memory_space<vmem>>, %arg4: memref<32x96xbf16, #tpu.memory_space<vmem>>, %arg5: memref<32x96xbf16, #tpu.memory_space<vmem>>, %arg6: memref<32x96xbf16, #tpu.memory_space<vmem>>, %arg7: memref<1x96xf32, #tpu.memory_space<vmem>>, %arg8: memref<1x96xf32, #tpu.memory_space<vmem>>, %arg9: memref<32x128xbf16, #tpu.memory_space<vmem>>, %arg10: memref<1x128xf32, #tpu.memory_space<vmem>>, %arg11: memref<8x128xf32, #tpu.memory_space<vmem>>, %arg12: memref<8x32xf32, #tpu.memory_space<vmem>>, %arg13: memref<8x32xf32, #tpu.memory_space<vmem>>) attributes {dimension_semantics = [#tpu.dimension_semantics<arbitrary>], iteration_bounds = array<i64: 5>, scalar_prefetch = 0 : i64, scratch_operands = 2 : i64, tpu.core_type = #tpu.core_type<tc>, window_params = [{pipeline_mode = #tpu.pipeline_mode<synchronous>, transform_indices = @transform_0, window_bounds = array<i64: 8, 8, 32>}, {pipeline_mode = #tpu.pipeline_mode<synchronous>, transform_indices = @transform_1, window_bounds = array<i64: 8, 32>}, {pipeline_mode = #tpu.pipeline_mode<synchronous>, transform_indices = @transform_2, window_bounds = array<i64: 128, 32>}, {pipeline_mode = #tpu.pipeline_mode<synchronous>, transform_indices = @transform_3, window_bounds = array<i64: 32, 96>}, {pipeline_mode = #tpu.pipeline_mode<synchronous>, transform_indices = @transform_4, window_bounds = array<i64: 32, 96>}, {pipeline_mode = #tpu.pipeline_mode<synchronous>, transform_indices = @transform_5, window_bounds = array<i64: 32, 96>}, {pipeline_mode = #tpu.pipeline_mode<synchronous>, transform_indices = @transform_6, window_bounds = array<i64: 1, 96>}, {pipeline_mode = #tpu.pipeline_mode<synchronous>, transform_indices = @transform_7, window_bounds = array<i64: 1, 96>}, {pipeline_mode = #tpu.pipeline_mode<synchronous>, transform_indices = @transform_8, window_bounds = array<i64: 32, 128>}, {pipeline_mode = #tpu.pipeline_mode<synchronous>, transform_indices = @transform_9, window_bounds = array<i64: 1, 128>}, {transform_indices = @transform_10, window_bounds = array<i64: 8, 128>}]} {
    %c0_i32 = arith.constant 0 : i32
    %0 = arith.cmpi eq, %arg0, %c0_i32 : i32
    %1 = arith.extui %0 : i1 to i32
    %c0_i32_0 = arith.constant 0 : i32
    %2 = arith.cmpi ne, %1, %c0_i32_0 : i32
    scf.if %2 {
      %c0_44 = arith.constant 0 : index
      %c0_45 = arith.constant 0 : index
      %98 = vector.load %arg2[%c0_44, %c0_45] : memref<8x32xf32, #tpu.memory_space<vmem>>, vector<8x32xf32>
      %c0_46 = arith.constant 0 : index
      %c0_47 = arith.constant 0 : index
      %99 = vector.load %arg12[%c0_46, %c0_47] : memref<8x32xf32, #tpu.memory_space<vmem>>, vector<8x32xf32>
      tpu.vector_store %arg12[%c0_46, %c0_47], %98 {strides = array<i32>} : memref<8x32xf32, #tpu.memory_space<vmem>>, vector<8x32xf32>,
      %c1 = arith.constant 1 : index
      %c0_48 = arith.constant 0 : index
      %100 = vector.load %arg3[%c1, %c0_48] : memref<128x32xbf16, #tpu.memory_space<vmem>>, vector<1x32xbf16>
      %101 = arith.extf %100 : vector<1x32xbf16> to vector<1x32xf32>
      %102 = vector.shape_cast %101 : vector<1x32xf32> to vector<1x32xf32>
      %103 = vector.broadcast %102 : vector<1x32xf32> to vector<8x32xf32>
      %c0_49 = arith.constant 0 : index
      %c0_50 = arith.constant 0 : index
      %104 = vector.load %arg13[%c0_49, %c0_50] : memref<8x32xf32, #tpu.memory_space<vmem>>, vector<8x32xf32>
      tpu.vector_store %arg13[%c0_49, %c0_50], %103 {strides = array<i32>} : memref<8x32xf32, #tpu.memory_space<vmem>>, vector<8x32xf32>,
    } else {
    }
    %c0 = arith.constant 0 : index
    %c0_1 = arith.constant 0 : index
    %3 = vector.load %arg12[%c0, %c0_1] : memref<8x32xf32, #tpu.memory_space<vmem>>, vector<8x32xf32>
    %4 = tpu.iota {dimensions = array<i32: 1>} : vector<8x128xi32>
    %c0_2 = arith.constant 0 : index
    %c0_3 = arith.constant 0 : index
    %5 = vector.load %arg13[%c0_2, %c0_3] : memref<8x32xf32, #tpu.memory_space<vmem>>, vector<8x32xf32>
    %c0_4 = arith.constant 0 : index
    %c0_5 = arith.constant 0 : index
    %c0_6 = arith.constant 0 : index
    %6 = vector.load %arg1[%c0_4, %c0_5, %c0_6] : memref<8x8x32xbf16, #tpu.memory_space<vmem>>, vector<8x8x32xbf16>
    %7 = arith.truncf %3 : vector<8x32xf32> to vector<8x32xbf16>
    %8 = vector.shape_cast %7 : vector<8x32xbf16> to vector<8x1x32xbf16>
    "tpu.trace_start"() <{level = 10 : i32, message = "bqh,bkh->bqk"}> : () -> ()
    %cst = arith.constant dense<0.000000e+00> : vector<8x1x8xf32>
    %9 = tpu.matmul %8, %6, %cst {dimension_numbers = #tpu.dot_dimension_numbers<[2], [2], [1], [1], [0, 0, 0, 1, 1, 1], [0], [0]>} : vector<8x1x32xbf16>, vector<8x8x32xbf16>, vector<8x1x8xf32> -> vector<8x1x8xf32>
    "tpu.trace_stop"() : () -> ()
    %cst_7 = arith.constant dense<0xFF800000> : vector<8x1xf32>
    %10 = vector.multi_reduction <maximumf>, %9, %cst_7 [2] : vector<8x1x8xf32> to vector<8x1xf32>
    %11 = vector.shape_cast %10 : vector<8x1xf32> to vector<8x1x1xf32>
    %12 = vector.broadcast %11 : vector<8x1x1xf32> to vector<8x1x8xf32>
    %13 = arith.subf %9, %12 : vector<8x1x8xf32>
    %14 = math.exp %13 : vector<8x1x8xf32>
    %cst_8 = arith.constant dense<0.000000e+00> : vector<8x1xf32>
    %15 = vector.multi_reduction <add>, %14, %cst_8 [2] : vector<8x1x8xf32> to vector<8x1xf32>
    %16 = vector.shape_cast %15 : vector<8x1xf32> to vector<8x1x1xf32>
    %17 = vector.broadcast %16 : vector<8x1x1xf32> to vector<8x1x8xf32>
    %18 = arith.divf %14, %17 : vector<8x1x8xf32>
    %19 = arith.truncf %18 : vector<8x1x8xf32> to vector<8x1x8xbf16>
    "tpu.trace_start"() <{level = 10 : i32, message = "bqk,bkh->bqh"}> : () -> ()
    %cst_9 = arith.constant dense<0.000000e+00> : vector<8x1x32xf32>
    %20 = tpu.matmul %19, %6, %cst_9 {dimension_numbers = #tpu.dot_dimension_numbers<[2], [1], [1], [2], [0, 0, 0, 1, 1, 2], [0], [0]>} : vector<8x1x8xbf16>, vector<8x8x32xbf16>, vector<8x1x32xf32> -> vector<8x1x32xf32>
    "tpu.trace_stop"() : () -> ()
    %21 = vector.shape_cast %20 : vector<8x1x32xf32> to vector<8x32xf32>
    %22 = arith.truncf %5 : vector<8x32xf32> to vector<8x32xbf16>
    %c0_10 = arith.constant 0 : index
    %c0_11 = arith.constant 0 : index
    %23 = vector.load %arg4[%c0_10, %c0_11] : memref<32x96xbf16, #tpu.memory_space<vmem>>, vector<32x96xbf16>
    %cst_12 = arith.constant dense<0.000000e+00> : vector<8x96xf32>
    %24 = tpu.matmul %22, %23, %cst_12 {dimension_numbers = #tpu.dot_dimension_numbers<[1], [0], [0], [1], [0, 0, 1, 1], [], []>} : vector<8x32xbf16>, vector<32x96xbf16>, vector<8x96xf32> -> vector<8x96xf32>
    %25 = arith.truncf %21 : vector<8x32xf32> to vector<8x32xbf16>
    %c0_13 = arith.constant 0 : index
    %c0_14 = arith.constant 0 : index
    %26 = vector.load %arg5[%c0_13, %c0_14] : memref<32x96xbf16, #tpu.memory_space<vmem>>, vector<32x96xbf16>
    %cst_15 = arith.constant dense<0.000000e+00> : vector<8x96xf32>
    %27 = tpu.matmul %25, %26, %cst_15 {dimension_numbers = #tpu.dot_dimension_numbers<[1], [0], [0], [1], [0, 0, 1, 1], [], []>} : vector<8x32xbf16>, vector<32x96xbf16>, vector<8x96xf32> -> vector<8x96xf32>
    %28 = arith.addf %24, %27 : vector<8x96xf32>
    %c0_16 = arith.constant 0 : index
    %c0_17 = arith.constant 0 : index
    %29 = vector.load %arg7[%c0_16, %c0_17] : memref<1x96xf32, #tpu.memory_space<vmem>>, vector<1x96xf32>
    %30 = vector.broadcast %29 : vector<1x96xf32> to vector<8x96xf32>
    %31 = arith.addf %28, %30 : vector<8x96xf32>
    %32 = arith.truncf %3 : vector<8x32xf32> to vector<8x32xbf16>
    %c0_18 = arith.constant 0 : index
    %c0_19 = arith.constant 0 : index
    %33 = vector.load %arg6[%c0_18, %c0_19] : memref<32x96xbf16, #tpu.memory_space<vmem>>, vector<32x96xbf16>
    %cst_20 = arith.constant dense<0.000000e+00> : vector<8x96xf32>
    %34 = tpu.matmul %32, %33, %cst_20 {dimension_numbers = #tpu.dot_dimension_numbers<[1], [0], [0], [1], [0, 0, 1, 1], [], []>} : vector<8x32xbf16>, vector<32x96xbf16>, vector<8x96xf32> -> vector<8x96xf32>
    %c0_21 = arith.constant 0 : index
    %c0_22 = arith.constant 0 : index
    %35 = vector.load %arg8[%c0_21, %c0_22] : memref<1x96xf32, #tpu.memory_space<vmem>>, vector<1x96xf32>
    %36 = vector.broadcast %35 : vector<1x96xf32> to vector<8x96xf32>
    %37 = arith.addf %34, %36 : vector<8x96xf32>
    %38 = vector.extract_strided_slice %31 {offsets = [0, 0], sizes = [8, 32], strides = [1, 1]} : vector<8x96xf32> to vector<8x32xf32>
    %39 = vector.extract_strided_slice %37 {offsets = [0, 0], sizes = [8, 32], strides = [1, 1]} : vector<8x96xf32> to vector<8x32xf32>
    %40 = arith.addf %38, %39 : vector<8x32xf32>
    %41 = arith.negf %40 : vector<8x32xf32>
    %42 = math.exp %41 : vector<8x32xf32>
    %cst_23 = arith.constant 1.000000e+00 : f32
    %43 = vector.broadcast %cst_23 : f32 to vector<8x32xf32>
    %44 = arith.addf %43, %42 : vector<8x32xf32>
    %45 = arith.divf %43, %44 : vector<8x32xf32>
    %46 = vector.extract_strided_slice %31 {offsets = [0, 32], sizes = [8, 32], strides = [1, 1]} : vector<8x96xf32> to vector<8x32xf32>
    %47 = vector.extract_strided_slice %37 {offsets = [0, 32], sizes = [8, 32], strides = [1, 1]} : vector<8x96xf32> to vector<8x32xf32>
    %48 = arith.addf %46, %47 : vector<8x32xf32>
    %49 = arith.negf %48 : vector<8x32xf32>
    %50 = math.exp %49 : vector<8x32xf32>
    %cst_24 = arith.constant 1.000000e+00 : f32
    %51 = vector.broadcast %cst_24 : f32 to vector<8x32xf32>
    %52 = arith.addf %51, %50 : vector<8x32xf32>
    %53 = arith.divf %51, %52 : vector<8x32xf32>
    %54 = vector.extract_strided_slice %31 {offsets = [0, 64], sizes = [8, 32], strides = [1, 1]} : vector<8x96xf32> to vector<8x32xf32>
    %55 = vector.extract_strided_slice %37 {offsets = [0, 64], sizes = [8, 32], strides = [1, 1]} : vector<8x96xf32> to vector<8x32xf32>
    %56 = arith.mulf %45, %55 : vector<8x32xf32>
    %57 = arith.addf %54, %56 : vector<8x32xf32>
    %58 = math.tanh %57 : vector<8x32xf32>
    %cst_25 = arith.constant 1.000000e+00 : f32
    %59 = vector.broadcast %cst_25 : f32 to vector<8x32xf32>
    %60 = arith.subf %59, %53 : vector<8x32xf32>
    %61 = arith.mulf %60, %58 : vector<8x32xf32>
    %62 = arith.mulf %53, %3 : vector<8x32xf32>
    %63 = arith.addf %61, %62 : vector<8x32xf32>
    %64 = arith.truncf %63 : vector<8x32xf32> to vector<8x32xbf16>
    %c0_26 = arith.constant 0 : index
    %c0_27 = arith.constant 0 : index
    %65 = vector.load %arg9[%c0_26, %c0_27] : memref<32x128xbf16, #tpu.memory_space<vmem>>, vector<32x128xbf16>
    %cst_28 = arith.constant dense<0.000000e+00> : vector<8x128xf32>
    %66 = tpu.matmul %64, %65, %cst_28 {dimension_numbers = #tpu.dot_dimension_numbers<[1], [0], [0], [1], [0, 0, 1, 1], [], []>} : vector<8x32xbf16>, vector<32x128xbf16>, vector<8x128xf32> -> vector<8x128xf32>
    %c0_29 = arith.constant 0 : index
    %c0_30 = arith.constant 0 : index
    %67 = vector.load %arg10[%c0_29, %c0_30] : memref<1x128xf32, #tpu.memory_space<vmem>>, vector<1x128xf32>
    %68 = vector.broadcast %67 : vector<1x128xf32> to vector<8x128xf32>
    %69 = arith.addf %66, %68 : vector<8x128xf32>
    %cst_31 = arith.constant dense<0xFF800000> : vector<8xf32>
    %70 = vector.multi_reduction <maximumf>, %69, %cst_31 [1] : vector<8x128xf32> to vector<8xf32>
    %71 = vector.shape_cast %70 : vector<8xf32> to vector<8x1xf32>
    %72 = vector.broadcast %71 : vector<8x1xf32> to vector<8x128xf32>
    %73 = arith.subf %69, %72 : vector<8x128xf32>
    %74 = math.exp %73 : vector<8x128xf32>
    %cst_32 = arith.constant dense<0.000000e+00> : vector<8xf32>
    %75 = vector.multi_reduction <add>, %74, %cst_32 [1] : vector<8x128xf32> to vector<8xf32>
    %76 = vector.shape_cast %75 : vector<8xf32> to vector<8x1xf32>
    %77 = math.log %76 : vector<8x1xf32>
    %78 = vector.broadcast %77 : vector<8x1xf32> to vector<8x128xf32>
    %79 = arith.subf %73, %78 : vector<8x128xf32>
    %cst_33 = arith.constant dense<0xFF800000> : vector<8xf32>
    %80 = vector.multi_reduction <maximumf>, %79, %cst_33 [1] : vector<8x128xf32> to vector<8xf32>
    %81 = vector.shape_cast %80 : vector<8xf32> to vector<8x1xf32>
    %82 = vector.broadcast %81 : vector<8x1xf32> to vector<8x128xf32>
    %83 = arith.cmpf oge, %79, %82 : vector<8x128xf32>
    %c128_i32 = arith.constant 128 : i32
    %84 = vector.broadcast %c128_i32 : i32 to vector<8x128xi32>
    %85 = arith.select %83, %4, %84 : vector<8x128xi1>, vector<8x128xi32>
    %cst_34 = arith.constant dense<2147483647> : vector<8xi32>
    %86 = vector.multi_reduction <minsi>, %85, %cst_34 [1] : vector<8x128xi32> to vector<8xi32>
    %87 = vector.shape_cast %86 : vector<8xi32> to vector<8x1xi32>
    %88 = vector.broadcast %87 : vector<8x1xi32> to vector<8x128xi32>
    %89 = arith.cmpi eq, %4, %88 : vector<8x128xi32>
    %90 = arith.extui %89 : vector<8x128xi1> to vector<8x128xi32>
    %91 = arith.sitofp %90 : vector<8x128xi32> to vector<8x128xf32>
    %92 = arith.truncf %91 : vector<8x128xf32> to vector<8x128xbf16>
    %c0_35 = arith.constant 0 : index
    %c0_36 = arith.constant 0 : index
    %93 = vector.load %arg3[%c0_35, %c0_36] : memref<128x32xbf16, #tpu.memory_space<vmem>>, vector<128x32xbf16>
    %cst_37 = arith.constant dense<0.000000e+00> : vector<8x32xf32>
    %94 = tpu.matmul %92, %93, %cst_37 {dimension_numbers = #tpu.dot_dimension_numbers<[1], [0], [0], [1], [0, 0, 1, 1], [], []>} : vector<8x128xbf16>, vector<128x32xbf16>, vector<8x32xf32> -> vector<8x32xf32>
    %c0_38 = arith.constant 0 : index
    %c0_39 = arith.constant 0 : index
    %95 = vector.load %arg13[%c0_38, %c0_39] : memref<8x32xf32, #tpu.memory_space<vmem>>, vector<8x32xf32>
    tpu.vector_store %arg13[%c0_38, %c0_39], %94 {strides = array<i32>} : memref<8x32xf32, #tpu.memory_space<vmem>>, vector<8x32xf32>,
    %c0_40 = arith.constant 0 : index
    %c0_41 = arith.constant 0 : index
    %96 = vector.load %arg12[%c0_40, %c0_41] : memref<8x32xf32, #tpu.memory_space<vmem>>, vector<8x32xf32>
    tpu.vector_store %arg12[%c0_40, %c0_41], %63 {strides = array<i32>} : memref<8x32xf32, #tpu.memory_space<vmem>>, vector<8x32xf32>,
    %c0_42 = arith.constant 0 : index
    %c0_43 = arith.constant 0 : index
    %97 = vector.load %arg11[%c0_42, %c0_43] : memref<8x128xf32, #tpu.memory_space<vmem>>, vector<8x128xf32>
    tpu.vector_store %arg11[%c0_42, %c0_43], %79 {strides = array<i32>} : memref<8x128xf32, #tpu.memory_space<vmem>>, vector<8x128xf32>,
    return
  }
  func.func @transform_0(%arg0: i32) -> (i32, i32, i32) {
    %c0_i32 = arith.constant 0 : i32
    %c0_i32_0 = arith.constant 0 : i32
    %c0_i32_1 = arith.constant 0 : i32
    %c0_i32_2 = arith.constant 0 : i32
    return %c0_i32, %c0_i32_0, %c0_i32_1 : i32, i32, i32
  }
  func.func @transform_1(%arg0: i32) -> (i32, i32) {
    %c0_i32 = arith.constant 0 : i32
    %c0_i32_0 = arith.constant 0 : i32
    %c0_i32_1 = arith.constant 0 : i32
    return %c0_i32, %c0_i32_0 : i32, i32
  }
  func.func @transform_2(%arg0: i32) -> (i32, i32) {
    %c0_i32 = arith.constant 0 : i32
    %c0_i32_0 = arith.constant 0 : i32
    %c0_i32_1 = arith.constant 0 : i32
    return %c0_i32, %c0_i32_0 : i32, i32
  }
  func.func @transform_3(%arg0: i32) -> (i32, i32) {
    %c0_i32 = arith.constant 0 : i32
    %c0_i32_0 = arith.constant 0 : i32
    %c0_i32_1 = arith.constant 0 : i32
    return %c0_i32, %c0_i32_0 : i32, i32
  }
  func.func @transform_4(%arg0: i32) -> (i32, i32) {
    %c0_i32 = arith.constant 0 : i32
    %c0_i32_0 = arith.constant 0 : i32
    %c0_i32_1 = arith.constant 0 : i32
    return %c0_i32, %c0_i32_0 : i32, i32
  }
  func.func @transform_5(%arg0: i32) -> (i32, i32) {
    %c0_i32 = arith.constant 0 : i32
    %c0_i32_0 = arith.constant 0 : i32
    %c0_i32_1 = arith.constant 0 : i32
    return %c0_i32, %c0_i32_0 : i32, i32
  }
  func.func @transform_6(%arg0: i32) -> (i32, i32) {
    %c0_i32 = arith.constant 0 : i32
    %c0_i32_0 = arith.constant 0 : i32
    %c0_i32_1 = arith.constant 0 : i32
    return %c0_i32, %c0_i32_0 : i32, i32
  }
  func.func @transform_7(%arg0: i32) -> (i32, i32) {
    %c0_i32 = arith.constant 0 : i32
    %c0_i32_0 = arith.constant 0 : i32
    %c0_i32_1 = arith.constant 0 : i32
    return %c0_i32, %c0_i32_0 : i32, i32
  }
  func.func @transform_8(%arg0: i32) -> (i32, i32) {
    %c0_i32 = arith.constant 0 : i32
    %c0_i32_0 = arith.constant 0 : i32
    %c0_i32_1 = arith.constant 0 : i32
    return %c0_i32, %c0_i32_0 : i32, i32
  }
  func.func @transform_9(%arg0: i32) -> (i32, i32) {
    %c0_i32 = arith.constant 0 : i32
    %c0_i32_0 = arith.constant 0 : i32
    %c0_i32_1 = arith.constant 0 : i32
    return %c0_i32, %c0_i32_0 : i32, i32
  }
  func.func @transform_10(%arg0: i32) -> (i32, i32) {
    %c0_i32 = arith.constant 0 : i32
    %c0_i32_0 = arith.constant 0 : i32
    return %c0_i32, %arg0 : i32, i32
  }
}

</mosaic_0001>

<llo_original>
// kernel: s2vt_attention_forward.2
$region0: #{s2vt_attention_forward.2}
  #allocation0 [shape = 'u32[]', space=smem, size = 0x4, offset = 0x4, fixed_abs, tag = 'smem constant byte address 0x4 - core index']
  #allocation1 [shape = 'u32[144,128]{1,0:T(1,128)}', space=vmem, size = 0x12000, scoped, tag = 'internal scratch']
  #allocation2 [shape = 'f32[8,32]{1,0:T(8,128)}', space=vmem, size = 0x1000, scoped, tag = 'scratch operand']
  %s0 = inlined_call_operand.vmem [shape: f32[8,8,64], index: 0, kind: input, shape index: {}]
  %s1 = inlined_call_operand.vmem [shape: bf16[64,96], index: 1, kind: input, shape index: {}]
  %s2 = inlined_call_operand.vmem [shape: f32[1,96], index: 2, kind: input, shape index: {}]
  %s3 = inlined_call_operand.vmem [shape: bf16[32,96], index: 3, kind: input, shape index: {}]
  %s4 = inlined_call_operand.vmem [shape: f32[1,96], index: 4, kind: input, shape index: {}]
  %s5 = inlined_call_operand.vmem [shape: f32[8,8,32], index: 5, kind: output, shape index: {}]
  %s6 = sld [smem:[#allocation0]]
  $region34: #{s2vt_attention_forward.2} parent=0
    _
  %s8 = ssub.s32 1, %s6
  %s9 = scalar_select 0, %s8, %s6
  // Predicated region
  $region2: #{s2vt_attention_forward.2} parent=0 // pred_check
    _
  $region3: #{s2vt_attention_forward.2} parent=0 // pred_check_branch
    %11 = sbr.rel (0) target = $region5
  $region4: #{s2vt_attention_forward.2} parent=0 // pred_region
    _
  $region5: #{s2vt_attention_forward.2} parent=0 // pred_fallthru
    _
  // Predicated region
  $region6: #{s2vt_attention_forward.2} parent=0 // pred_check
    _
  $region7: #{s2vt_attention_forward.2} parent=0 // pred_check_branch
    %13 = sbr.rel (0) target = $region9
  $region8: #{s2vt_attention_forward.2} parent=0 // pred_region
    _
  $region9: #{s2vt_attention_forward.2} parent=0 // pred_fallthru
    _
  // Predicated region
  $region10: #{s2vt_attention_forward.2} parent=0 // pred_check
    _
  $region11: #{s2vt_attention_forward.2} parent=0 // pred_check_branch
    %15 = sbr.rel (0) target = $region13
  $region12: #{s2vt_attention_forward.2} parent=0 // pred_region
    _
  $region13: #{s2vt_attention_forward.2} parent=0 // pred_fallthru
    _
  // Predicated region
  $region14: #{s2vt_attention_forward.2} parent=0 // pred_check
    _
  $region15: #{s2vt_attention_forward.2} parent=0 // pred_check_branch
    %17 = sbr.rel (0) target = $region17
  $region16: #{s2vt_attention_forward.2} parent=0 // pred_region
    _
  $region17: #{s2vt_attention_forward.2} parent=0 // pred_fallthru
    _
  // Predicated region
  $region18: #{s2vt_attention_forward.2} parent=0 // pred_check
    _
  $region19: #{s2vt_attention_forward.2} parent=0 // pred_check_branch
    %19 = sbr.rel (0) target = $region21
  $region20: #{s2vt_attention_forward.2} parent=0 // pred_region
    _
  $region21: #{s2vt_attention_forward.2} parent=0 // pred_fallthru
    _
  %p21 = scmp.eq.s32.totalorder 0, 0
  // Predicated region
  $region22: #{s2vt_attention_forward.2} parent=0 // pred_check
    %p22 = pneg %p21
  $region23: #{s2vt_attention_forward.2} parent=0 // pred_check_branch
    %24 = sbr.rel (%p22) target = $region25
  $region24: #{s2vt_attention_forward.2} parent=0 // pred_region
    %vm25 = vcmask 261120
    %26 = vst.msk [vmem:[#allocation2] sm:$0xff] %vm25, 0.0
  $region25: #{s2vt_attention_forward.2} parent=0 // pred_fallthru
    _
  %v27 = vld [vmem:[%s0] sm:$0xff]
  %v28 = vld [vmem:[%s0 + $0x8] sm:$0xff]
  %v29 = vld [vmem:[%s0 + $0x10] sm:$0xff]
  %v30 = vld [vmem:[%s0 + $0x18] sm:$0xff]
  %v31 = vld [vmem:[%s0 + $0x20] sm:$0xff]
  %v32 = vld [vmem:[%s0 + $0x28] sm:$0xff]
  %v33 = vld [vmem:[%s0 + $0x30] sm:$0xff]
  %v34 = vld [vmem:[%s0 + $0x38] sm:$0xff]
  %v35 = vpack.c.bf16 %v28, %v27
  %v36 = vpack.c.bf16 %v30, %v29
  %v37 = vpack.c.bf16 %v32, %v31
  %v38 = vpack.c.bf16 %v34, %v33
  %v39 = vld [vmem:[%s1] sm:$0xf]
  %v40 = vld [vmem:[%s1 + $0x4] sm:$0xf]
  %v41 = vld [vmem:[%s1 + $0x8] sm:$0xf]
  %v42 = vld [vmem:[%s1 + $0xc] sm:$0xf]
  %v43 = vld [vmem:[%s1 + $0x10] sm:$0xf]
  %v44 = vld [vmem:[%s1 + $0x14] sm:$0xf]
  %v45 = vld [vmem:[%s1 + $0x18] sm:$0xf]
  %v46 = vld [vmem:[%s1 + $0x1c] sm:$0xf]
  %v47 = vld [vmem:[%s2] sm:$0x1]
  %v49 = vlaneseq
  %v50 = vshrl.u32 %v49, 7
  %v51 = vsub.s32 0, %v50
  %v52 = vrot.slane %v47, %v51
  %v62 = vunpack.c.l.b16 %v39
  %v63 = vunpack.c.l.b16 %v40
  %v64 = vunpack.c.l.b16 %v41
  %v65 = vunpack.c.l.b16 %v42
  %v66 = vunpack.c.l.b16 %v43
  %v67 = vunpack.c.l.b16 %v44
  %v68 = vunpack.c.l.b16 %v45
  %v69 = vunpack.c.l.b16 %v46
  %v70 = vpack.c.b16 %v63, %v62
  %v71 = vpack.c.b16 %v65, %v64
  %v72 = vpack.c.b16 %v67, %v66
  %v73 = vpack.c.b16 %v69, %v68
  %vm78 = vcmask 523264
  %v80 = vsel %vm78, %v35, 0
  %v83 = vsel %vm78, %v36, 0
  %v86 = vsel %vm78, %v37, 0
  %v89 = vsel %vm78, %v38, 0
  %91 = vmatprep.subr.bf16.mxu0 0
  %92 = vmatpush1.bf16.msra.mxu0 %v70
  %93 = vmatprep.subr.bf16.mxu0 0
  %94 = vmatpush1.bf16.msra.mxu0 %v71
  %95 = vmatprep.subr.bf16.mxu0 0
  %96 = vmatpush1.bf16.msra.mxu0 %v72
  %97 = vmatprep.subr.bf16.mxu0 0
  %98 = vmatpush1.bf16.msra.mxu0 %v73
  %99 = vmatprep.subr.bf16.mxu0 0
  %100 = vmatpush1.bf16.msra.mxu0 0
  %101 = vmatprep.subr.bf16.mxu0 0
  %102 = vmatpush1.bf16.msra.mxu0 0
  %103 = vmatprep.subr.bf16.mxu0 0
  %104 = vmatpush1.bf16.msra.mxu0 0
  %105 = vmatprep.subr.bf16.mxu0 0
  %106 = vmatpush1.bf16.msra.mxu0 0
  %107 = vmatprep.subr.bf16.mxu0 0
  %108 = vmatpush1.bf16.msra.mxu0 0
  %109 = vmatprep.subr.bf16.mxu0 0
  %110 = vmatpush1.bf16.msra.mxu0 0
  %111 = vmatprep.subr.bf16.mxu0 0
  %112 = vmatpush1.bf16.msra.mxu0 0
  %113 = vmatprep.subr.bf16.mxu0 0
  %114 = vmatpush1.bf16.msra.mxu0 0
  %115 = vmatprep.subr.bf16.mxu0 0
  %116 = vmatpush1.bf16.msra.mxu0 0
  %117 = vmatprep.subr.bf16.mxu0 0
  %118 = vmatpush1.bf16.msra.mxu0 0
  %119 = vmatprep.subr.bf16.mxu0 0
  %120 = vmatpush1.bf16.msra.mxu0 0
  %121 = vmatprep.subr.bf16.mxu0 0
  %122 = vmatpush1.bf16.msra.mxu0 0
  %123 = vmatprep.mubr.bf16.mxu0 0
  %124 = vmatmul.mubr.bf16.gmra.mrb[0].mxu0 %v80
  %v125 = vpop.f32.mrb[0].mxu0
  %v126 = vadd.f32 %v52, %v125
  %v127 = vpop.f32.mrb[0].mxu0
  %v128 = vpop.f32.mrb[0].mxu0
  %v129 = vadd.f32 %v52, %v128
  %v130 = vpop.f32.mrb[0].mxu0
  %131 = vmatprep.mubr.bf16.mxu0 0
  %132 = vmatmul.mubr.bf16.gmra.mrb[0].mxu0 %v83
  %v133 = vpop.f32.mrb[0].mxu0
  %v134 = vadd.f32 %v52, %v133
  %v135 = vpop.f32.mrb[0].mxu0
  %v136 = vpop.f32.mrb[0].mxu0
  %v137 = vadd.f32 %v52, %v136
  %v138 = vpop.f32.mrb[0].mxu0
  %139 = vmatprep.mubr.bf16.mxu0 0
  %140 = vmatmul.mubr.bf16.gmra.mrb[0].mxu0 %v86
  %v141 = vpop.f32.mrb[0].mxu0
  %v142 = vadd.f32 %v52, %v141
  %v143 = vpop.f32.mrb[0].mxu0
  %v144 = vpop.f32.mrb[0].mxu0
  %v145 = vadd.f32 %v52, %v144
  %v146 = vpop.f32.mrb[0].mxu0
  %147 = vmatprep.mubr.bf16.mxu0 0
  %148 = vmatmul.mubr.bf16.gmra.mrb[0].mxu0 %v89
  %v149 = vpop.f32.mrb[0].mxu0
  %v150 = vadd.f32 %v52, %v149
  %v151 = vpop.f32.mrb[0].mxu0
  %v152 = vpop.f32.mrb[0].mxu0
  %v153 = vadd.f32 %v52, %v152
  %v154 = vpop.f32.mrb[0].mxu0
  %155 = vdwg.mxu0
  %v156 = vld [vmem:[#allocation2] sm:$0xff]
  %v157 = vpack.c.bf16 %v156, %v156
  %v158 = vld [vmem:[%s3] sm:$0xf]
  %v159 = vld [vmem:[%s3 + $0x4] sm:$0xf]
  %v160 = vld [vmem:[%s3 + $0x8] sm:$0xf]
  %v161 = vld [vmem:[%s3 + $0xc] sm:$0xf]
  %v162 = vld [vmem:[%s4] sm:$0x1]
  %v164 = vlaneseq
  %v165 = vshrl.u32 %v164, 7
  %v166 = vsub.s32 0, %v165
  %v167 = vrot.slane %v162, %v166
  %v173 = vunpack.c.l.b16 %v158
  %v174 = vunpack.c.l.b16 %v159
  %v175 = vunpack.c.l.b16 %v160
  %v176 = vunpack.c.l.b16 %v161
  %v177 = vpack.c.b16 %v174, %v173
  %v178 = vpack.c.b16 %v176, %v175
  %vm181 = vcmask 261120
  %v183 = vsel %vm181, %v157, 0
  %185 = vmatprep.subr.bf16.mxu0 0
  %186 = vmatpush1.bf16.msra.mxu0 %v177
  %187 = vmatprep.subr.bf16.mxu0 0
  %188 = vmatpush1.bf16.msra.mxu0 %v178
  %189 = vmatprep.subr.bf16.mxu0 0
  %190 = vmatpush1.bf16.msra.mxu0 0
  %191 = vmatprep.subr.bf16.mxu0 0
  %192 = vmatpush1.bf16.msra.mxu0 0
  %193 = vmatprep.subr.bf16.mxu0 0
  %194 = vmatpush1.bf16.msra.mxu0 0
  %195 = vmatprep.subr.bf16.mxu0 0
  %196 = vmatpush1.bf16.msra.mxu0 0
  %197 = vmatprep.subr.bf16.mxu0 0
  %198 = vmatpush1.bf16.msra.mxu0 0
  %199 = vmatprep.subr.bf16.mxu0 0
  %200 = vmatpush1.bf16.msra.mxu0 0
  %201 = vmatprep.subr.bf16.mxu0 0
  %202 = vmatpush1.bf16.msra.mxu0 0
  %203 = vmatprep.subr.bf16.mxu0 0
  %204 = vmatpush1.bf16.msra.mxu0 0
  %205 = vmatprep.subr.bf16.mxu0 0
  %206 = vmatpush1.bf16.msra.mxu0 0
  %207 = vmatprep.subr.bf16.mxu0 0
  %208 = vmatpush1.bf16.msra.mxu0 0
  %209 = vmatprep.subr.bf16.mxu0 0
  %210 = vmatpush1.bf16.msra.mxu0 0
  %211 = vmatprep.subr.bf16.mxu0 0
  %212 = vmatpush1.bf16.msra.mxu0 0
  %213 = vmatprep.subr.bf16.mxu0 0
  %214 = vmatpush1.bf16.msra.mxu0 0
  %215 = vmatprep.subr.bf16.mxu0 0
  %216 = vmatpush1.bf16.msra.mxu0 0
  %217 = vmatprep.mubr.bf16.mxu0 0
  %218 = vmatmul.mubr.bf16.gmra.mrb[0].mxu0 %v183
  %v219 = vpop.f32.mrb[0].mxu0
  %v220 = vadd.f32 %v167, %v219
  %v221 = vpop.f32.mrb[0].mxu0
  %v222 = vpop.f32.mrb[0].mxu0
  %v223 = vpop.f32.mrb[0].mxu0
  %224 = vdwg.mxu0
  %v225 = vadd.f32 %v126, %v220
  %v226 = vxor.u32 %v225, 2147483648
  %v227 = vmul.f32 %v226, 1.442695
  %v228 = vpow.pop %v227
  %v229 = vadd.f32 %v228, 1.0
  %v230 = vrcp.pop %v229
  %v231 = vmul.f32 1.0, %v230
  %233 = vrot.lane.b32.xlu0 %v220, 64
  %v234 = vpop.permute.xlu0 %233
  %v236 = vmul.f32 %v231, %v234
  %238 = vrot.lane.b32.xlu0 %v236, 64
  %v239 = vpop.permute.xlu0 %238
  %v241 = vadd.f32 %v126, %v239
  %v242 = vtanh.pop %v241
  %v243 = vsub.f32 1.0, %v231
  %245 = vrot.lane.b32.xlu0 %v242, 96
  %v246 = vpop.permute.xlu0 %245
  %v248 = vmul.f32 %v243, %v246
  %250 = vrot.lane.b32.xlu0 %v156, 32
  %v251 = vpop.permute.xlu0 %250
  %v253 = vmul.f32 %v231, %v251
  %v254 = vadd.f32 %v248, %v253
  %256 = vrot.lane.b32.xlu0 %v254, 96
  %v257 = vpop.permute.xlu0 %256
  %259 = vst.msk [vmem:[%s5] sm:$0xff] %vm181, %v257
  %v260 = vpack.c.bf16 %v254, %v254
  %v261 = vld [vmem:[%s3] sm:$0xf]
  %v262 = vld [vmem:[%s3 + $0x4] sm:$0xf]
  %v263 = vld [vmem:[%s3 + $0x8] sm:$0xf]
  %v264 = vld [vmem:[%s3 + $0xc] sm:$0xf]
  %v265 = vld [vmem:[%s4] sm:$0x1]
  %v267 = vlaneseq
  %v268 = vshrl.u32 %v267, 7
  %v269 = vsub.s32 0, %v268
  %v270 = vrot.slane %v265, %v269
  %273 = vrot.lane.b32.xlu0 %v260, 96
  %v274 = vpop.permute.xlu0 %273
  %v279 = vunpack.c.l.b16 %v261
  %v280 = vunpack.c.l.b16 %v262
  %v281 = vunpack.c.l.b16 %v263
  %v282 = vunpack.c.l.b16 %v264
  %v283 = vpack.c.b16 %v280, %v279
  %v284 = vpack.c.b16 %v282, %v281
  %v288 = vsel %vm181, %v274, 0
  %290 = vmatprep.subr.bf16.mxu0 0
  %291 = vmatpush1.bf16.msra.mxu0 %v283
  %292 = vmatprep.subr.bf16.mxu0 0
  %293 = vmatpush1.bf16.msra.mxu0 %v284
  %294 = vmatprep.subr.bf16.mxu0 0
  %295 = vmatpush1.bf16.msra.mxu0 0
  %296 = vmatprep.subr.bf16.mxu0 0
  %297 = vmatpush1.bf16.msra.mxu0 0
  %298 = vmatprep.subr.bf16.mxu0 0
  %299 = vmatpush1.bf16.msra.mxu0 0
  %300 = vmatprep.subr.bf16.mxu0 0
  %301 = vmatpush1.bf16.msra.mxu0 0
  %302 = vmatprep.subr.bf16.mxu0 0
  %303 = vmatpush1.bf16.msra.mxu0 0
  %304 = vmatprep.subr.bf16.mxu0 0
  %305 = vmatpush1.bf16.msra.mxu0 0
  %306 = vmatprep.subr.bf16.mxu0 0
  %307 = vmatpush1.bf16.msra.mxu0 0
  %308 = vmatprep.subr.bf16.mxu0 0
  %309 = vmatpush1.bf16.msra.mxu0 0
  %310 = vmatprep.subr.bf16.mxu0 0
  %311 = vmatpush1.bf16.msra.mxu0 0
  %312 = vmatprep.subr.bf16.mxu0 0
  %313 = vmatpush1.bf16.msra.mxu0 0
  %314 = vmatprep.subr.bf16.mxu0 0
  %315 = vmatpush1.bf16.msra.mxu0 0
  %316 = vmatprep.subr.bf16.mxu0 0
  %317 = vmatpush1.bf16.msra.mxu0 0
  %318 = vmatprep.subr.bf16.mxu0 0
  %319 = vmatpush1.bf16.msra.mxu0 0
  %320 = vmatprep.subr.bf16.mxu0 0
  %321 = vmatpush1.bf16.msra.mxu0 0
  %322 = vmatprep.mubr.bf16.mxu0 0
  %323 = vmatmul.mubr.bf16.gmra.mrb[0].mxu0 %v288
  %v324 = vpop.f32.mrb[0].mxu0
  %v325 = vadd.f32 %v270, %v324
  %v326 = vpop.f32.mrb[0].mxu0
  %v327 = vpop.f32.mrb[0].mxu0
  %v328 = vpop.f32.mrb[0].mxu0
  %329 = vdwg.mxu0
  %v330 = vadd.f32 %v129, %v325
  %v331 = vxor.u32 %v330, 2147483648
  %v332 = vmul.f32 %v331, 1.442695
  %v333 = vpow.pop %v332
  %v334 = vadd.f32 %v333, 1.0
  %v335 = vrcp.pop %v334
  %v336 = vmul.f32 1.0, %v335
  %338 = vrot.lane.b32.xlu0 %v325, 64
  %v339 = vpop.permute.xlu0 %338
  %v341 = vmul.f32 %v336, %v339
  %343 = vrot.lane.b32.xlu0 %v341, 64
  %v344 = vpop.permute.xlu0 %343
  %v346 = vadd.f32 %v129, %v344
  %v347 = vtanh.pop %v346
  %v348 = vsub.f32 1.0, %v336
  %350 = vrot.lane.b32.xlu0 %v347, 96
  %v351 = vpop.permute.xlu0 %350
  %v353 = vmul.f32 %v348, %v351
  %v354 = vmul.f32 %v336, %v254
  %v355 = vadd.f32 %v353, %v354
  %357 = vrot.lane.b32.xlu0 %v355, 96
  %v358 = vpop.permute.xlu0 %357
  %s360 = scalar_lea.vmem %s5, 8
  %361 = vst.msk [vmem:[%s360] sm:$0xff] %vm181, %v358
  %v362 = vpack.c.bf16 %v355, %v355
  %v363 = vld [vmem:[%s3] sm:$0xf]
  %v364 = vld [vmem:[%s3 + $0x4] sm:$0xf]
  %v365 = vld [vmem:[%s3 + $0x8] sm:$0xf]
  %v366 = vld [vmem:[%s3 + $0xc] sm:$0xf]
  %v367 = vld [vmem:[%s4] sm:$0x1]
  %v369 = vlaneseq
  %v370 = vshrl.u32 %v369, 7
  %v371 = vsub.s32 0, %v370
  %v372 = vrot.slane %v367, %v371
  %375 = vrot.lane.b32.xlu0 %v362, 96
  %v376 = vpop.permute.xlu0 %375
  %v381 = vunpack.c.l.b16 %v363
  %v382 = vunpack.c.l.b16 %v364
  %v383 = vunpack.c.l.b16 %v365
  %v384 = vunpack.c.l.b16 %v366
  %v385 = vpack.c.b16 %v382, %v381
  %v386 = vpack.c.b16 %v384, %v383
  %v390 = vsel %vm181, %v376, 0
  %392 = vmatprep.subr.bf16.mxu0 0
  %393 = vmatpush1.bf16.msra.mxu0 %v385
  %394 = vmatprep.subr.bf16.mxu0 0
  %395 = vmatpush1.bf16.msra.mxu0 %v386
  %396 = vmatprep.subr.bf16.mxu0 0
  %397 = vmatpush1.bf16.msra.mxu0 0
  %398 = vmatprep.subr.bf16.mxu0 0
  %399 = vmatpush1.bf16.msra.mxu0 0
  %400 = vmatprep.subr.bf16.mxu0 0
  %401 = vmatpush1.bf16.msra.mxu0 0
  %402 = vmatprep.subr.bf16.mxu0 0
  %403 = vmatpush1.bf16.msra.mxu0 0
  %404 = vmatprep.subr.bf16.mxu0 0
  %405 = vmatpush1.bf16.msra.mxu0 0
  %406 = vmatprep.subr.bf16.mxu0 0
  %407 = vmatpush1.bf16.msra.mxu0 0
  %408 = vmatprep.subr.bf16.mxu0 0
  %409 = vmatpush1.bf16.msra.mxu0 0
  %410 = vmatprep.subr.bf16.mxu0 0
  %411 = vmatpush1.bf16.msra.mxu0 0
  %412 = vmatprep.subr.bf16.mxu0 0
  %413 = vmatpush1.bf16.msra.mxu0 0
  %414 = vmatprep.subr.bf16.mxu0 0
  %415 = vmatpush1.bf16.msra.mxu0 0
  %416 = vmatprep.subr.bf16.mxu0 0
  %417 = vmatpush1.bf16.msra.mxu0 0
  %418 = vmatprep.subr.bf16.mxu0 0
  %419 = vmatpush1.bf16.msra.mxu0 0
  %420 = vmatprep.subr.bf16.mxu0 0
  %421 = vmatpush1.bf16.msra.mxu0 0
  %422 = vmatprep.subr.bf16.mxu0 0
  %423 = vmatpush1.bf16.msra.mxu0 0
  %424 = vmatprep.mubr.bf16.mxu0 0
  %425 = vmatmul.mubr.bf16.gmra.mrb[0].mxu0 %v390
  %v426 = vpop.f32.mrb[0].mxu0
  %v427 = vadd.f32 %v372, %v426
  %v428 = vpop.f32.mrb[0].mxu0
  %v429 = vpop.f32.mrb[0].mxu0
  %v430 = vpop.f32.mrb[0].mxu0
  %431 = vdwg.mxu0
  %v432 = vadd.f32 %v134, %v427
  %v433 = vxor.u32 %v432, 2147483648
  %v434 = vmul.f32 %v433, 1.442695
  %v435 = vpow.pop %v434
  %v436 = vadd.f32 %v435, 1.0
  %v437 = vrcp.pop %v436
  %v438 = vmul.f32 1.0, %v437
  %440 = vrot.lane.b32.xlu0 %v427, 64
  %v441 = vpop.permute.xlu0 %440
  %v443 = vmul.f32 %v438, %v441
  %445 = vrot.lane.b32.xlu0 %v443, 64
  %v446 = vpop.permute.xlu0 %445
  %v448 = vadd.f32 %v134, %v446
  %v449 = vtanh.pop %v448
  %v450 = vsub.f32 1.0, %v438
  %452 = vrot.lane.b32.xlu0 %v449, 96
  %v453 = vpop.permute.xlu0 %452
  %v455 = vmul.f32 %v450, %v453
  %v456 = vmul.f32 %v438, %v355
  %v457 = vadd.f32 %v455, %v456
  %459 = vrot.lane.b32.xlu0 %v457, 96
  %v460 = vpop.permute.xlu0 %459
  %s462 = scalar_lea.vmem %s5, 16
  %463 = vst.msk [vmem:[%s462] sm:$0xff] %vm181, %v460
  %v464 = vpack.c.bf16 %v457, %v457
  %v465 = vld [vmem:[%s3] sm:$0xf]
  %v466 = vld [vmem:[%s3 + $0x4] sm:$0xf]
  %v467 = vld [vmem:[%s3 + $0x8] sm:$0xf]
  %v468 = vld [vmem:[%s3 + $0xc] sm:$0xf]
  %v469 = vld [vmem:[%s4] sm:$0x1]
  %v471 = vlaneseq
  %v472 = vshrl.u32 %v471, 7
  %v473 = vsub.s32 0, %v472
  %v474 = vrot.slane %v469, %v473
  %477 = vrot.lane.b32.xlu0 %v464, 96
  %v478 = vpop.permute.xlu0 %477
  %v483 = vunpack.c.l.b16 %v465
  %v484 = vunpack.c.l.b16 %v466
  %v485 = vunpack.c.l.b16 %v467
  %v486 = vunpack.c.l.b16 %v468
  %v487 = vpack.c.b16 %v484, %v483
  %v488 = vpack.c.b16 %v486, %v485
  %v492 = vsel %vm181, %v478, 0
  %494 = vmatprep.subr.bf16.mxu0 0
  %495 = vmatpush1.bf16.msra.mxu0 %v487
  %496 = vmatprep.subr.bf16.mxu0 0
  %497 = vmatpush1.bf16.msra.mxu0 %v488
  %498 = vmatprep.subr.bf16.mxu0 0
  %499 = vmatpush1.bf16.msra.mxu0 0
  %500 = vmatprep.subr.bf16.mxu0 0
  %501 = vmatpush1.bf16.msra.mxu0 0
  %502 = vmatprep.subr.bf16.mxu0 0
  %503 = vmatpush1.bf16.msra.mxu0 0
  %504 = vmatprep.subr.bf16.mxu0 0
  %505 = vmatpush1.bf16.msra.mxu0 0
  %506 = vmatprep.subr.bf16.mxu0 0
  %507 = vmatpush1.bf16.msra.mxu0 0
  %508 = vmatprep.subr.bf16.mxu0 0
  %509 = vmatpush1.bf16.msra.mxu0 0
  %510 = vmatprep.subr.bf16.mxu0 0
  %511 = vmatpush1.bf16.msra.mxu0 0
  %512 = vmatprep.subr.bf16.mxu0 0
  %513 = vmatpush1.bf16.msra.mxu0 0
  %514 = vmatprep.subr.bf16.mxu0 0
  %515 = vmatpush1.bf16.msra.mxu0 0
  %516 = vmatprep.subr.bf16.mxu0 0
  %517 = vmatpush1.bf16.msra.mxu0 0
  %518 = vmatprep.subr.bf16.mxu0 0
  %519 = vmatpush1.bf16.msra.mxu0 0
  %520 = vmatprep.subr.bf16.mxu0 0
  %521 = vmatpush1.bf16.msra.mxu0 0
  %522 = vmatprep.subr.bf16.mxu0 0
  %523 = vmatpush1.bf16.msra.mxu0 0
  %524 = vmatprep.subr.bf16.mxu0 0
  %525 = vmatpush1.bf16.msra.mxu0 0
  %526 = vmatprep.mubr.bf16.mxu0 0
  %527 = vmatmul.mubr.bf16.gmra.mrb[0].mxu0 %v492
  %v528 = vpop.f32.mrb[0].mxu0
  %v529 = vadd.f32 %v474, %v528
  %v530 = vpop.f32.mrb[0].mxu0
  %v531 = vpop.f32.mrb[0].mxu0
  %v532 = vpop.f32.mrb[0].mxu0
  %533 = vdwg.mxu0
  %v534 = vadd.f32 %v137, %v529
  %v535 = vxor.u32 %v534, 2147483648
  %v536 = vmul.f32 %v535, 1.442695
  %v537 = vpow.pop %v536
  %v538 = vadd.f32 %v537, 1.0
  %v539 = vrcp.pop %v538
  %v540 = vmul.f32 1.0, %v539
  %542 = vrot.lane.b32.xlu0 %v529, 64
  %v543 = vpop.permute.xlu0 %542
  %v545 = vmul.f32 %v540, %v543
  %547 = vrot.lane.b32.xlu0 %v545, 64
  %v548 = vpop.permute.xlu0 %547
  %v550 = vadd.f32 %v137, %v548
  %v551 = vtanh.pop %v550
  %v552 = vsub.f32 1.0, %v540
  %554 = vrot.lane.b32.xlu0 %v551, 96
  %v555 = vpop.permute.xlu0 %554
  %v557 = vmul.f32 %v552, %v555
  %v558 = vmul.f32 %v540, %v457
  %v559 = vadd.f32 %v557, %v558
  %561 = vrot.lane.b32.xlu0 %v559, 96
  %v562 = vpop.permute.xlu0 %561
  %s564 = scalar_lea.vmem %s5, 24
  %565 = vst.msk [vmem:[%s564] sm:$0xff] %vm181, %v562
  %v566 = vpack.c.bf16 %v559, %v559
  %v567 = vld [vmem:[%s3] sm:$0xf]
  %v568 = vld [vmem:[%s3 + $0x4] sm:$0xf]
  %v569 = vld [vmem:[%s3 + $0x8] sm:$0xf]
  %v570 = vld [vmem:[%s3 + $0xc] sm:$0xf]
  %v571 = vld [vmem:[%s4] sm:$0x1]
  %v573 = vlaneseq
  %v574 = vshrl.u32 %v573, 7
  %v575 = vsub.s32 0, %v574
  %v576 = vrot.slane %v571, %v575
  %579 = vrot.lane.b32.xlu0 %v566, 96
  %v580 = vpop.permute.xlu0 %579
  %v585 = vunpack.c.l.b16 %v567
  %v586 = vunpack.c.l.b16 %v568
  %v587 = vunpack.c.l.b16 %v569
  %v588 = vunpack.c.l.b16 %v570
  %v589 = vpack.c.b16 %v586, %v585
  %v590 = vpack.c.b16 %v588, %v587
  %v594 = vsel %vm181, %v580, 0
  %596 = vmatprep.subr.bf16.mxu0 0
  %597 = vmatpush1.bf16.msra.mxu0 %v589
  %598 = vmatprep.subr.bf16.mxu0 0
  %599 = vmatpush1.bf16.msra.mxu0 %v590
  %600 = vmatprep.subr.bf16.mxu0 0
  %601 = vmatpush1.bf16.msra.mxu0 0
  %602 = vmatprep.subr.bf16.mxu0 0
  %603 = vmatpush1.bf16.msra.mxu0 0
  %604 = vmatprep.subr.bf16.mxu0 0
  %605 = vmatpush1.bf16.msra.mxu0 0
  %606 = vmatprep.subr.bf16.mxu0 0
  %607 = vmatpush1.bf16.msra.mxu0 0
  %608 = vmatprep.subr.bf16.mxu0 0
  %609 = vmatpush1.bf16.msra.mxu0 0
  %610 = vmatprep.subr.bf16.mxu0 0
  %611 = vmatpush1.bf16.msra.mxu0 0
  %612 = vmatprep.subr.bf16.mxu0 0
  %613 = vmatpush1.bf16.msra.mxu0 0
  %614 = vmatprep.subr.bf16.mxu0 0
  %615 = vmatpush1.bf16.msra.mxu0 0
  %616 = vmatprep.subr.bf16.mxu0 0
  %617 = vmatpush1.bf16.msra.mxu0 0
  %618 = vmatprep.subr.bf16.mxu0 0
  %619 = vmatpush1.bf16.msra.mxu0 0
  %620 = vmatprep.subr.bf16.mxu0 0
  %621 = vmatpush1.bf16.msra.mxu0 0
  %622 = vmatprep.subr.bf16.mxu0 0
  %623 = vmatpush1.bf16.msra.mxu0 0
  %624 = vmatprep.subr.bf16.mxu0 0
  %625 = vmatpush1.bf16.msra.mxu0 0
  %626 = vmatprep.subr.bf16.mxu0 0
  %627 = vmatpush1.bf16.msra.mxu0 0
  %628 = vmatprep.mubr.bf16.mxu0 0
  %629 = vmatmul.mubr.bf16.gmra.mrb[0].mxu0 %v594
  %v630 = vpop.f32.mrb[0].mxu0
  %v631 = vadd.f32 %v576, %v630
  %v632 = vpop.f32.mrb[0].mxu0
  %v633 = vpop.f32.mrb[0].mxu0
  %v634 = vpop.f32.mrb[0].mxu0
  %635 = vdwg.mxu0
  %v636 = vadd.f32 %v142, %v631
  %v637 = vxor.u32 %v636, 2147483648
  %v638 = vmul.f32 %v637, 1.442695
  %v639 = vpow.pop %v638
  %v640 = vadd.f32 %v639, 1.0
  %v641 = vrcp.pop %v640
  %v642 = vmul.f32 1.0, %v641
  %644 = vrot.lane.b32.xlu0 %v631, 64
  %v645 = vpop.permute.xlu0 %644
  %v647 = vmul.f32 %v642, %v645
  %649 = vrot.lane.b32.xlu0 %v647, 64
  %v650 = vpop.permute.xlu0 %649
  %v652 = vadd.f32 %v142, %v650
  %v653 = vtanh.pop %v652
  %v654 = vsub.f32 1.0, %v642
  %656 = vrot.lane.b32.xlu0 %v653, 96
  %v657 = vpop.permute.xlu0 %656
  %v659 = vmul.f32 %v654, %v657
  %v660 = vmul.f32 %v642, %v559
  %v661 = vadd.f32 %v659, %v660
  %663 = vrot.lane.b32.xlu0 %v661, 96
  %v664 = vpop.permute.xlu0 %663
  %s666 = scalar_lea.vmem %s5, 32
  %667 = vst.msk [vmem:[%s666] sm:$0xff] %vm181, %v664
  %v668 = vpack.c.bf16 %v661, %v661
  %v669 = vld [vmem:[%s3] sm:$0xf]
  %v670 = vld [vmem:[%s3 + $0x4] sm:$0xf]
  %v671 = vld [vmem:[%s3 + $0x8] sm:$0xf]
  %v672 = vld [vmem:[%s3 + $0xc] sm:$0xf]
  %v673 = vld [vmem:[%s4] sm:$0x1]
  %v675 = vlaneseq
  %v676 = vshrl.u32 %v675, 7
  %v677 = vsub.s32 0, %v676
  %v678 = vrot.slane %v673, %v677
  %681 = vrot.lane.b32.xlu0 %v668, 96
  %v682 = vpop.permute.xlu0 %681
  %v687 = vunpack.c.l.b16 %v669
  %v688 = vunpack.c.l.b16 %v670
  %v689 = vunpack.c.l.b16 %v671
  %v690 = vunpack.c.l.b16 %v672
  %v691 = vpack.c.b16 %v688, %v687
  %v692 = vpack.c.b16 %v690, %v689
  %v696 = vsel %vm181, %v682, 0
  %698 = vmatprep.subr.bf16.mxu0 0
  %699 = vmatpush1.bf16.msra.mxu0 %v691
  %700 = vmatprep.subr.bf16.mxu0 0
  %701 = vmatpush1.bf16.msra.mxu0 %v692
  %702 = vmatprep.subr.bf16.mxu0 0
  %703 = vmatpush1.bf16.msra.mxu0 0
  %704 = vmatprep.subr.bf16.mxu0 0
  %705 = vmatpush1.bf16.msra.mxu0 0
  %706 = vmatprep.subr.bf16.mxu0 0
  %707 = vmatpush1.bf16.msra.mxu0 0
  %708 = vmatprep.subr.bf16.mxu0 0
  %709 = vmatpush1.bf16.msra.mxu0 0
  %710 = vmatprep.subr.bf16.mxu0 0
  %711 = vmatpush1.bf16.msra.mxu0 0
  %712 = vmatprep.subr.bf16.mxu0 0
  %713 = vmatpush1.bf16.msra.mxu0 0
  %714 = vmatprep.subr.bf16.mxu0 0
  %715 = vmatpush1.bf16.msra.mxu0 0
  %716 = vmatprep.subr.bf16.mxu0 0
  %717 = vmatpush1.bf16.msra.mxu0 0
  %718 = vmatprep.subr.bf16.mxu0 0
  %719 = vmatpush1.bf16.msra.mxu0 0
  %720 = vmatprep.subr.bf16.mxu0 0
  %721 = vmatpush1.bf16.msra.mxu0 0
  %722 = vmatprep.subr.bf16.mxu0 0
  %723 = vmatpush1.bf16.msra.mxu0 0
  %724 = vmatprep.subr.bf16.mxu0 0
  %725 = vmatpush1.bf16.msra.mxu0 0
  %726 = vmatprep.subr.bf16.mxu0 0
  %727 = vmatpush1.bf16.msra.mxu0 0
  %728 = vmatprep.subr.bf16.mxu0 0
  %729 = vmatpush1.bf16.msra.mxu0 0
  %730 = vmatprep.mubr.bf16.mxu0 0
  %731 = vmatmul.mubr.bf16.gmra.mrb[0].mxu0 %v696
  %v732 = vpop.f32.mrb[0].mxu0
  %v733 = vadd.f32 %v678, %v732
  %v734 = vpop.f32.mrb[0].mxu0
  %v735 = vpop.f32.mrb[0].mxu0
  %v736 = vpop.f32.mrb[0].mxu0
  %737 = vdwg.mxu0
  %v738 = vadd.f32 %v145, %v733
  %v739 = vxor.u32 %v738, 2147483648
  %v740 = vmul.f32 %v739, 1.442695
  %v741 = vpow.pop %v740
  %v742 = vadd.f32 %v741, 1.0
  %v743 = vrcp.pop %v742
  %v744 = vmul.f32 1.0, %v743
  %746 = vrot.lane.b32.xlu0 %v733, 64
  %v747 = vpop.permute.xlu0 %746
  %v749 = vmul.f32 %v744, %v747
  %751 = vrot.lane.b32.xlu0 %v749, 64
  %v752 = vpop.permute.xlu0 %751
  %v754 = vadd.f32 %v145, %v752
  %v755 = vtanh.pop %v754
  %v756 = vsub.f32 1.0, %v744
  %758 = vrot.lane.b32.xlu0 %v755, 96
  %v759 = vpop.permute.xlu0 %758
  %v761 = vmul.f32 %v756, %v759
  %v762 = vmul.f32 %v744, %v661
  %v763 = vadd.f32 %v761, %v762
  %765 = vrot.lane.b32.xlu0 %v763, 96
  %v766 = vpop.permute.xlu0 %765
  %s768 = scalar_lea.vmem %s5, 40
  %769 = vst.msk [vmem:[%s768] sm:$0xff] %vm181, %v766
  %v770 = vpack.c.bf16 %v763, %v763
  %v771 = vld [vmem:[%s3] sm:$0xf]
  %v772 = vld [vmem:[%s3 + $0x4] sm:$0xf]
  %v773 = vld [vmem:[%s3 + $0x8] sm:$0xf]
  %v774 = vld [vmem:[%s3 + $0xc] sm:$0xf]
  %v775 = vld [vmem:[%s4] sm:$0x1]
  %v777 = vlaneseq
  %v778 = vshrl.u32 %v777, 7
  %v779 = vsub.s32 0, %v778
  %v780 = vrot.slane %v775, %v779
  %783 = vrot.lane.b32.xlu0 %v770, 96
  %v784 = vpop.permute.xlu0 %783
  %v789 = vunpack.c.l.b16 %v771
  %v790 = vunpack.c.l.b16 %v772
  %v791 = vunpack.c.l.b16 %v773
  %v792 = vunpack.c.l.b16 %v774
  %v793 = vpack.c.b16 %v790, %v789
  %v794 = vpack.c.b16 %v792, %v791
  %v798 = vsel %vm181, %v784, 0
  %800 = vmatprep.subr.bf16.mxu0 0
  %801 = vmatpush1.bf16.msra.mxu0 %v793
  %802 = vmatprep.subr.bf16.mxu0 0
  %803 = vmatpush1.bf16.msra.mxu0 %v794
  %804 = vmatprep.subr.bf16.mxu0 0
  %805 = vmatpush1.bf16.msra.mxu0 0
  %806 = vmatprep.subr.bf16.mxu0 0
  %807 = vmatpush1.bf16.msra.mxu0 0
  %808 = vmatprep.subr.bf16.mxu0 0
  %809 = vmatpush1.bf16.msra.mxu0 0
  %810 = vmatprep.subr.bf16.mxu0 0
  %811 = vmatpush1.bf16.msra.mxu0 0
  %812 = vmatprep.subr.bf16.mxu0 0
  %813 = vmatpush1.bf16.msra.mxu0 0
  %814 = vmatprep.subr.bf16.mxu0 0
  %815 = vmatpush1.bf16.msra.mxu0 0
  %816 = vmatprep.subr.bf16.mxu0 0
  %817 = vmatpush1.bf16.msra.mxu0 0
  %818 = vmatprep.subr.bf16.mxu0 0
  %819 = vmatpush1.bf16.msra.mxu0 0
  %820 = vmatprep.subr.bf16.mxu0 0
  %821 = vmatpush1.bf16.msra.mxu0 0
  %822 = vmatprep.subr.bf16.mxu0 0
  %823 = vmatpush1.bf16.msra.mxu0 0
  %824 = vmatprep.subr.bf16.mxu0 0
  %825 = vmatpush1.bf16.msra.mxu0 0
  %826 = vmatprep.subr.bf16.mxu0 0
  %827 = vmatpush1.bf16.msra.mxu0 0
  %828 = vmatprep.subr.bf16.mxu0 0
  %829 = vmatpush1.bf16.msra.mxu0 0
  %830 = vmatprep.subr.bf16.mxu0 0
  %831 = vmatpush1.bf16.msra.mxu0 0
  %832 = vmatprep.mubr.bf16.mxu0 0
  %833 = vmatmul.mubr.bf16.gmra.mrb[0].mxu0 %v798
  %v834 = vpop.f32.mrb[0].mxu0
  %v835 = vadd.f32 %v780, %v834
  %v836 = vpop.f32.mrb[0].mxu0
  %v837 = vpop.f32.mrb[0].mxu0
  %v838 = vpop.f32.mrb[0].mxu0
  %839 = vdwg.mxu0
  %v840 = vadd.f32 %v150, %v835
  %v841 = vxor.u32 %v840, 2147483648
  %v842 = vmul.f32 %v841, 1.442695
  %v843 = vpow.pop %v842
  %v844 = vadd.f32 %v843, 1.0
  %v845 = vrcp.pop %v844
  %v846 = vmul.f32 1.0, %v845
  %848 = vrot.lane.b32.xlu0 %v835, 64
  %v849 = vpop.permute.xlu0 %848
  %v851 = vmul.f32 %v846, %v849
  %853 = vrot.lane.b32.xlu0 %v851, 64
  %v854 = vpop.permute.xlu0 %853
  %v856 = vadd.f32 %v150, %v854
  %v857 = vtanh.pop %v856
  %v858 = vsub.f32 1.0, %v846
  %860 = vrot.lane.b32.xlu0 %v857, 96
  %v861 = vpop.permute.xlu0 %860
  %v863 = vmul.f32 %v858, %v861
  %v864 = vmul.f32 %v846, %v763
  %v865 = vadd.f32 %v863, %v864
  %867 = vrot.lane.b32.xlu0 %v865, 96
  %v868 = vpop.permute.xlu0 %867
  %s870 = scalar_lea.vmem %s5, 48
  %871 = vst.msk [vmem:[%s870] sm:$0xff] %vm181, %v868
  %v872 = vpack.c.bf16 %v865, %v865
  %v873 = vld [vmem:[%s3] sm:$0xf]
  %v874 = vld [vmem:[%s3 + $0x4] sm:$0xf]
  %v875 = vld [vmem:[%s3 + $0x8] sm:$0xf]
  %v876 = vld [vmem:[%s3 + $0xc] sm:$0xf]
  %v877 = vld [vmem:[%s4] sm:$0x1]
  %v879 = vlaneseq
  %v880 = vshrl.u32 %v879, 7
  %v881 = vsub.s32 0, %v880
  %v882 = vrot.slane %v877, %v881
  %885 = vrot.lane.b32.xlu0 %v872, 96
  %v886 = vpop.permute.xlu0 %885
  %v891 = vunpack.c.l.b16 %v873
  %v892 = vunpack.c.l.b16 %v874
  %v893 = vunpack.c.l.b16 %v875
  %v894 = vunpack.c.l.b16 %v876
  %v895 = vpack.c.b16 %v892, %v891
  %v896 = vpack.c.b16 %v894, %v893
  %v900 = vsel %vm181, %v886, 0
  %902 = vmatprep.subr.bf16.mxu0 0
  %903 = vmatpush1.bf16.msra.mxu0 %v895
  %904 = vmatprep.subr.bf16.mxu0 0
  %905 = vmatpush1.bf16.msra.mxu0 %v896
  %906 = vmatprep.subr.bf16.mxu0 0
  %907 = vmatpush1.bf16.msra.mxu0 0
  %908 = vmatprep.subr.bf16.mxu0 0
  %909 = vmatpush1.bf16.msra.mxu0 0
  %910 = vmatprep.subr.bf16.mxu0 0
  %911 = vmatpush1.bf16.msra.mxu0 0
  %912 = vmatprep.subr.bf16.mxu0 0
  %913 = vmatpush1.bf16.msra.mxu0 0
  %914 = vmatprep.subr.bf16.mxu0 0
  %915 = vmatpush1.bf16.msra.mxu0 0
  %916 = vmatprep.subr.bf16.mxu0 0
  %917 = vmatpush1.bf16.msra.mxu0 0
  %918 = vmatprep.subr.bf16.mxu0 0
  %919 = vmatpush1.bf16.msra.mxu0 0
  %920 = vmatprep.subr.bf16.mxu0 0
  %921 = vmatpush1.bf16.msra.mxu0 0
  %922 = vmatprep.subr.bf16.mxu0 0
  %923 = vmatpush1.bf16.msra.mxu0 0
  %924 = vmatprep.subr.bf16.mxu0 0
  %925 = vmatpush1.bf16.msra.mxu0 0
  %926 = vmatprep.subr.bf16.mxu0 0
  %927 = vmatpush1.bf16.msra.mxu0 0
  %928 = vmatprep.subr.bf16.mxu0 0
  %929 = vmatpush1.bf16.msra.mxu0 0
  %930 = vmatprep.subr.bf16.mxu0 0
  %931 = vmatpush1.bf16.msra.mxu0 0
  %932 = vmatprep.subr.bf16.mxu0 0
  %933 = vmatpush1.bf16.msra.mxu0 0
  %934 = vmatprep.mubr.bf16.mxu0 0
  %935 = vmatmul.mubr.bf16.gmra.mrb[0].mxu0 %v900
  %v936 = vpop.f32.mrb[0].mxu0
  %v937 = vadd.f32 %v882, %v936
  %v938 = vpop.f32.mrb[0].mxu0
  %v939 = vpop.f32.mrb[0].mxu0
  %v940 = vpop.f32.mrb[0].mxu0
  %941 = vdwg.mxu0
  %v942 = vadd.f32 %v153, %v937
  %v943 = vxor.u32 %v942, 2147483648
  %v944 = vmul.f32 %v943, 1.442695
  %v945 = vpow.pop %v944
  %v946 = vadd.f32 %v945, 1.0
  %v947 = vrcp.pop %v946
  %v948 = vmul.f32 1.0, %v947
  %950 = vrot.lane.b32.xlu0 %v937, 64
  %v951 = vpop.permute.xlu0 %950
  %v953 = vmul.f32 %v948, %v951
  %955 = vrot.lane.b32.xlu0 %v953, 64
  %v956 = vpop.permute.xlu0 %955
  %v958 = vadd.f32 %v153, %v956
  %v959 = vtanh.pop %v958
  %v960 = vsub.f32 1.0, %v948
  %962 = vrot.lane.b32.xlu0 %v959, 96
  %v963 = vpop.permute.xlu0 %962
  %v965 = vmul.f32 %v960, %v963
  %v966 = vmul.f32 %v948, %v865
  %v967 = vadd.f32 %v965, %v966
  %969 = vrot.lane.b32.xlu0 %v967, 96
  %v970 = vpop.permute.xlu0 %969
  %s972 = scalar_lea.vmem %s5, 56
  %973 = vst.msk [vmem:[%s972] sm:$0xff] %vm181, %v970
  %974 = vst.msk [vmem:[#allocation2] sm:$0xff] %vm181, %v970
  // Predicated region
  $region26: #{s2vt_attention_forward.2} parent=0 // pred_check
    _
  $region27: #{s2vt_attention_forward.2} parent=0 // pred_check_branch
    %976 = sbr.rel (0) target = $region29
  $region28: #{s2vt_attention_forward.2} parent=0 // pred_region
    _
  $region29: #{s2vt_attention_forward.2} parent=0 // pred_fallthru
    _
  // Predicated region
  $region30: #{s2vt_attention_forward.2} parent=0 // pred_check
    _
  $region31: #{s2vt_attention_forward.2} parent=0 // pred_check_branch
    %978 = sbr.rel (0) target = $region33
  $region32: #{s2vt_attention_forward.2} parent=0 // pred_region
    _
  $region33: #{s2vt_attention_forward.2} parent=0 // pred_fallthru
    _

// kernel: s2vt_attention_forward.3
$region0: #{s2vt_attention_forward.3}
  #allocation0 [shape = 'u32[]', space=smem, size = 0x4, offset = 0x4, fixed_abs, tag = 'smem constant byte address 0x4 - core index']
  #allocation1 [shape = 'u32[144,128]{1,0:T(1,128)}', space=vmem, size = 0x12000, scoped, tag = 'internal scratch']
  #allocation2 [shape = 'f32[8,32]{1,0:T(8,128)}', space=vmem, size = 0x1000, scoped, tag = 'scratch operand']
  #allocation3 [shape = 'f32[8,32]{1,0:T(8,128)}', space=vmem, size = 0x1000, scoped, tag = 'scratch operand']
  %s0 = inlined_call_operand.vmem [shape: bf16[8,8,32], index: 0, kind: input, shape index: {}]
  %s1 = inlined_call_operand.vmem [shape: f32[8,32], index: 1, kind: input, shape index: {}]
  %s2 = inlined_call_operand.vmem [shape: bf16[128,32], index: 2, kind: input, shape index: {}]
  %s3 = inlined_call_operand.vmem [shape: bf16[32,96], index: 3, kind: input, shape index: {}]
  %s4 = inlined_call_operand.vmem [shape: bf16[32,96], index: 4, kind: input, shape index: {}]
  %s5 = inlined_call_operand.vmem [shape: bf16[32,96], index: 5, kind: input, shape index: {}]
  %s6 = inlined_call_operand.vmem [shape: f32[1,96], index: 6, kind: input, shape index: {}]
  %s7 = inlined_call_operand.vmem [shape: f32[1,96], index: 7, kind: input, shape index: {}]
  %s8 = inlined_call_operand.vmem [shape: bf16[32,128], index: 8, kind: input, shape index: {}]
  %s9 = inlined_call_operand.vmem [shape: f32[1,128], index: 9, kind: input, shape index: {}]
  %s10 = inlined_call_operand.vmem [shape: f32[8,640], index: 10, kind: output, shape index: {}]
  %s11 = sld [smem:[#allocation0]]
  $region77: #{s2vt_attention_forward.3} parent=0
    _
  %s13 = ssub.s32 1, %s11
  %s14 = scalar_select 0, %s13, %s11
  loop: start=0, step=1, limit=7
  $region2: #{s2vt_attention_forward.3} parent=0 // loop_pre_header
    _
  $region3: #{s2vt_attention_forward.3} parent=0 // loop_header
    %s16 = sphi 0, %s20
    %p17 = scmp.ge.s32.totalorder %s16, 7
    %s24 = sphi 0, %s24
    %s26 = sphi 0, %s24
    %s27 = sphi 0, %s26
    %s41 = sphi 0, %s27
    %s45 = sphi 0, %s45
    %s47 = sphi 0, %s45
    %s48 = sphi 0, %s47
    %s62 = sphi 0, %s48
    %s66 = sphi 0, %s66
    %s68 = sphi 0, %s66
    %s69 = sphi 0, %s68
    %s83 = sphi 0, %s69
    %s87 = sphi 0, %s87
    %s89 = sphi 0, %s87
    %s90 = sphi 0, %s89
    %s104 = sphi 0, %s90
    %s108 = sphi 0, %s108
    %s110 = sphi 0, %s108
    %s111 = sphi 0, %s110
    %s125 = sphi 0, %s111
    %s129 = sphi 0, %s129
    %s131 = sphi 0, %s129
    %s132 = sphi 0, %s131
    %s146 = sphi 0, %s132
    %s150 = sphi 0, %s150
    %s152 = sphi 0, %s150
    %s153 = sphi 0, %s152
    %s167 = sphi 0, %s153
    %s171 = sphi 0, %s171
    %s173 = sphi 0, %s171
    %s174 = sphi 0, %s173
    %s188 = sphi 0, %s174
    %s192 = sphi 0, %s192
    %s194 = sphi 0, %s192
    %s195 = sphi 0, %s194
    %s209 = sphi 0, %s195
    %s213 = sphi 0, %s213
    %s215 = sphi 0, %s213
    %s216 = sphi 0, %s215
    %s230 = sphi 0, %s216
    %s236 = sphi 0, %s238
    %s239 = sphi 0, %s236
    %s240 = sphi 0, %s239
    %s256 = sphi 0, %s240
  $region4: #{s2vt_attention_forward.3} parent=0 // loop_header_branch
    %19 = sbr.rel (%p17) target = $region8
  $region5: #{s2vt_attention_forward.3} parent=0 // loop_body
    %s21 = ssub.s32 %s16, 1
    %s22 = ssub.s32 %s16, 2
    %s23 = sadd.s32 %s16, 1
    %s25 = sadd.s32 %s24, 1
    %p28 = scmp.eq.s32.totalorder %s16, 4
    %p29 = scmp.ne.s32.totalorder %s24, %s26
    %p30 = scmp.eq.s32.totalorder %s16, 0
    %p31 = por %p29, %p30
    %p32 = scmp.ne.s32.totalorder %s24, %s26
    %p33 = scmp.eq.s32.totalorder %s21, 4
    %p34 = por %p32, %p33
    %p35 = scmp.ne.s32.totalorder %s26, %s27
    %p36 = scmp.eq.s32.totalorder %s21, 0
    %p37 = por %p35, %p36
    %p38 = scmp.ne.s32.totalorder %s26, %s27
    %p39 = scmp.eq.s32.totalorder %s22, 4
    %p40 = por %p38, %p39
    %p42 = scmp.ne.s32.totalorder %s27, %s41
    %p43 = scmp.eq.s32.totalorder %s22, 0
    %p44 = por %p42, %p43
    %s46 = sadd.s32 %s45, 1
    %p49 = scmp.eq.s32.totalorder %s16, 4
    %p50 = scmp.ne.s32.totalorder %s45, %s47
    %p51 = scmp.eq.s32.totalorder %s16, 0
    %p52 = por %p50, %p51
    %p53 = scmp.ne.s32.totalorder %s45, %s47
    %p54 = scmp.eq.s32.totalorder %s21, 4
    %p55 = por %p53, %p54
    %p56 = scmp.ne.s32.totalorder %s47, %s48
    %p57 = scmp.eq.s32.totalorder %s21, 0
    %p58 = por %p56, %p57
    %p59 = scmp.ne.s32.totalorder %s47, %s48
    %p60 = scmp.eq.s32.totalorder %s22, 4
    %p61 = por %p59, %p60
    %p63 = scmp.ne.s32.totalorder %s48, %s62
    %p64 = scmp.eq.s32.totalorder %s22, 0
    %p65 = por %p63, %p64
    %s67 = sadd.s32 %s66, 1
    %p70 = scmp.eq.s32.totalorder %s16, 4
    %p71 = scmp.ne.s32.totalorder %s66, %s68
    %p72 = scmp.eq.s32.totalorder %s16, 0
    %p73 = por %p71, %p72
    %p74 = scmp.ne.s32.totalorder %s66, %s68
    %p75 = scmp.eq.s32.totalorder %s21, 4
    %p76 = por %p74, %p75
    %p77 = scmp.ne.s32.totalorder %s68, %s69
    %p78 = scmp.eq.s32.totalorder %s21, 0
    %p79 = por %p77, %p78
    %p80 = scmp.ne.s32.totalorder %s68, %s69
    %p81 = scmp.eq.s32.totalorder %s22, 4
    %p82 = por %p80, %p81
    %p84 = scmp.ne.s32.totalorder %s69, %s83
    %p85 = scmp.eq.s32.totalorder %s22, 0
    %p86 = por %p84, %p85
    %s88 = sadd.s32 %s87, 1
    %p91 = scmp.eq.s32.totalorder %s16, 4
    %p92 = scmp.ne.s32.totalorder %s87, %s89
    %p93 = scmp.eq.s32.totalorder %s16, 0
    %p94 = por %p92, %p93
    %p95 = scmp.ne.s32.totalorder %s87, %s89
    %p96 = scmp.eq.s32.totalorder %s21, 4
    %p97 = por %p95, %p96
    %p98 = scmp.ne.s32.totalorder %s89, %s90
    %p99 = scmp.eq.s32.totalorder %s21, 0
    %p100 = por %p98, %p99
    %p101 = scmp.ne.s32.totalorder %s89, %s90
    %p102 = scmp.eq.s32.totalorder %s22, 4
    %p103 = por %p101, %p102
    %p105 = scmp.ne.s32.totalorder %s90, %s104
    %p106 = scmp.eq.s32.totalorder %s22, 0
    %p107 = por %p105, %p106
    %s109 = sadd.s32 %s108, 1
    %p112 = scmp.eq.s32.totalorder %s16, 4
    %p113 = scmp.ne.s32.totalorder %s108, %s110
    %p114 = scmp.eq.s32.totalorder %s16, 0
    %p115 = por %p113, %p114
    %p116 = scmp.ne.s32.totalorder %s108, %s110
    %p117 = scmp.eq.s32.totalorder %s21, 4
    %p118 = por %p116, %p117
    %p119 = scmp.ne.s32.totalorder %s110, %s111
    %p120 = scmp.eq.s32.totalorder %s21, 0
    %p121 = por %p119, %p120
    %p122 = scmp.ne.s32.totalorder %s110, %s111
    %p123 = scmp.eq.s32.totalorder %s22, 4
    %p124 = por %p122, %p123
    %p126 = scmp.ne.s32.totalorder %s111, %s125
    %p127 = scmp.eq.s32.totalorder %s22, 0
    %p128 = por %p126, %p127
    %s130 = sadd.s32 %s129, 1
    %p133 = scmp.eq.s32.totalorder %s16, 4
    %p134 = scmp.ne.s32.totalorder %s129, %s131
    %p135 = scmp.eq.s32.totalorder %s16, 0
    %p136 = por %p134, %p135
    %p137 = scmp.ne.s32.totalorder %s129, %s131
    %p138 = scmp.eq.s32.totalorder %s21, 4
    %p139 = por %p137, %p138
    %p140 = scmp.ne.s32.totalorder %s131, %s132
    %p141 = scmp.eq.s32.totalorder %s21, 0
    %p142 = por %p140, %p141
    %p143 = scmp.ne.s32.totalorder %s131, %s132
    %p144 = scmp.eq.s32.totalorder %s22, 4
    %p145 = por %p143, %p144
    %p147 = scmp.ne.s32.totalorder %s132, %s146
    %p148 = scmp.eq.s32.totalorder %s22, 0
    %p149 = por %p147, %p148
    %s151 = sadd.s32 %s150, 1
    %p154 = scmp.eq.s32.totalorder %s16, 4
    %p155 = scmp.ne.s32.totalorder %s150, %s152
    %p156 = scmp.eq.s32.totalorder %s16, 0
    %p157 = por %p155, %p156
    %p158 = scmp.ne.s32.totalorder %s150, %s152
    %p159 = scmp.eq.s32.totalorder %s21, 4
    %p160 = por %p158, %p159
    %p161 = scmp.ne.s32.totalorder %s152, %s153
    %p162 = scmp.eq.s32.totalorder %s21, 0
    %p163 = por %p161, %p162
    %p164 = scmp.ne.s32.totalorder %s152, %s153
    %p165 = scmp.eq.s32.totalorder %s22, 4
    %p166 = por %p164, %p165
    %p168 = scmp.ne.s32.totalorder %s153, %s167
    %p169 = scmp.eq.s32.totalorder %s22, 0
    %p170 = por %p168, %p169
    %s172 = sadd.s32 %s171, 1
    %p175 = scmp.eq.s32.totalorder %s16, 4
    %p176 = scmp.ne.s32.totalorder %s171, %s173
    %p177 = scmp.eq.s32.totalorder %s16, 0
    %p178 = por %p176, %p177
    %p179 = scmp.ne.s32.totalorder %s171, %s173
    %p180 = scmp.eq.s32.totalorder %s21, 4
    %p181 = por %p179, %p180
    %p182 = scmp.ne.s32.totalorder %s173, %s174
    %p183 = scmp.eq.s32.totalorder %s21, 0
    %p184 = por %p182, %p183
    %p185 = scmp.ne.s32.totalorder %s173, %s174
    %p186 = scmp.eq.s32.totalorder %s22, 4
    %p187 = por %p185, %p186
    %p189 = scmp.ne.s32.totalorder %s174, %s188
    %p190 = scmp.eq.s32.totalorder %s22, 0
    %p191 = por %p189, %p190
    %s193 = sadd.s32 %s192, 1
    %p196 = scmp.eq.s32.totalorder %s16, 4
    %p197 = scmp.ne.s32.totalorder %s192, %s194
    %p198 = scmp.eq.s32.totalorder %s16, 0
    %p199 = por %p197, %p198
    %p200 = scmp.ne.s32.totalorder %s192, %s194
    %p201 = scmp.eq.s32.totalorder %s21, 4
    %p202 = por %p200, %p201
    %p203 = scmp.ne.s32.totalorder %s194, %s195
    %p204 = scmp.eq.s32.totalorder %s21, 0
    %p205 = por %p203, %p204
    %p206 = scmp.ne.s32.totalorder %s194, %s195
    %p207 = scmp.eq.s32.totalorder %s22, 4
    %p208 = por %p206, %p207
    %p210 = scmp.ne.s32.totalorder %s195, %s209
    %p211 = scmp.eq.s32.totalorder %s22, 0
    %p212 = por %p210, %p211
    %s214 = sadd.s32 %s213, 1
    %p217 = scmp.eq.s32.totalorder %s16, 4
    %p218 = scmp.ne.s32.totalorder %s213, %s215
    %p219 = scmp.eq.s32.totalorder %s16, 0
    %p220 = por %p218, %p219
    %p221 = scmp.ne.s32.totalorder %s213, %s215
    %p222 = scmp.eq.s32.totalorder %s21, 4
    %p223 = por %p221, %p222
    %p224 = scmp.ne.s32.totalorder %s215, %s216
    %p225 = scmp.eq.s32.totalorder %s21, 0
    %p226 = por %p224, %p225
    %p227 = scmp.ne.s32.totalorder %s215, %s216
    %p228 = scmp.eq.s32.totalorder %s22, 4
    %p229 = por %p227, %p228
    %p231 = scmp.ne.s32.totalorder %s216, %s230
    %p232 = scmp.eq.s32.totalorder %s22, 0
    %p233 = por %p231, %p232
    %s234 = ssub.s32 %s16, %s23
    %p235 = scmp.eq.s32.totalorder %s234, 0
    %s237 = sadd.s32 %s236, 1
    %s238 = scalar_select %p235, %s236, %s237
    %p241 = pneg %p235
    %p242 = scmp.eq.s32.totalorder %s16, 4
    %p243 = por %p241, %p242
    %p244 = scmp.ne.s32.totalorder %s236, %s239
    %p245 = scmp.eq.s32.totalorder %s16, 0
    %p246 = por %p244, %p245
    %p247 = scmp.ne.s32.totalorder %s236, %s239
    %p248 = scmp.eq.s32.totalorder %s21, 4
    %p249 = por %p247, %p248
    %p250 = scmp.ne.s32.totalorder %s239, %s240
    %p251 = scmp.eq.s32.totalorder %s21, 0
    %p252 = por %p250, %p251
    %p253 = scmp.ne.s32.totalorder %s239, %s240
    %p254 = scmp.eq.s32.totalorder %s22, 4
    %p255 = por %p253, %p254
    %p257 = scmp.ne.s32.totalorder %s240, %s256
    %p258 = scmp.eq.s32.totalorder %s22, 0
    %p259 = por %p257, %p258
    %p260 = scmp.le.s32.totalorder 1, %s16
    %p261 = scmp.lt.s32.totalorder %s16, 6
    %p262 = pnand %p260, %p261
    %p263 = pneg %p262
    // Predicated region
    $region9: #{s2vt_attention_forward.3} parent=5 // pred_check
      _
    $region10: #{s2vt_attention_forward.3} parent=5 // pred_check_branch
      %265 = sbr.rel (%p262) target = $region12
    $region11: #{s2vt_attention_forward.3} parent=5 // pred_region
      %s266 = ssub.s32 %s16, 1
      // Predicated region
      $region13: #{s2vt_attention_forward.3} parent=11 // pred_check
        %p267 = pneg %p37
      $region14: #{s2vt_attention_forward.3} parent=11 // pred_check_branch
        %269 = sbr.rel (%p267) target = $region16
      $region15: #{s2vt_attention_forward.3} parent=11 // pred_region
        _
      $region16: #{s2vt_attention_forward.3} parent=11 // pred_fallthru
        _
      // Predicated region
      $region17: #{s2vt_attention_forward.3} parent=11 // pred_check
        %p270 = pneg %p58
      $region18: #{s2vt_attention_forward.3} parent=11 // pred_check_branch
        %272 = sbr.rel (%p270) target = $region20
      $region19: #{s2vt_attention_forward.3} parent=11 // pred_region
        _
      $region20: #{s2vt_attention_forward.3} parent=11 // pred_fallthru
        _
      // Predicated region
      $region21: #{s2vt_attention_forward.3} parent=11 // pred_check
        %p273 = pneg %p79
      $region22: #{s2vt_attention_forward.3} parent=11 // pred_check_branch
        %275 = sbr.rel (%p273) target = $region24
      $region23: #{s2vt_attention_forward.3} parent=11 // pred_region
        _
      $region24: #{s2vt_attention_forward.3} parent=11 // pred_fallthru
        _
      // Predicated region
      $region25: #{s2vt_attention_forward.3} parent=11 // pred_check
        %p276 = pneg %p100
      $region26: #{s2vt_attention_forward.3} parent=11 // pred_check_branch
        %278 = sbr.rel (%p276) target = $region28
      $region27: #{s2vt_attention_forward.3} parent=11 // pred_region
        _
      $region28: #{s2vt_attention_forward.3} parent=11 // pred_fallthru
        _
      // Predicated region
      $region29: #{s2vt_attention_forward.3} parent=11 // pred_check
        %p279 = pneg %p121
      $region30: #{s2vt_attention_forward.3} parent=11 // pred_check_branch
        %281 = sbr.rel (%p279) target = $region32
      $region31: #{s2vt_attention_forward.3} parent=11 // pred_region
        _
      $region32: #{s2vt_attention_forward.3} parent=11 // pred_fallthru
        _
      // Predicated region
      $region33: #{s2vt_attention_forward.3} parent=11 // pred_check
        %p282 = pneg %p142
      $region34: #{s2vt_attention_forward.3} parent=11 // pred_check_branch
        %284 = sbr.rel (%p282) target = $region36
      $region35: #{s2vt_attention_forward.3} parent=11 // pred_region
        _
      $region36: #{s2vt_attention_forward.3} parent=11 // pred_fallthru
        _
      // Predicated region
      $region37: #{s2vt_attention_forward.3} parent=11 // pred_check
        %p285 = pneg %p163
      $region38: #{s2vt_attention_forward.3} parent=11 // pred_check_branch
        %287 = sbr.rel (%p285) target = $region40
      $region39: #{s2vt_attention_forward.3} parent=11 // pred_region
        _
      $region40: #{s2vt_attention_forward.3} parent=11 // pred_fallthru
        _
      // Predicated region
      $region41: #{s2vt_attention_forward.3} parent=11 // pred_check
        %p288 = pneg %p184
      $region42: #{s2vt_attention_forward.3} parent=11 // pred_check_branch
        %290 = sbr.rel (%p288) target = $region44
      $region43: #{s2vt_attention_forward.3} parent=11 // pred_region
        _
      $region44: #{s2vt_attention_forward.3} parent=11 // pred_fallthru
        _
      // Predicated region
      $region45: #{s2vt_attention_forward.3} parent=11 // pred_check
        %p291 = pneg %p205
      $region46: #{s2vt_attention_forward.3} parent=11 // pred_check_branch
        %293 = sbr.rel (%p291) target = $region48
      $region47: #{s2vt_attention_forward.3} parent=11 // pred_region
        _
      $region48: #{s2vt_attention_forward.3} parent=11 // pred_fallthru
        _
      // Predicated region
      $region49: #{s2vt_attention_forward.3} parent=11 // pred_check
        %p294 = pneg %p226
      $region50: #{s2vt_attention_forward.3} parent=11 // pred_check_branch
        %296 = sbr.rel (%p294) target = $region52
      $region51: #{s2vt_attention_forward.3} parent=11 // pred_region
        _
      $region52: #{s2vt_attention_forward.3} parent=11 // pred_fallthru
        _
    $region12: #{s2vt_attention_forward.3} parent=5 // pred_fallthru
      _
    %p297 = scmp.lt.s32.totalorder %s16, 5
    // Predicated region
    $region53: #{s2vt_attention_forward.3} parent=5 // pred_check
      %p298 = pneg %p297
    $region54: #{s2vt_attention_forward.3} parent=5 // pred_check_branch
      %300 = sbr.rel (%p298) target = $region56
    $region55: #{s2vt_attention_forward.3} parent=5 // pred_region
      _
    $region56: #{s2vt_attention_forward.3} parent=5 // pred_fallthru
      _
    %p301 = scmp.le.s32.totalorder 1, %s16
    %p302 = scmp.lt.s32.totalorder %s16, 6
    %p303 = pnand %p301, %p302
    %p304 = pneg %p303
    // Predicated region
    $region57: #{s2vt_attention_forward.3} parent=5 // pred_check
      _
    $region58: #{s2vt_attention_forward.3} parent=5 // pred_check_branch
      %306 = sbr.rel (%p303) target = $region60
    $region59: #{s2vt_attention_forward.3} parent=5 // pred_region
      %s307 = ssub.s32 %s16, 1
      %p308 = pneg %p37
      %p309 = pneg %p34
      %p310 = pneg %p58
      %p311 = pneg %p55
      %p312 = pneg %p79
      %p313 = pneg %p76
      %p314 = pneg %p100
      %p315 = pneg %p97
      %p316 = pneg %p121
      %p317 = pneg %p118
      %p318 = pneg %p142
      %p319 = pneg %p139
      %p320 = pneg %p163
      %p321 = pneg %p160
      %p322 = pneg %p184
      %p323 = pneg %p181
      %p324 = pneg %p205
      %p325 = pneg %p202
      %p326 = pneg %p226
      %p327 = pneg %p223
      %p328 = pneg %p252
      %p329 = pneg %p249
      %p330 = scmp.lt.s32.totalorder %s21, 4
      %s331 = scalar_select %p330, %s21, 4
      %s332 = smul.addr %s331, 8
      %s333 = scalar_lea.vmem %s10, %s332
      %p334 = scmp.lt.s32.totalorder %s21, 4
      %s335 = scalar_select %p334, %s21, 4
      %s336 = smul.addr %s335, 8
      %s337 = scalar_lea.vmem %s10, %s336
      %p339 = scmp.eq.s32.totalorder %s21, 0
      // Predicated region
      $region61: #{s2vt_attention_forward.3} parent=59 // pred_check
        %p340 = pneg %p339
      $region62: #{s2vt_attention_forward.3} parent=59 // pred_check_branch
        %342 = sbr.rel (%p340) target = $region64
      $region63: #{s2vt_attention_forward.3} parent=59 // pred_region
        %v343 = vld [vmem:[%s1] sm:$0xff]
        %vm344 = vcmask 261120
        %345 = vst.msk [vmem:[#allocation2] sm:$0xff] %vm344, %v343
        %v346 = vld [vmem:[%s2] sm:$0x1]
        %v347 = vunpack.c.l.bf16 %v346
        %v348 = vlaneseq
        %v349 = vshrl.u32 %v348, 7
        %v350 = vsub.s32 1, %v349
        %v351 = vrot.slane %v347, %v350
        %352 = vst.msk [vmem:[#allocation3] sm:$0xff] %vm344, %v351
      $region64: #{s2vt_attention_forward.3} parent=59 // pred_fallthru
        _
      %v353 = vld [vmem:[#allocation2] sm:$0xff]
      %v354 = vlaneseq
      %v355 = vand.u32 %v354, 127
      %v356 = vld [vmem:[#allocation3] sm:$0xff]
      %v357 = vld [vmem:[%s0] sm:$0xf]
      %v358 = vld [vmem:[%s0 + $0x4] sm:$0xf]
      %v359 = vld [vmem:[%s0 + $0x8] sm:$0xf]
      %v360 = vld [vmem:[%s0 + $0xc] sm:$0xf]
      %v361 = vld [vmem:[%s0 + $0x10] sm:$0xf]
      %v362 = vld [vmem:[%s0 + $0x14] sm:$0xf]
      %v363 = vld [vmem:[%s0 + $0x18] sm:$0xf]
      %v364 = vld [vmem:[%s0 + $0x1c] sm:$0xf]
      %v365 = vpack.c.bf16 %v353, %v353
      %v368 = vunpack.c.l.s4 1966171168
      %v369 = vunpack.c.0.s8 %v368
      %v370 = vlaneseq
      %v371 = vshrl.u32 %v370, 7
      %v372 = vsub.s32 %v369, %v371
      %v373 = vrot.slane %v365, %v372
      %v374 = vcombine.high %v373, %v373
      %v376 = vunpack.c.l.s4 1966171168
      %v377 = vunpack.c.0.s8 %v376
      %v378 = vlaneseq
      %v379 = vshrl.u32 %v378, 7
      %v380 = vsub.s32 %v377, %v379
      %v381 = vrot.slane %v373, %v380
      %v383 = vunpack.c.l.s4 1966171168
      %v384 = vunpack.c.0.s8 %v383
      %v385 = vlaneseq
      %v386 = vshrl.u32 %v385, 7
      %v387 = vsub.s32 %v384, %v386
      %v388 = vrot.slane %v374, %v387
      %v389 = vcombine.high %v381, %v381
      %v390 = vcombine.high %v388, %v388
      %v391 = vunpack.i.l.s16 %v381
      %v392 = vunpack.i.h.s16 %v381
      %v393 = vunpack.i.l.s16 %v388
      %v394 = vunpack.i.h.s16 %v388
      %v395 = vunpack.i.l.s16 %v389
      %v396 = vunpack.i.h.s16 %v389
      %v397 = vunpack.i.l.s16 %v390
      %v398 = vunpack.i.h.s16 %v390
      %v399 = vpack.i.b16 %v391, %v391
      %v400 = vlaneseq
      %v401 = vshrl.u32 %v400, 7
      %v402 = vsub.s32 0, %v401
      %v403 = vrot.slane %v399, %v402
      %vm404 = vcmask 261120
      %v406 = vsel %vm404, %v403, 0
      %v409 = vsel %vm404, %v357, 0
      %411 = vmatprep.subr.bf16.mxu0 0
      %412 = vmatpush1.bf16.xpose.msra.mxu0 %v409
      %413 = vmatprep.subr.bf16.mxu0 0
      %414 = vmatpush1.bf16.xpose.msra.mxu0 0
      %415 = vmatprep.subr.bf16.mxu0 0
      %416 = vmatpush1.bf16.xpose.msra.mxu0 0
      %417 = vmatprep.subr.bf16.mxu0 0
      %418 = vmatpush1.bf16.xpose.msra.mxu0 0
      %419 = vmatprep.subr.bf16.mxu0 0
      %420 = vmatpush1.bf16.xpose.msra.mxu0 0
      %421 = vmatprep.subr.bf16.mxu0 0
      %422 = vmatpush1.bf16.xpose.msra.mxu0 0
      %423 = vmatprep.subr.bf16.mxu0 0
      %424 = vmatpush1.bf16.xpose.msra.mxu0 0
      %425 = vmatprep.subr.bf16.mxu0 0
      %426 = vmatpush1.bf16.xpose.msra.mxu0 0
      %427 = vmatprep.subr.bf16.mxu0 0
      %428 = vmatpush1.bf16.xpose.msra.mxu0 0
      %429 = vmatprep.subr.bf16.mxu0 0
      %430 = vmatpush1.bf16.xpose.msra.mxu0 0
      %431 = vmatprep.subr.bf16.mxu0 0
      %432 = vmatpush1.bf16.xpose.msra.mxu0 0
      %433 = vmatprep.subr.bf16.mxu0 0
      %434 = vmatpush1.bf16.xpose.msra.mxu0 0
      %435 = vmatprep.subr.bf16.mxu0 0
      %436 = vmatpush1.bf16.xpose.msra.mxu0 0
      %437 = vmatprep.subr.bf16.mxu0 0
      %438 = vmatpush1.bf16.xpose.msra.mxu0 0
      %439 = vmatprep.subr.bf16.mxu0 0
      %440 = vmatpush1.bf16.xpose.msra.mxu0 0
      %441 = vmatprep.subr.bf16.mxu0 0
      %442 = vmatpush1.bf16.xpose.msra.mxu0 0
      %443 = vmatprep.mubr.bf16.mxu0 0
      %444 = vmatmul.mubr.bf16.gmra.mrb[0].mxu0 %v406
      %v445 = vpop.f32.mrb[0].mxu0
      %v446 = vadd.f32 0.0, %v445
      %v447 = vpop.f32.mrb[0].mxu0
      %v448 = vpop.f32.mrb[0].mxu0
      %v449 = vpop.f32.mrb[0].mxu0
      %450 = vdwg.mxu0
      %v451 = vpack.i.b16 %v392, %v392
      %v452 = vlaneseq
      %v453 = vshrl.u32 %v452, 7
      %v454 = vsub.s32 0, %v453
      %v455 = vrot.slane %v451, %v454
      %v457 = vsel %vm404, %v455, 0
      %v460 = vsel %vm404, %v358, 0
      %462 = vmatprep.subr.bf16.mxu0 0
      %463 = vmatpush1.bf16.xpose.msra.mxu0 %v460
      %464 = vmatprep.subr.bf16.mxu0 0
      %465 = vmatpush1.bf16.xpose.msra.mxu0 0
      %466 = vmatprep.subr.bf16.mxu0 0
      %467 = vmatpush1.bf16.xpose.msra.mxu0 0
      %468 = vmatprep.subr.bf16.mxu0 0
      %469 = vmatpush1.bf16.xpose.msra.mxu0 0
      %470 = vmatprep.subr.bf16.mxu0 0
      %471 = vmatpush1.bf16.xpose.msra.mxu0 0
      %472 = vmatprep.subr.bf16.mxu0 0
      %473 = vmatpush1.bf16.xpose.msra.mxu0 0
      %474 = vmatprep.subr.bf16.mxu0 0
      %475 = vmatpush1.bf16.xpose.msra.mxu0 0
      %476 = vmatprep.subr.bf16.mxu0 0
      %477 = vmatpush1.bf16.xpose.msra.mxu0 0
      %478 = vmatprep.subr.bf16.mxu0 0
      %479 = vmatpush1.bf16.xpose.msra.mxu0 0
      %480 = vmatprep.subr.bf16.mxu0 0
      %481 = vmatpush1.bf16.xpose.msra.mxu0 0
      %482 = vmatprep.subr.bf16.mxu0 0
      %483 = vmatpush1.bf16.xpose.msra.mxu0 0
      %484 = vmatprep.subr.bf16.mxu0 0
      %485 = vmatpush1.bf16.xpose.msra.mxu0 0
      %486 = vmatprep.subr.bf16.mxu0 0
      %487 = vmatpush1.bf16.xpose.msra.mxu0 0
      %488 = vmatprep.subr.bf16.mxu0 0
      %489 = vmatpush1.bf16.xpose.msra.mxu0 0
      %490 = vmatprep.subr.bf16.mxu0 0
      %491 = vmatpush1.bf16.xpose.msra.mxu0 0
      %492 = vmatprep.subr.bf16.mxu0 0
      %493 = vmatpush1.bf16.xpose.msra.mxu0 0
      %494 = vmatprep.mubr.bf16.mxu0 0
      %495 = vmatmul.mubr.bf16.gmra.mrb[0].mxu0 %v457
      %v496 = vpop.f32.mrb[0].mxu0
      %v497 = vadd.f32 0.0, %v496
      %v498 = vpop.f32.mrb[0].mxu0
      %v499 = vpop.f32.mrb[0].mxu0
      %v500 = vpop.f32.mrb[0].mxu0
      %501 = vdwg.mxu0
      %v502 = vpack.i.b16 %v393, %v393
      %v503 = vlaneseq
      %v504 = vshrl.u32 %v503, 7
      %v505 = vsub.s32 0, %v504
      %v506 = vrot.slane %v502, %v505
      %v508 = vsel %vm404, %v506, 0
      %v511 = vsel %vm404, %v359, 0
      %513 = vmatprep.subr.bf16.mxu0 0
      %514 = vmatpush1.bf16.xpose.msra.mxu0 %v511
      %515 = vmatprep.subr.bf16.mxu0 0
      %516 = vmatpush1.bf16.xpose.msra.mxu0 0
      %517 = vmatprep.subr.bf16.mxu0 0
      %518 = vmatpush1.bf16.xpose.msra.mxu0 0
      %519 = vmatprep.subr.bf16.mxu0 0
      %520 = vmatpush1.bf16.xpose.msra.mxu0 0
      %521 = vmatprep.subr.bf16.mxu0 0
      %522 = vmatpush1.bf16.xpose.msra.mxu0 0
      %523 = vmatprep.subr.bf16.mxu0 0
      %524 = vmatpush1.bf16.xpose.msra.mxu0 0
      %525 = vmatprep.subr.bf16.mxu0 0
      %526 = vmatpush1.bf16.xpose.msra.mxu0 0
      %527 = vmatprep.subr.bf16.mxu0 0
      %528 = vmatpush1.bf16.xpose.msra.mxu0 0
      %529 = vmatprep.subr.bf16.mxu0 0
      %530 = vmatpush1.bf16.xpose.msra.mxu0 0
      %531 = vmatprep.subr.bf16.mxu0 0
      %532 = vmatpush1.bf16.xpose.msra.mxu0 0
      %533 = vmatprep.subr.bf16.mxu0 0
      %534 = vmatpush1.bf16.xpose.msra.mxu0 0
      %535 = vmatprep.subr.bf16.mxu0 0
      %536 = vmatpush1.bf16.xpose.msra.mxu0 0
      %537 = vmatprep.subr.bf16.mxu0 0
      %538 = vmatpush1.bf16.xpose.msra.mxu0 0
      %539 = vmatprep.subr.bf16.mxu0 0
      %540 = vmatpush1.bf16.xpose.msra.mxu0 0
      %541 = vmatprep.subr.bf16.mxu0 0
      %542 = vmatpush1.bf16.xpose.msra.mxu0 0
      %543 = vmatprep.subr.bf16.mxu0 0
      %544 = vmatpush1.bf16.xpose.msra.mxu0 0
      %545 = vmatprep.mubr.bf16.mxu0 0
      %546 = vmatmul.mubr.bf16.gmra.mrb[0].mxu0 %v508
      %v547 = vpop.f32.mrb[0].mxu0
      %v548 = vadd.f32 0.0, %v547
      %v549 = vpop.f32.mrb[0].mxu0
      %v550 = vpop.f32.mrb[0].mxu0
      %v551 = vpop.f32.mrb[0].mxu0
      %552 = vdwg.mxu0
      %v553 = vpack.i.b16 %v394, %v394
      %v554 = vlaneseq
      %v555 = vshrl.u32 %v554, 7
      %v556 = vsub.s32 0, %v555
      %v557 = vrot.slane %v553, %v556
      %v559 = vsel %vm404, %v557, 0
      %v562 = vsel %vm404, %v360, 0
      %564 = vmatprep.subr.bf16.mxu0 0
      %565 = vmatpush1.bf16.xpose.msra.mxu0 %v562
      %566 = vmatprep.subr.bf16.mxu0 0
      %567 = vmatpush1.bf16.xpose.msra.mxu0 0
      %568 = vmatprep.subr.bf16.mxu0 0
      %569 = vmatpush1.bf16.xpose.msra.mxu0 0
      %570 = vmatprep.subr.bf16.mxu0 0
      %571 = vmatpush1.bf16.xpose.msra.mxu0 0
      %572 = vmatprep.subr.bf16.mxu0 0
      %573 = vmatpush1.bf16.xpose.msra.mxu0 0
      %574 = vmatprep.subr.bf16.mxu0 0
      %575 = vmatpush1.bf16.xpose.msra.mxu0 0
      %576 = vmatprep.subr.bf16.mxu0 0
      %577 = vmatpush1.bf16.xpose.msra.mxu0 0
      %578 = vmatprep.subr.bf16.mxu0 0
      %579 = vmatpush1.bf16.xpose.msra.mxu0 0
      %580 = vmatprep.subr.bf16.mxu0 0
      %581 = vmatpush1.bf16.xpose.msra.mxu0 0
      %582 = vmatprep.subr.bf16.mxu0 0
      %583 = vmatpush1.bf16.xpose.msra.mxu0 0
      %584 = vmatprep.subr.bf16.mxu0 0
      %585 = vmatpush1.bf16.xpose.msra.mxu0 0
      %586 = vmatprep.subr.bf16.mxu0 0
      %587 = vmatpush1.bf16.xpose.msra.mxu0 0
      %588 = vmatprep.subr.bf16.mxu0 0
      %589 = vmatpush1.bf16.xpose.msra.mxu0 0
      %590 = vmatprep.subr.bf16.mxu0 0
      %591 = vmatpush1.bf16.xpose.msra.mxu0 0
      %592 = vmatprep.subr.bf16.mxu0 0
      %593 = vmatpush1.bf16.xpose.msra.mxu0 0
      %594 = vmatprep.subr.bf16.mxu0 0
      %595 = vmatpush1.bf16.xpose.msra.mxu0 0
      %596 = vmatprep.mubr.bf16.mxu0 0
      %597 = vmatmul.mubr.bf16.gmra.mrb[0].mxu0 %v559
      %v598 = vpop.f32.mrb[0].mxu0
      %v599 = vadd.f32 0.0, %v598
      %v600 = vpop.f32.mrb[0].mxu0
      %v601 = vpop.f32.mrb[0].mxu0
      %v602 = vpop.f32.mrb[0].mxu0
      %603 = vdwg.mxu0
      %v604 = vpack.i.b16 %v395, %v395
      %v605 = vlaneseq
      %v606 = vshrl.u32 %v605, 7
      %v607 = vsub.s32 0, %v606
      %v608 = vrot.slane %v604, %v607
      %v610 = vsel %vm404, %v608, 0
      %v613 = vsel %vm404, %v361, 0
      %615 = vmatprep.subr.bf16.mxu0 0
      %616 = vmatpush1.bf16.xpose.msra.mxu0 %v613
      %617 = vmatprep.subr.bf16.mxu0 0
      %618 = vmatpush1.bf16.xpose.msra.mxu0 0
      %619 = vmatprep.subr.bf16.mxu0 0
      %620 = vmatpush1.bf16.xpose.msra.mxu0 0
      %621 = vmatprep.subr.bf16.mxu0 0
      %622 = vmatpush1.bf16.xpose.msra.mxu0 0
      %623 = vmatprep.subr.bf16.mxu0 0
      %624 = vmatpush1.bf16.xpose.msra.mxu0 0
      %625 = vmatprep.subr.bf16.mxu0 0
      %626 = vmatpush1.bf16.xpose.msra.mxu0 0
      %627 = vmatprep.subr.bf16.mxu0 0
      %628 = vmatpush1.bf16.xpose.msra.mxu0 0
      %629 = vmatprep.subr.bf16.mxu0 0
      %630 = vmatpush1.bf16.xpose.msra.mxu0 0
      %631 = vmatprep.subr.bf16.mxu0 0
      %632 = vmatpush1.bf16.xpose.msra.mxu0 0
      %633 = vmatprep.subr.bf16.mxu0 0
      %634 = vmatpush1.bf16.xpose.msra.mxu0 0
      %635 = vmatprep.subr.bf16.mxu0 0
      %636 = vmatpush1.bf16.xpose.msra.mxu0 0
      %637 = vmatprep.subr.bf16.mxu0 0
      %638 = vmatpush1.bf16.xpose.msra.mxu0 0
      %639 = vmatprep.subr.bf16.mxu0 0
      %640 = vmatpush1.bf16.xpose.msra.mxu0 0
      %641 = vmatprep.subr.bf16.mxu0 0
      %642 = vmatpush1.bf16.xpose.msra.mxu0 0
      %643 = vmatprep.subr.bf16.mxu0 0
      %644 = vmatpush1.bf16.xpose.msra.mxu0 0
      %645 = vmatprep.subr.bf16.mxu0 0
      %646 = vmatpush1.bf16.xpose.msra.mxu0 0
      %647 = vmatprep.mubr.bf16.mxu0 0
      %648 = vmatmul.mubr.bf16.gmra.mrb[0].mxu0 %v610
      %v649 = vpop.f32.mrb[0].mxu0
      %v650 = vadd.f32 0.0, %v649
      %v651 = vpop.f32.mrb[0].mxu0
      %v652 = vpop.f32.mrb[0].mxu0
      %v653 = vpop.f32.mrb[0].mxu0
      %654 = vdwg.mxu0
      %v655 = vpack.i.b16 %v396, %v396
      %v656 = vlaneseq
      %v657 = vshrl.u32 %v656, 7
      %v658 = vsub.s32 0, %v657
      %v659 = vrot.slane %v655, %v658
      %v661 = vsel %vm404, %v659, 0
      %v664 = vsel %vm404, %v362, 0
      %666 = vmatprep.subr.bf16.mxu0 0
      %667 = vmatpush1.bf16.xpose.msra.mxu0 %v664
      %668 = vmatprep.subr.bf16.mxu0 0
      %669 = vmatpush1.bf16.xpose.msra.mxu0 0
      %670 = vmatprep.subr.bf16.mxu0 0
      %671 = vmatpush1.bf16.xpose.msra.mxu0 0
      %672 = vmatprep.subr.bf16.mxu0 0
      %673 = vmatpush1.bf16.xpose.msra.mxu0 0
      %674 = vmatprep.subr.bf16.mxu0 0
      %675 = vmatpush1.bf16.xpose.msra.mxu0 0
      %676 = vmatprep.subr.bf16.mxu0 0
      %677 = vmatpush1.bf16.xpose.msra.mxu0 0
      %678 = vmatprep.subr.bf16.mxu0 0
      %679 = vmatpush1.bf16.xpose.msra.mxu0 0
      %680 = vmatprep.subr.bf16.mxu0 0
      %681 = vmatpush1.bf16.xpose.msra.mxu0 0
      %682 = vmatprep.subr.bf16.mxu0 0
      %683 = vmatpush1.bf16.xpose.msra.mxu0 0
      %684 = vmatprep.subr.bf16.mxu0 0
      %685 = vmatpush1.bf16.xpose.msra.mxu0 0
      %686 = vmatprep.subr.bf16.mxu0 0
      %687 = vmatpush1.bf16.xpose.msra.mxu0 0
      %688 = vmatprep.subr.bf16.mxu0 0
      %689 = vmatpush1.bf16.xpose.msra.mxu0 0
      %690 = vmatprep.subr.bf16.mxu0 0
      %691 = vmatpush1.bf16.xpose.msra.mxu0 0
      %692 = vmatprep.subr.bf16.mxu0 0
      %693 = vmatpush1.bf16.xpose.msra.mxu0 0
      %694 = vmatprep.subr.bf16.mxu0 0
      %695 = vmatpush1.bf16.xpose.msra.mxu0 0
      %696 = vmatprep.subr.bf16.mxu0 0
      %697 = vmatpush1.bf16.xpose.msra.mxu0 0
      %698 = vmatprep.mubr.bf16.mxu0 0
      %699 = vmatmul.mubr.bf16.gmra.mrb[0].mxu0 %v661
      %v700 = vpop.f32.mrb[0].mxu0
      %v701 = vadd.f32 0.0, %v700
      %v702 = vpop.f32.mrb[0].mxu0
      %v703 = vpop.f32.mrb[0].mxu0
      %v704 = vpop.f32.mrb[0].mxu0
      %705 = vdwg.mxu0
      %v706 = vpack.i.b16 %v397, %v397
      %v707 = vlaneseq
      %v708 = vshrl.u32 %v707, 7
      %v709 = vsub.s32 0, %v708
      %v710 = vrot.slane %v706, %v709
      %v712 = vsel %vm404, %v710, 0
      %v715 = vsel %vm404, %v363, 0
      %717 = vmatprep.subr.bf16.mxu0 0
      %718 = vmatpush1.bf16.xpose.msra.mxu0 %v715
      %719 = vmatprep.subr.bf16.mxu0 0
      %720 = vmatpush1.bf16.xpose.msra.mxu0 0
      %721 = vmatprep.subr.bf16.mxu0 0
      %722 = vmatpush1.bf16.xpose.msra.mxu0 0
      %723 = vmatprep.subr.bf16.mxu0 0
      %724 = vmatpush1.bf16.xpose.msra.mxu0 0
      %725 = vmatprep.subr.bf16.mxu0 0
      %726 = vmatpush1.bf16.xpose.msra.mxu0 0
      %727 = vmatprep.subr.bf16.mxu0 0
      %728 = vmatpush1.bf16.xpose.msra.mxu0 0
      %729 = vmatprep.subr.bf16.mxu0 0
      %730 = vmatpush1.bf16.xpose.msra.mxu0 0
      %731 = vmatprep.subr.bf16.mxu0 0
      %732 = vmatpush1.bf16.xpose.msra.mxu0 0
      %733 = vmatprep.subr.bf16.mxu0 0
      %734 = vmatpush1.bf16.xpose.msra.mxu0 0
      %735 = vmatprep.subr.bf16.mxu0 0
      %736 = vmatpush1.bf16.xpose.msra.mxu0 0
      %737 = vmatprep.subr.bf16.mxu0 0
      %738 = vmatpush1.bf16.xpose.msra.mxu0 0
      %739 = vmatprep.subr.bf16.mxu0 0
      %740 = vmatpush1.bf16.xpose.msra.mxu0 0
      %741 = vmatprep.subr.bf16.mxu0 0
      %742 = vmatpush1.bf16.xpose.msra.mxu0 0
      %743 = vmatprep.subr.bf16.mxu0 0
      %744 = vmatpush1.bf16.xpose.msra.mxu0 0
      %745 = vmatprep.subr.bf16.mxu0 0
      %746 = vmatpush1.bf16.xpose.msra.mxu0 0
      %747 = vmatprep.subr.bf16.mxu0 0
      %748 = vmatpush1.bf16.xpose.msra.mxu0 0
      %749 = vmatprep.mubr.bf16.mxu0 0
      %750 = vmatmul.mubr.bf16.gmra.mrb[0].mxu0 %v712
      %v751 = vpop.f32.mrb[0].mxu0
      %v752 = vadd.f32 0.0, %v751
      %v753 = vpop.f32.mrb[0].mxu0
      %v754 = vpop.f32.mrb[0].mxu0
      %v755 = vpop.f32.mrb[0].mxu0
      %756 = vdwg.mxu0
      %v757 = vpack.i.b16 %v398, %v398
      %v758 = vlaneseq
      %v759 = vshrl.u32 %v758, 7
      %v760 = vsub.s32 0, %v759
      %v761 = vrot.slane %v757, %v760
      %v763 = vsel %vm404, %v761, 0
      %v766 = vsel %vm404, %v364, 0
      %768 = vmatprep.subr.bf16.mxu0 0
      %769 = vmatpush1.bf16.xpose.msra.mxu0 %v766
      %770 = vmatprep.subr.bf16.mxu0 0
      %771 = vmatpush1.bf16.xpose.msra.mxu0 0
      %772 = vmatprep.subr.bf16.mxu0 0
      %773 = vmatpush1.bf16.xpose.msra.mxu0 0
      %774 = vmatprep.subr.bf16.mxu0 0
      %775 = vmatpush1.bf16.xpose.msra.mxu0 0
      %776 = vmatprep.subr.bf16.mxu0 0
      %777 = vmatpush1.bf16.xpose.msra.mxu0 0
      %778 = vmatprep.subr.bf16.mxu0 0
      %779 = vmatpush1.bf16.xpose.msra.mxu0 0
      %780 = vmatprep.subr.bf16.mxu0 0
      %781 = vmatpush1.bf16.xpose.msra.mxu0 0
      %782 = vmatprep.subr.bf16.mxu0 0
      %783 = vmatpush1.bf16.xpose.msra.mxu0 0
      %784 = vmatprep.subr.bf16.mxu0 0
      %785 = vmatpush1.bf16.xpose.msra.mxu0 0
      %786 = vmatprep.subr.bf16.mxu0 0
      %787 = vmatpush1.bf16.xpose.msra.mxu0 0
      %788 = vmatprep.subr.bf16.mxu0 0
      %789 = vmatpush1.bf16.xpose.msra.mxu0 0
      %790 = vmatprep.subr.bf16.mxu0 0
      %791 = vmatpush1.bf16.xpose.msra.mxu0 0
      %792 = vmatprep.subr.bf16.mxu0 0
      %793 = vmatpush1.bf16.xpose.msra.mxu0 0
      %794 = vmatprep.subr.bf16.mxu0 0
      %795 = vmatpush1.bf16.xpose.msra.mxu0 0
      %796 = vmatprep.subr.bf16.mxu0 0
      %797 = vmatpush1.bf16.xpose.msra.mxu0 0
      %798 = vmatprep.subr.bf16.mxu0 0
      %799 = vmatpush1.bf16.xpose.msra.mxu0 0
      %800 = vmatprep.mubr.bf16.mxu0 0
      %801 = vmatmul.mubr.bf16.gmra.mrb[0].mxu0 %v763
      %v802 = vpop.f32.mrb[0].mxu0
      %v803 = vadd.f32 0.0, %v802
      %v804 = vpop.f32.mrb[0].mxu0
      %v805 = vpop.f32.mrb[0].mxu0
      %v806 = vpop.f32.mrb[0].mxu0
      %807 = vdwg.mxu0
      %vm808 = vcmask 57344
      %v809 = vsel %vm808, %v446, -inf
      %810 = vmax.xlane.f32.xlu0 %v809
      %v811 = vpop.xlane.xlu0 %810
      %v812 = vsel %vm808, %v497, -inf
      %813 = vmax.xlane.f32.xlu0 %v812
      %v814 = vpop.xlane.xlu0 %813
      %v815 = vsel %vm808, %v548, -inf
      %816 = vmax.xlane.f32.xlu0 %v815
      %v817 = vpop.xlane.xlu0 %816
      %v818 = vsel %vm808, %v599, -inf
      %819 = vmax.xlane.f32.xlu0 %v818
      %v820 = vpop.xlane.xlu0 %819
      %v821 = vsel %vm808, %v650, -inf
      %822 = vmax.xlane.f32.xlu0 %v821
      %v823 = vpop.xlane.xlu0 %822
      %v824 = vsel %vm808, %v701, -inf
      %825 = vmax.xlane.f32.xlu0 %v824
      %v826 = vpop.xlane.xlu0 %825
      %v827 = vsel %vm808, %v752, -inf
      %828 = vmax.xlane.f32.xlu0 %v827
      %v829 = vpop.xlane.xlu0 %828
      %v830 = vsel %vm808, %v803, -inf
      %831 = vmax.xlane.f32.xlu0 %v830
      %v832 = vpop.xlane.xlu0 %831
      %v833 = vsub.f32 %v446, %v811
      %v834 = vsub.f32 %v497, %v814
      %v835 = vsub.f32 %v548, %v817
      %v836 = vsub.f32 %v599, %v820
      %v837 = vsub.f32 %v650, %v823
      %v838 = vsub.f32 %v701, %v826
      %v839 = vsub.f32 %v752, %v829
      %v840 = vsub.f32 %v803, %v832
      %v841 = vmul.f32 %v833, 1.442695
      %v842 = vpow.pop %v841
      %v843 = vmul.f32 %v834, 1.442695
      %v844 = vpow.pop %v843
      %v845 = vmul.f32 %v835, 1.442695
      %v846 = vpow.pop %v845
      %v847 = vmul.f32 %v836, 1.442695
      %v848 = vpow.pop %v847
      %v849 = vmul.f32 %v837, 1.442695
      %v850 = vpow.pop %v849
      %v851 = vmul.f32 %v838, 1.442695
      %v852 = vpow.pop %v851
      %v853 = vmul.f32 %v839, 1.442695
      %v854 = vpow.pop %v853
      %v855 = vmul.f32 %v840, 1.442695
      %v856 = vpow.pop %v855
      %v857 = vsel %vm808, %v842, 0.0
      %858 = vadd.xlane.f32.xlu0 %v857
      %v859 = vpop.xlane.xlu0 %858
      %v860 = vsel %vm808, %v844, 0.0
      %861 = vadd.xlane.f32.xlu0 %v860
      %v862 = vpop.xlane.xlu0 %861
      %v863 = vsel %vm808, %v846, 0.0
      %864 = vadd.xlane.f32.xlu0 %v863
      %v865 = vpop.xlane.xlu0 %864
      %v866 = vsel %vm808, %v848, 0.0
      %867 = vadd.xlane.f32.xlu0 %v866
      %v868 = vpop.xlane.xlu0 %867
      %v869 = vsel %vm808, %v850, 0.0
      %870 = vadd.xlane.f32.xlu0 %v869
      %v871 = vpop.xlane.xlu0 %870
      %v872 = vsel %vm808, %v852, 0.0
      %873 = vadd.xlane.f32.xlu0 %v872
      %v874 = vpop.xlane.xlu0 %873
      %v875 = vsel %vm808, %v854, 0.0
      %876 = vadd.xlane.f32.xlu0 %v875
      %v877 = vpop.xlane.xlu0 %876
      %v878 = vsel %vm808, %v856, 0.0
      %879 = vadd.xlane.f32.xlu0 %v878
      %v880 = vpop.xlane.xlu0 %879
      %v881 = vrcp.pop %v859
      %v882 = vmul.f32 %v842, %v881
      %v883 = vrcp.pop %v862
      %v884 = vmul.f32 %v844, %v883
      %v885 = vrcp.pop %v865
      %v886 = vmul.f32 %v846, %v885
      %v887 = vrcp.pop %v868
      %v888 = vmul.f32 %v848, %v887
      %v889 = vrcp.pop %v871
      %v890 = vmul.f32 %v850, %v889
      %v891 = vrcp.pop %v874
      %v892 = vmul.f32 %v852, %v891
      %v893 = vrcp.pop %v877
      %v894 = vmul.f32 %v854, %v893
      %v895 = vrcp.pop %v880
      %v896 = vmul.f32 %v856, %v895
      %v897 = vpack.c.bf16 %v882, %v882
      %v898 = vpack.c.bf16 %v884, %v884
      %v899 = vpack.c.bf16 %v886, %v886
      %v900 = vpack.c.bf16 %v888, %v888
      %v901 = vpack.c.bf16 %v890, %v890
      %v902 = vpack.c.bf16 %v892, %v892
      %v903 = vpack.c.bf16 %v894, %v894
      %v904 = vpack.c.bf16 %v896, %v896
      %vm905 = vcmask 64512
      %v907 = vsel %vm905, %v897, 0
      %vm909 = vcmask 1043456
      %v910 = vsel %vm909, %v357, 0
      %912 = vmatprep.subr.bf16.mxu0 0
      %913 = vmatpush1.bf16.msra.mxu0 %v910
      %914 = vmatprep.subr.bf16.mxu0 0
      %915 = vmatpush1.bf16.msra.mxu0 0
      %916 = vmatprep.subr.bf16.mxu0 0
      %917 = vmatpush1.bf16.msra.mxu0 0
      %918 = vmatprep.subr.bf16.mxu0 0
      %919 = vmatpush1.bf16.msra.mxu0 0
      %920 = vmatprep.subr.bf16.mxu0 0
      %921 = vmatpush1.bf16.msra.mxu0 0
      %922 = vmatprep.subr.bf16.mxu0 0
      %923 = vmatpush1.bf16.msra.mxu0 0
      %924 = vmatprep.subr.bf16.mxu0 0
      %925 = vmatpush1.bf16.msra.mxu0 0
      %926 = vmatprep.subr.bf16.mxu0 0
      %927 = vmatpush1.bf16.msra.mxu0 0
      %928 = vmatprep.subr.bf16.mxu0 0
      %929 = vmatpush1.bf16.msra.mxu0 0
      %930 = vmatprep.subr.bf16.mxu0 0
      %931 = vmatpush1.bf16.msra.mxu0 0
      %932 = vmatprep.subr.bf16.mxu0 0
      %933 = vmatpush1.bf16.msra.mxu0 0
      %934 = vmatprep.subr.bf16.mxu0 0
      %935 = vmatpush1.bf16.msra.mxu0 0
      %936 = vmatprep.subr.bf16.mxu0 0
      %937 = vmatpush1.bf16.msra.mxu0 0
      %938 = vmatprep.subr.bf16.mxu0 0
      %939 = vmatpush1.bf16.msra.mxu0 0
      %940 = vmatprep.subr.bf16.mxu0 0
      %941 = vmatpush1.bf16.msra.mxu0 0
      %942 = vmatprep.subr.bf16.mxu0 0
      %943 = vmatpush1.bf16.msra.mxu0 0
      %944 = vmatprep.mubr.bf16.mxu0 0
      %945 = vmatmul.mubr.bf16.gmra.mrb[0].mxu0 %v907
      %v946 = vpop.f32.mrb[0].mxu0
      %v947 = vadd.f32 0.0, %v946
      %v948 = vpop.f32.mrb[0].mxu0
      %v949 = vpop.f32.mrb[0].mxu0
      %v950 = vpop.f32.mrb[0].mxu0
      %951 = vdwg.mxu0
      %v953 = vsel %vm905, %v898, 0
      %v955 = vsel %vm909, %v358, 0
      %957 = vmatprep.subr.bf16.mxu0 0
      %958 = vmatpush1.bf16.msra.mxu0 %v955
      %959 = vmatprep.subr.bf16.mxu0 0
      %960 = vmatpush1.bf16.msra.mxu0 0
      %961 = vmatprep.subr.bf16.mxu0 0
      %962 = vmatpush1.bf16.msra.mxu0 0
      %963 = vmatprep.subr.bf16.mxu0 0
      %964 = vmatpush1.bf16.msra.mxu0 0
      %965 = vmatprep.subr.bf16.mxu0 0
      %966 = vmatpush1.bf16.msra.mxu0 0
      %967 = vmatprep.subr.bf16.mxu0 0
      %968 = vmatpush1.bf16.msra.mxu0 0
      %969 = vmatprep.subr.bf16.mxu0 0
      %970 = vmatpush1.bf16.msra.mxu0 0
      %971 = vmatprep.subr.bf16.mxu0 0
      %972 = vmatpush1.bf16.msra.mxu0 0
      %973 = vmatprep.subr.bf16.mxu0 0
      %974 = vmatpush1.bf16.msra.mxu0 0
      %975 = vmatprep.subr.bf16.mxu0 0
      %976 = vmatpush1.bf16.msra.mxu0 0
      %977 = vmatprep.subr.bf16.mxu0 0
      %978 = vmatpush1.bf16.msra.mxu0 0
      %979 = vmatprep.subr.bf16.mxu0 0
      %980 = vmatpush1.bf16.msra.mxu0 0
      %981 = vmatprep.subr.bf16.mxu0 0
      %982 = vmatpush1.bf16.msra.mxu0 0
      %983 = vmatprep.subr.bf16.mxu0 0
      %984 = vmatpush1.bf16.msra.mxu0 0
      %985 = vmatprep.subr.bf16.mxu0 0
      %986 = vmatpush1.bf16.msra.mxu0 0
      %987 = vmatprep.subr.bf16.mxu0 0
      %988 = vmatpush1.bf16.msra.mxu0 0
      %989 = vmatprep.mubr.bf16.mxu0 0
      %990 = vmatmul.mubr.bf16.gmra.mrb[0].mxu0 %v953
      %v991 = vpop.f32.mrb[0].mxu0
      %v992 = vadd.f32 0.0, %v991
      %v993 = vpop.f32.mrb[0].mxu0
      %v994 = vpop.f32.mrb[0].mxu0
      %v995 = vpop.f32.mrb[0].mxu0
      %996 = vdwg.mxu0
      %v998 = vsel %vm905, %v899, 0
      %v1000 = vsel %vm909, %v359, 0
      %1002 = vmatprep.subr.bf16.mxu0 0
      %1003 = vmatpush1.bf16.msra.mxu0 %v1000
      %1004 = vmatprep.subr.bf16.mxu0 0
      %1005 = vmatpush1.bf16.msra.mxu0 0
      %1006 = vmatprep.subr.bf16.mxu0 0
      %1007 = vmatpush1.bf16.msra.mxu0 0
      %1008 = vmatprep.subr.bf16.mxu0 0
      %1009 = vmatpush1.bf16.msra.mxu0 0
      %1010 = vmatprep.subr.bf16.mxu0 0
      %1011 = vmatpush1.bf16.msra.mxu0 0
      %1012 = vmatprep.subr.bf16.mxu0 0
      %1013 = vmatpush1.bf16.msra.mxu0 0
      %1014 = vmatprep.subr.bf16.mxu0 0
      %1015 = vmatpush1.bf16.msra.mxu0 0
      %1016 = vmatprep.subr.bf16.mxu0 0
      %1017 = vmatpush1.bf16.msra.mxu0 0
      %1018 = vmatprep.subr.bf16.mxu0 0
      %1019 = vmatpush1.bf16.msra.mxu0 0
      %1020 = vmatprep.subr.bf16.mxu0 0
      %1021 = vmatpush1.bf16.msra.mxu0 0
      %1022 = vmatprep.subr.bf16.mxu0 0
      %1023 = vmatpush1.bf16.msra.mxu0 0
      %1024 = vmatprep.subr.bf16.mxu0 0
      %1025 = vmatpush1.bf16.msra.mxu0 0
      %1026 = vmatprep.subr.bf16.mxu0 0
      %1027 = vmatpush1.bf16.msra.mxu0 0
      %1028 = vmatprep.subr.bf16.mxu0 0
      %1029 = vmatpush1.bf16.msra.mxu0 0
      %1030 = vmatprep.subr.bf16.mxu0 0
      %1031 = vmatpush1.bf16.msra.mxu0 0
      %1032 = vmatprep.subr.bf16.mxu0 0
      %1033 = vmatpush1.bf16.msra.mxu0 0
      %1034 = vmatprep.mubr.bf16.mxu0 0
      %1035 = vmatmul.mubr.bf16.gmra.mrb[0].mxu0 %v998
      %v1036 = vpop.f32.mrb[0].mxu0
      %v1037 = vadd.f32 0.0, %v1036
      %v1038 = vpop.f32.mrb[0].mxu0
      %v1039 = vpop.f32.mrb[0].mxu0
      %v1040 = vpop.f32.mrb[0].mxu0
      %1041 = vdwg.mxu0
      %v1043 = vsel %vm905, %v900, 0
      %v1045 = vsel %vm909, %v360, 0
      %1047 = vmatprep.subr.bf16.mxu0 0
      %1048 = vmatpush1.bf16.msra.mxu0 %v1045
      %1049 = vmatprep.subr.bf16.mxu0 0
      %1050 = vmatpush1.bf16.msra.mxu0 0
      %1051 = vmatprep.subr.bf16.mxu0 0
      %1052 = vmatpush1.bf16.msra.mxu0 0
      %1053 = vmatprep.subr.bf16.mxu0 0
      %1054 = vmatpush1.bf16.msra.mxu0 0
      %1055 = vmatprep.subr.bf16.mxu0 0
      %1056 = vmatpush1.bf16.msra.mxu0 0
      %1057 = vmatprep.subr.bf16.mxu0 0
      %1058 = vmatpush1.bf16.msra.mxu0 0
      %1059 = vmatprep.subr.bf16.mxu0 0
      %1060 = vmatpush1.bf16.msra.mxu0 0
      %1061 = vmatprep.subr.bf16.mxu0 0
      %1062 = vmatpush1.bf16.msra.mxu0 0
      %1063 = vmatprep.subr.bf16.mxu0 0
      %1064 = vmatpush1.bf16.msra.mxu0 0
      %1065 = vmatprep.subr.bf16.mxu0 0
      %1066 = vmatpush1.bf16.msra.mxu0 0
      %1067 = vmatprep.subr.bf16.mxu0 0
      %1068 = vmatpush1.bf16.msra.mxu0 0
      %1069 = vmatprep.subr.bf16.mxu0 0
      %1070 = vmatpush1.bf16.msra.mxu0 0
      %1071 = vmatprep.subr.bf16.mxu0 0
      %1072 = vmatpush1.bf16.msra.mxu0 0
      %1073 = vmatprep.subr.bf16.mxu0 0
      %1074 = vmatpush1.bf16.msra.mxu0 0
      %1075 = vmatprep.subr.bf16.mxu0 0
      %1076 = vmatpush1.bf16.msra.mxu0 0
      %1077 = vmatprep.subr.bf16.mxu0 0
      %1078 = vmatpush1.bf16.msra.mxu0 0
      %1079 = vmatprep.mubr.bf16.mxu0 0
      %1080 = vmatmul.mubr.bf16.gmra.mrb[0].mxu0 %v1043
      %v1081 = vpop.f32.mrb[0].mxu0
      %v1082 = vadd.f32 0.0, %v1081
      %v1083 = vpop.f32.mrb[0].mxu0
      %v1084 = vpop.f32.mrb[0].mxu0
      %v1085 = vpop.f32.mrb[0].mxu0
      %1086 = vdwg.mxu0
      %v1088 = vsel %vm905, %v901, 0
      %v1090 = vsel %vm909, %v361, 0
      %1092 = vmatprep.subr.bf16.mxu0 0
      %1093 = vmatpush1.bf16.msra.mxu0 %v1090
      %1094 = vmatprep.subr.bf16.mxu0 0
      %1095 = vmatpush1.bf16.msra.mxu0 0
      %1096 = vmatprep.subr.bf16.mxu0 0
      %1097 = vmatpush1.bf16.msra.mxu0 0
      %1098 = vmatprep.subr.bf16.mxu0 0
      %1099 = vmatpush1.bf16.msra.mxu0 0
      %1100 = vmatprep.subr.bf16.mxu0 0
      %1101 = vmatpush1.bf16.msra.mxu0 0
      %1102 = vmatprep.subr.bf16.mxu0 0
      %1103 = vmatpush1.bf16.msra.mxu0 0
      %1104 = vmatprep.subr.bf16.mxu0 0
      %1105 = vmatpush1.bf16.msra.mxu0 0
      %1106 = vmatprep.subr.bf16.mxu0 0
      %1107 = vmatpush1.bf16.msra.mxu0 0
      %1108 = vmatprep.subr.bf16.mxu0 0
      %1109 = vmatpush1.bf16.msra.mxu0 0
      %1110 = vmatprep.subr.bf16.mxu0 0
      %1111 = vmatpush1.bf16.msra.mxu0 0
      %1112 = vmatprep.subr.bf16.mxu0 0
      %1113 = vmatpush1.bf16.msra.mxu0 0
      %1114 = vmatprep.subr.bf16.mxu0 0
      %1115 = vmatpush1.bf16.msra.mxu0 0
      %1116 = vmatprep.subr.bf16.mxu0 0
      %1117 = vmatpush1.bf16.msra.mxu0 0
      %1118 = vmatprep.subr.bf16.mxu0 0
      %1119 = vmatpush1.bf16.msra.mxu0 0
      %1120 = vmatprep.subr.bf16.mxu0 0
      %1121 = vmatpush1.bf16.msra.mxu0 0
      %1122 = vmatprep.subr.bf16.mxu0 0
      %1123 = vmatpush1.bf16.msra.mxu0 0
      %1124 = vmatprep.mubr.bf16.mxu0 0
      %1125 = vmatmul.mubr.bf16.gmra.mrb[0].mxu0 %v1088
      %v1126 = vpop.f32.mrb[0].mxu0
      %v1127 = vadd.f32 0.0, %v1126
      %v1128 = vpop.f32.mrb[0].mxu0
      %v1129 = vpop.f32.mrb[0].mxu0
      %v1130 = vpop.f32.mrb[0].mxu0
      %1131 = vdwg.mxu0
      %v1133 = vsel %vm905, %v902, 0
      %v1135 = vsel %vm909, %v362, 0
      %1137 = vmatprep.subr.bf16.mxu0 0
      %1138 = vmatpush1.bf16.msra.mxu0 %v1135
      %1139 = vmatprep.subr.bf16.mxu0 0
      %1140 = vmatpush1.bf16.msra.mxu0 0
      %1141 = vmatprep.subr.bf16.mxu0 0
      %1142 = vmatpush1.bf16.msra.mxu0 0
      %1143 = vmatprep.subr.bf16.mxu0 0
      %1144 = vmatpush1.bf16.msra.mxu0 0
      %1145 = vmatprep.subr.bf16.mxu0 0
      %1146 = vmatpush1.bf16.msra.mxu0 0
      %1147 = vmatprep.subr.bf16.mxu0 0
      %1148 = vmatpush1.bf16.msra.mxu0 0
      %1149 = vmatprep.subr.bf16.mxu0 0
      %1150 = vmatpush1.bf16.msra.mxu0 0
      %1151 = vmatprep.subr.bf16.mxu0 0
      %1152 = vmatpush1.bf16.msra.mxu0 0
      %1153 = vmatprep.subr.bf16.mxu0 0
      %1154 = vmatpush1.bf16.msra.mxu0 0
      %1155 = vmatprep.subr.bf16.mxu0 0
      %1156 = vmatpush1.bf16.msra.mxu0 0
      %1157 = vmatprep.subr.bf16.mxu0 0
      %1158 = vmatpush1.bf16.msra.mxu0 0
      %1159 = vmatprep.subr.bf16.mxu0 0
      %1160 = vmatpush1.bf16.msra.mxu0 0
      %1161 = vmatprep.subr.bf16.mxu0 0
      %1162 = vmatpush1.bf16.msra.mxu0 0
      %1163 = vmatprep.subr.bf16.mxu0 0
      %1164 = vmatpush1.bf16.msra.mxu0 0
      %1165 = vmatprep.subr.bf16.mxu0 0
      %1166 = vmatpush1.bf16.msra.mxu0 0
      %1167 = vmatprep.subr.bf16.mxu0 0
      %1168 = vmatpush1.bf16.msra.mxu0 0
      %1169 = vmatprep.mubr.bf16.mxu0 0
      %1170 = vmatmul.mubr.bf16.gmra.mrb[0].mxu0 %v1133
      %v1171 = vpop.f32.mrb[0].mxu0
      %v1172 = vadd.f32 0.0, %v1171
      %v1173 = vpop.f32.mrb[0].mxu0
      %v1174 = vpop.f32.mrb[0].mxu0
      %v1175 = vpop.f32.mrb[0].mxu0
      %1176 = vdwg.mxu0
      %v1178 = vsel %vm905, %v903, 0
      %v1180 = vsel %vm909, %v363, 0
      %1182 = vmatprep.subr.bf16.mxu0 0
      %1183 = vmatpush1.bf16.msra.mxu0 %v1180
      %1184 = vmatprep.subr.bf16.mxu0 0
      %1185 = vmatpush1.bf16.msra.mxu0 0
      %1186 = vmatprep.subr.bf16.mxu0 0
      %1187 = vmatpush1.bf16.msra.mxu0 0
      %1188 = vmatprep.subr.bf16.mxu0 0
      %1189 = vmatpush1.bf16.msra.mxu0 0
      %1190 = vmatprep.subr.bf16.mxu0 0
      %1191 = vmatpush1.bf16.msra.mxu0 0
      %1192 = vmatprep.subr.bf16.mxu0 0
      %1193 = vmatpush1.bf16.msra.mxu0 0
      %1194 = vmatprep.subr.bf16.mxu0 0
      %1195 = vmatpush1.bf16.msra.mxu0 0
      %1196 = vmatprep.subr.bf16.mxu0 0
      %1197 = vmatpush1.bf16.msra.mxu0 0
      %1198 = vmatprep.subr.bf16.mxu0 0
      %1199 = vmatpush1.bf16.msra.mxu0 0
      %1200 = vmatprep.subr.bf16.mxu0 0
      %1201 = vmatpush1.bf16.msra.mxu0 0
      %1202 = vmatprep.subr.bf16.mxu0 0
      %1203 = vmatpush1.bf16.msra.mxu0 0
      %1204 = vmatprep.subr.bf16.mxu0 0
      %1205 = vmatpush1.bf16.msra.mxu0 0
      %1206 = vmatprep.subr.bf16.mxu0 0
      %1207 = vmatpush1.bf16.msra.mxu0 0
      %1208 = vmatprep.subr.bf16.mxu0 0
      %1209 = vmatpush1.bf16.msra.mxu0 0
      %1210 = vmatprep.subr.bf16.mxu0 0
      %1211 = vmatpush1.bf16.msra.mxu0 0
      %1212 = vmatprep.subr.bf16.mxu0 0
      %1213 = vmatpush1.bf16.msra.mxu0 0
      %1214 = vmatprep.mubr.bf16.mxu0 0
      %1215 = vmatmul.mubr.bf16.gmra.mrb[0].mxu0 %v1178
      %v1216 = vpop.f32.mrb[0].mxu0
      %v1217 = vadd.f32 0.0, %v1216
      %v1218 = vpop.f32.mrb[0].mxu0
      %v1219 = vpop.f32.mrb[0].mxu0
      %v1220 = vpop.f32.mrb[0].mxu0
      %1221 = vdwg.mxu0
      %v1223 = vsel %vm905, %v904, 0
      %v1225 = vsel %vm909, %v364, 0
      %1227 = vmatprep.subr.bf16.mxu0 0
      %1228 = vmatpush1.bf16.msra.mxu0 %v1225
      %1229 = vmatprep.subr.bf16.mxu0 0
      %1230 = vmatpush1.bf16.msra.mxu0 0
      %1231 = vmatprep.subr.bf16.mxu0 0
      %1232 = vmatpush1.bf16.msra.mxu0 0
      %1233 = vmatprep.subr.bf16.mxu0 0
      %1234 = vmatpush1.bf16.msra.mxu0 0
      %1235 = vmatprep.subr.bf16.mxu0 0
      %1236 = vmatpush1.bf16.msra.mxu0 0
      %1237 = vmatprep.subr.bf16.mxu0 0
      %1238 = vmatpush1.bf16.msra.mxu0 0
      %1239 = vmatprep.subr.bf16.mxu0 0
      %1240 = vmatpush1.bf16.msra.mxu0 0
      %1241 = vmatprep.subr.bf16.mxu0 0
      %1242 = vmatpush1.bf16.msra.mxu0 0
      %1243 = vmatprep.subr.bf16.mxu0 0
      %1244 = vmatpush1.bf16.msra.mxu0 0
      %1245 = vmatprep.subr.bf16.mxu0 0
      %1246 = vmatpush1.bf16.msra.mxu0 0
      %1247 = vmatprep.subr.bf16.mxu0 0
      %1248 = vmatpush1.bf16.msra.mxu0 0
      %1249 = vmatprep.subr.bf16.mxu0 0
      %1250 = vmatpush1.bf16.msra.mxu0 0
      %1251 = vmatprep.subr.bf16.mxu0 0
      %1252 = vmatpush1.bf16.msra.mxu0 0
      %1253 = vmatprep.subr.bf16.mxu0 0
      %1254 = vmatpush1.bf16.msra.mxu0 0
      %1255 = vmatprep.subr.bf16.mxu0 0
      %1256 = vmatpush1.bf16.msra.mxu0 0
      %1257 = vmatprep.subr.bf16.mxu0 0
      %1258 = vmatpush1.bf16.msra.mxu0 0
      %1259 = vmatprep.mubr.bf16.mxu0 0
      %1260 = vmatmul.mubr.bf16.gmra.mrb[0].mxu0 %v1223
      %v1261 = vpop.f32.mrb[0].mxu0
      %v1262 = vadd.f32 0.0, %v1261
      %v1263 = vpop.f32.mrb[0].mxu0
      %v1264 = vpop.f32.mrb[0].mxu0
      %v1265 = vpop.f32.mrb[0].mxu0
      %1266 = vdwg.mxu0
      %v1267 = vpack.c.bf16 %v356, %v356
      %v1268 = vld [vmem:[%s3] sm:$0xf]
      %v1269 = vld [vmem:[%s3 + $0x4] sm:$0xf]
      %v1270 = vld [vmem:[%s3 + $0x8] sm:$0xf]
      %v1271 = vld [vmem:[%s3 + $0xc] sm:$0xf]
      %v1272 = vpack.c.bf16 %v947, %v947
      %v1273 = vpack.c.bf16 %v992, %v992
      %v1274 = vpack.c.bf16 %v1037, %v1037
      %v1275 = vpack.c.bf16 %v1082, %v1082
      %v1276 = vpack.c.bf16 %v1127, %v1127
      %v1277 = vpack.c.bf16 %v1172, %v1172
      %v1278 = vpack.c.bf16 %v1217, %v1217
      %v1279 = vpack.c.bf16 %v1262, %v1262
      %v1280 = vld [vmem:[%s4] sm:$0xf]
      %v1281 = vld [vmem:[%s4 + $0x4] sm:$0xf]
      %v1282 = vld [vmem:[%s4 + $0x8] sm:$0xf]
      %v1283 = vld [vmem:[%s4 + $0xc] sm:$0xf]
      %v1292 = vunpack.c.l.b16 %v1272
      %v1293 = vunpack.c.l.b16 %v1273
      %v1294 = vunpack.c.l.b16 %v1274
      %v1295 = vunpack.c.l.b16 %v1275
      %v1296 = vunpack.c.l.b16 %v1276
      %v1297 = vunpack.c.l.b16 %v1277
      %v1298 = vunpack.c.l.b16 %v1278
      %v1299 = vunpack.c.l.b16 %v1279
      %v1300 = vrot.slane %v1293, 7
      %vm1301 = vcmask 1041409
      %v1302 = vsel %vm1301, %v1300, %v1292
      %v1303 = vrot.slane %v1294, 6
      %vm1304 = vcmask 1042434
      %v1305 = vsel %vm1304, %v1303, %v1302
      %v1306 = vrot.slane %v1295, 5
      %vm1307 = vcmask 1043459
      %v1308 = vsel %vm1307, %v1306, %v1305
      %v1309 = vrot.slane %v1296, 4
      %vm1310 = vcmask 1044484
      %v1311 = vsel %vm1310, %v1309, %v1308
      %v1312 = vrot.slane %v1297, 3
      %vm1313 = vcmask 1045509
      %v1314 = vsel %vm1313, %v1312, %v1311
      %v1315 = vrot.slane %v1298, 2
      %vm1316 = vcmask 1046534
      %v1317 = vsel %vm1316, %v1315, %v1314
      %v1318 = vrot.slane %v1299, 1
      %vm1319 = vcmask 1047559
      %v1320 = vsel %vm1319, %v1318, %v1317
      %v1321 = vpack.c.b16 %v1320, %v1320
      %v1326 = vunpack.c.l.b16 %v1280
      %v1327 = vunpack.c.l.b16 %v1281
      %v1328 = vunpack.c.l.b16 %v1282
      %v1329 = vunpack.c.l.b16 %v1283
      %v1330 = vpack.c.b16 %v1327, %v1326
      %v1331 = vpack.c.b16 %v1329, %v1328
      %v1335 = vsel %vm404, %v1321, 0
      %1337 = vmatprep.subr.bf16.mxu0 0
      %1338 = vmatpush1.bf16.msra.mxu0 %v1330
      %1339 = vmatprep.subr.bf16.mxu0 0
      %1340 = vmatpush1.bf16.msra.mxu0 %v1331
      %1341 = vmatprep.subr.bf16.mxu0 0
      %1342 = vmatpush1.bf16.msra.mxu0 0
      %1343 = vmatprep.subr.bf16.mxu0 0
      %1344 = vmatpush1.bf16.msra.mxu0 0
      %1345 = vmatprep.subr.bf16.mxu0 0
      %1346 = vmatpush1.bf16.msra.mxu0 0
      %1347 = vmatprep.subr.bf16.mxu0 0
      %1348 = vmatpush1.bf16.msra.mxu0 0
      %1349 = vmatprep.subr.bf16.mxu0 0
      %1350 = vmatpush1.bf16.msra.mxu0 0
      %1351 = vmatprep.subr.bf16.mxu0 0
      %1352 = vmatpush1.bf16.msra.mxu0 0
      %1353 = vmatprep.subr.bf16.mxu0 0
      %1354 = vmatpush1.bf16.msra.mxu0 0
      %1355 = vmatprep.subr.bf16.mxu0 0
      %1356 = vmatpush1.bf16.msra.mxu0 0
      %1357 = vmatprep.subr.bf16.mxu0 0
      %1358 = vmatpush1.bf16.msra.mxu0 0
      %1359 = vmatprep.subr.bf16.mxu0 0
      %1360 = vmatpush1.bf16.msra.mxu0 0
      %1361 = vmatprep.subr.bf16.mxu0 0
      %1362 = vmatpush1.bf16.msra.mxu0 0
      %1363 = vmatprep.subr.bf16.mxu0 0
      %1364 = vmatpush1.bf16.msra.mxu0 0
      %1365 = vmatprep.subr.bf16.mxu0 0
      %1366 = vmatpush1.bf16.msra.mxu0 0
      %1367 = vmatprep.subr.bf16.mxu0 0
      %1368 = vmatpush1.bf16.msra.mxu0 0
      %1369 = vmatprep.mubr.bf16.mxu0 0
      %1370 = vmatmul.mubr.bf16.gmra.mrb[0].mxu0 %v1335
      %v1371 = vpop.f32.mrb[0].mxu0
      %v1372 = vadd.f32 0.0, %v1371
      %v1373 = vpop.f32.mrb[0].mxu0
      %v1374 = vpop.f32.mrb[0].mxu0
      %v1375 = vpop.f32.mrb[0].mxu0
      %1376 = vdwg.mxu0
      %v1381 = vunpack.c.l.b16 %v1268
      %v1382 = vunpack.c.l.b16 %v1269
      %v1383 = vunpack.c.l.b16 %v1270
      %v1384 = vunpack.c.l.b16 %v1271
      %v1385 = vpack.c.b16 %v1382, %v1381
      %v1386 = vpack.c.b16 %v1384, %v1383
      %v1390 = vsel %vm404, %v1267, 0
      %1392 = vmatprep.subr.bf16.mxu0 0
      %1393 = vmatpush1.bf16.msra.mxu0 %v1385
      %1394 = vmatprep.subr.bf16.mxu0 0
      %1395 = vmatpush1.bf16.msra.mxu0 %v1386
      %1396 = vmatprep.subr.bf16.mxu0 0
      %1397 = vmatpush1.bf16.msra.mxu0 0
      %1398 = vmatprep.subr.bf16.mxu0 0
      %1399 = vmatpush1.bf16.msra.mxu0 0
      %1400 = vmatprep.subr.bf16.mxu0 0
      %1401 = vmatpush1.bf16.msra.mxu0 0
      %1402 = vmatprep.subr.bf16.mxu0 0
      %1403 = vmatpush1.bf16.msra.mxu0 0
      %1404 = vmatprep.subr.bf16.mxu0 0
      %1405 = vmatpush1.bf16.msra.mxu0 0
      %1406 = vmatprep.subr.bf16.mxu0 0
      %1407 = vmatpush1.bf16.msra.mxu0 0
      %1408 = vmatprep.subr.bf16.mxu0 0
      %1409 = vmatpush1.bf16.msra.mxu0 0
      %1410 = vmatprep.subr.bf16.mxu0 0
      %1411 = vmatpush1.bf16.msra.mxu0 0
      %1412 = vmatprep.subr.bf16.mxu0 0
      %1413 = vmatpush1.bf16.msra.mxu0 0
      %1414 = vmatprep.subr.bf16.mxu0 0
      %1415 = vmatpush1.bf16.msra.mxu0 0
      %1416 = vmatprep.subr.bf16.mxu0 0
      %1417 = vmatpush1.bf16.msra.mxu0 0
      %1418 = vmatprep.subr.bf16.mxu0 0
      %1419 = vmatpush1.bf16.msra.mxu0 0
      %1420 = vmatprep.subr.bf16.mxu0 0
      %1421 = vmatpush1.bf16.msra.mxu0 0
      %1422 = vmatprep.subr.bf16.mxu0 0
      %1423 = vmatpush1.bf16.msra.mxu0 0
      %1424 = vmatprep.mubr.bf16.mxu0 0
      %1425 = vmatmul.mubr.bf16.gmra.mrb[0].mxu0 %v1390
      %v1426 = vpop.f32.mrb[0].mxu0
      %v1427 = vadd.f32 %v1372, %v1426
      %v1428 = vpop.f32.mrb[0].mxu0
      %v1429 = vpop.f32.mrb[0].mxu0
      %v1430 = vpop.f32.mrb[0].mxu0
      %1431 = vdwg.mxu0
      %v1432 = vld [vmem:[%s6] sm:$0x1]
      %v1434 = vlaneseq
      %v1435 = vshrl.u32 %v1434, 7
      %v1436 = vsub.s32 0, %v1435
      %v1437 = vrot.slane %v1432, %v1436
      %v1439 = vadd.f32 %v1427, %v1437
      %v1440 = vld [vmem:[%s5] sm:$0xf]
      %v1441 = vld [vmem:[%s5 + $0x4] sm:$0xf]
      %v1442 = vld [vmem:[%s5 + $0x8] sm:$0xf]
      %v1443 = vld [vmem:[%s5 + $0xc] sm:$0xf]
      %v1444 = vld [vmem:[%s7] sm:$0x1]
      %v1446 = vlaneseq
      %v1447 = vshrl.u32 %v1446, 7
      %v1448 = vsub.s32 0, %v1447
      %v1449 = vrot.slane %v1444, %v1448
      %v1455 = vunpack.c.l.b16 %v1440
      %v1456 = vunpack.c.l.b16 %v1441
      %v1457 = vunpack.c.l.b16 %v1442
      %v1458 = vunpack.c.l.b16 %v1443
      %v1459 = vpack.c.b16 %v1456, %v1455
      %v1460 = vpack.c.b16 %v1458, %v1457
      %v1464 = vsel %vm404, %v365, 0
      %1466 = vmatprep.subr.bf16.mxu0 0
      %1467 = vmatpush1.bf16.msra.mxu0 %v1459
      %1468 = vmatprep.subr.bf16.mxu0 0
      %1469 = vmatpush1.bf16.msra.mxu0 %v1460
      %1470 = vmatprep.subr.bf16.mxu0 0
      %1471 = vmatpush1.bf16.msra.mxu0 0
      %1472 = vmatprep.subr.bf16.mxu0 0
      %1473 = vmatpush1.bf16.msra.mxu0 0
      %1474 = vmatprep.subr.bf16.mxu0 0
      %1475 = vmatpush1.bf16.msra.mxu0 0
      %1476 = vmatprep.subr.bf16.mxu0 0
      %1477 = vmatpush1.bf16.msra.mxu0 0
      %1478 = vmatprep.subr.bf16.mxu0 0
      %1479 = vmatpush1.bf16.msra.mxu0 0
      %1480 = vmatprep.subr.bf16.mxu0 0
      %1481 = vmatpush1.bf16.msra.mxu0 0
      %1482 = vmatprep.subr.bf16.mxu0 0
      %1483 = vmatpush1.bf16.msra.mxu0 0
      %1484 = vmatprep.subr.bf16.mxu0 0
      %1485 = vmatpush1.bf16.msra.mxu0 0
      %1486 = vmatprep.subr.bf16.mxu0 0
      %1487 = vmatpush1.bf16.msra.mxu0 0
      %1488 = vmatprep.subr.bf16.mxu0 0
      %1489 = vmatpush1.bf16.msra.mxu0 0
      %1490 = vmatprep.subr.bf16.mxu0 0
      %1491 = vmatpush1.bf16.msra.mxu0 0
      %1492 = vmatprep.subr.bf16.mxu0 0
      %1493 = vmatpush1.bf16.msra.mxu0 0
      %1494 = vmatprep.subr.bf16.mxu0 0
      %1495 = vmatpush1.bf16.msra.mxu0 0
      %1496 = vmatprep.subr.bf16.mxu0 0
      %1497 = vmatpush1.bf16.msra.mxu0 0
      %1498 = vmatprep.mubr.bf16.mxu0 0
      %1499 = vmatmul.mubr.bf16.gmra.mrb[0].mxu0 %v1464
      %v1500 = vpop.f32.mrb[0].mxu0
      %v1501 = vadd.f32 %v1449, %v1500
      %v1502 = vpop.f32.mrb[0].mxu0
      %v1503 = vpop.f32.mrb[0].mxu0
      %v1504 = vpop.f32.mrb[0].mxu0
      %1505 = vdwg.mxu0
      %v1506 = vadd.f32 %v1439, %v1501
      %v1507 = vxor.u32 %v1506, 2147483648
      %v1508 = vmul.f32 %v1507, 1.442695
      %v1509 = vpow.pop %v1508
      %v1510 = vadd.f32 %v1509, 1.0
      %v1511 = vrcp.pop %v1510
      %v1512 = vmul.f32 1.0, %v1511
      %1514 = vrot.lane.b32.xlu0 %v1501, 64
      %v1515 = vpop.permute.xlu0 %1514
      %v1517 = vmul.f32 %v1512, %v1515
      %1519 = vrot.lane.b32.xlu0 %v1517, 64
      %v1520 = vpop.permute.xlu0 %1519
      %v1522 = vadd.f32 %v1439, %v1520
      %v1523 = vtanh.pop %v1522
      %v1524 = vsub.f32 1.0, %v1512
      %1526 = vrot.lane.b32.xlu0 %v1523, 96
      %v1527 = vpop.permute.xlu0 %1526
      %v1529 = vmul.f32 %v1524, %v1527
      %1531 = vrot.lane.b32.xlu0 %v353, 32
      %v1532 = vpop.permute.xlu0 %1531
      %v1534 = vmul.f32 %v1512, %v1532
      %v1535 = vadd.f32 %v1529, %v1534
      %v1536 = vpack.c.bf16 %v1535, %v1535
      %v1537 = vld [vmem:[%s8] sm:$0xf]
      %v1538 = vld [vmem:[%s8 + $0x4] sm:$0xf]
      %v1539 = vld [vmem:[%s8 + $0x8] sm:$0xf]
      %v1540 = vld [vmem:[%s8 + $0xc] sm:$0xf]
      %v1541 = vld [vmem:[%s9] sm:$0x1]
      %v1543 = vlaneseq
      %v1544 = vshrl.u32 %v1543, 7
      %v1545 = vsub.s32 0, %v1544
      %v1546 = vrot.slane %v1541, %v1545
      %1549 = vrot.lane.b32.xlu0 %v1536, 96
      %v1550 = vpop.permute.xlu0 %1549
      %v1555 = vunpack.c.l.b16 %v1537
      %v1556 = vunpack.c.l.b16 %v1538
      %v1557 = vunpack.c.l.b16 %v1539
      %v1558 = vunpack.c.l.b16 %v1540
      %v1559 = vpack.c.b16 %v1556, %v1555
      %v1560 = vpack.c.b16 %v1558, %v1557
      %v1564 = vsel %vm404, %v1550, 0
      %1566 = vmatprep.subr.bf16.mxu0 0
      %1567 = vmatpush1.bf16.msra.mxu0 %v1559
      %1568 = vmatprep.subr.bf16.mxu0 0
      %1569 = vmatpush1.bf16.msra.mxu0 %v1560
      %1570 = vmatprep.subr.bf16.mxu0 0
      %1571 = vmatpush1.bf16.msra.mxu0 0
      %1572 = vmatprep.subr.bf16.mxu0 0
      %1573 = vmatpush1.bf16.msra.mxu0 0
      %1574 = vmatprep.subr.bf16.mxu0 0
      %1575 = vmatpush1.bf16.msra.mxu0 0
      %1576 = vmatprep.subr.bf16.mxu0 0
      %1577 = vmatpush1.bf16.msra.mxu0 0
      %1578 = vmatprep.subr.bf16.mxu0 0
      %1579 = vmatpush1.bf16.msra.mxu0 0
      %1580 = vmatprep.subr.bf16.mxu0 0
      %1581 = vmatpush1.bf16.msra.mxu0 0
      %1582 = vmatprep.subr.bf16.mxu0 0
      %1583 = vmatpush1.bf16.msra.mxu0 0
      %1584 = vmatprep.subr.bf16.mxu0 0
      %1585 = vmatpush1.bf16.msra.mxu0 0
      %1586 = vmatprep.subr.bf16.mxu0 0
      %1587 = vmatpush1.bf16.msra.mxu0 0
      %1588 = vmatprep.subr.bf16.mxu0 0
      %1589 = vmatpush1.bf16.msra.mxu0 0
      %1590 = vmatprep.subr.bf16.mxu0 0
      %1591 = vmatpush1.bf16.msra.mxu0 0
      %1592 = vmatprep.subr.bf16.mxu0 0
      %1593 = vmatpush1.bf16.msra.mxu0 0
      %1594 = vmatprep.subr.bf16.mxu0 0
      %1595 = vmatpush1.bf16.msra.mxu0 0
      %1596 = vmatprep.subr.bf16.mxu0 0
      %1597 = vmatpush1.bf16.msra.mxu0 0
      %1598 = vmatprep.mubr.bf16.mxu0 0
      %1599 = vmatmul.mubr.bf16.gmra.mrb[0].mxu0 %v1564
      %v1600 = vpop.f32.mrb[0].mxu0
      %v1601 = vadd.f32 %v1546, %v1600
      %v1602 = vpop.f32.mrb[0].mxu0
      %v1603 = vpop.f32.mrb[0].mxu0
      %v1604 = vpop.f32.mrb[0].mxu0
      %1605 = vdwg.mxu0
      %1606 = vmax.xlane.f32.xlu0 %v1601
      %v1607 = vpop.xlane.xlu0 %1606
      %v1608 = vsub.f32 %v1601, %v1607
      %v1609 = vmul.f32 %v1608, 1.442695
      %v1610 = vpow.pop %v1609
      %1611 = vadd.xlane.f32.xlu0 %v1610
      %v1612 = vpop.xlane.xlu0 %1611
      %v1613 = vlog2.pop %v1612
      %v1614 = vmul.f32 %v1613, 0.6931472
      %v1615 = vsub.f32 %v1608, %v1614
      %1616 = vmax.xlane.f32.xlu0 %v1615
      %v1617 = vpop.xlane.xlu0 %1616
      %vm1618 = vcmp.ge.f32.partialorder %v1615, %v1617
      %v1619 = vsel %vm1618, %v355, 128
      %v1620 = vand.u32 %v1619, 65535
      %v1621 = vshra.s32 %v1619, 16
      %v1622 = vcvt.s32.f32 %v1620
      %v1623 = vcvt.s32.f32 %v1621
      %1624 = vmin.xlane.f32.xlu0 %v1623
      %v1625 = vpop.xlane.xlu0 %1624
      %vm1626 = vcmp.eq.f32.partialorder %v1623, %v1625
      %v1627 = vsel %vm1626, %v1622, inf
      %1628 = vmin.xlane.f32.xlu0 %v1627
      %v1629 = vpop.xlane.xlu0 %1628
      %v1630 = vcvt.f32.s32 %v1629
      %v1631 = vcvt.f32.s32 %v1625
      %v1632 = vshll.u32 %v1631, 16
      %v1633 = vadd.s32 %v1632, %v1630
      %vm1634 = vcmp.eq.s32.totalorder %v355, %v1633
      %v1635 = vsel %vm1634, 1, 0
      %v1636 = vcvt.s32.f32 %v1635
      %v1637 = vpack.c.bf16 %v1636, %v1636
      %v1638 = vld [vmem:[%s2] sm:$0xf]
      %v1639 = vld [vmem:[%s2 + $0x4] sm:$0xf]
      %v1640 = vld [vmem:[%s2 + $0x8] sm:$0xf]
      %v1641 = vld [vmem:[%s2 + $0xc] sm:$0xf]
      %v1642 = vld [vmem:[%s2 + $0x10] sm:$0xf]
      %v1643 = vld [vmem:[%s2 + $0x14] sm:$0xf]
      %v1644 = vld [vmem:[%s2 + $0x18] sm:$0xf]
      %v1645 = vld [vmem:[%s2 + $0x1c] sm:$0xf]
      %v1646 = vld [vmem:[%s2 + $0x20] sm:$0xf]
      %v1647 = vld [vmem:[%s2 + $0x24] sm:$0xf]
      %v1648 = vld [vmem:[%s2 + $0x28] sm:$0xf]
      %v1649 = vld [vmem:[%s2 + $0x2c] sm:$0xf]
      %v1650 = vld [vmem:[%s2 + $0x30] sm:$0xf]
      %v1651 = vld [vmem:[%s2 + $0x34] sm:$0xf]
      %v1652 = vld [vmem:[%s2 + $0x38] sm:$0xf]
      %v1653 = vld [vmem:[%s2 + $0x3c] sm:$0xf]
      %v1670 = vunpack.c.l.b16 %v1638
      %v1671 = vunpack.c.l.b16 %v1639
      %v1672 = vunpack.c.l.b16 %v1640
      %v1673 = vunpack.c.l.b16 %v1641
      %v1674 = vunpack.c.l.b16 %v1642
      %v1675 = vunpack.c.l.b16 %v1643
      %v1676 = vunpack.c.l.b16 %v1644
      %v1677 = vunpack.c.l.b16 %v1645
      %v1678 = vunpack.c.l.b16 %v1646
      %v1679 = vunpack.c.l.b16 %v1647
      %v1680 = vunpack.c.l.b16 %v1648
      %v1681 = vunpack.c.l.b16 %v1649
      %v1682 = vunpack.c.l.b16 %v1650
      %v1683 = vunpack.c.l.b16 %v1651
      %v1684 = vunpack.c.l.b16 %v1652
      %v1685 = vunpack.c.l.b16 %v1653
      %v1686 = vpack.c.b16 %v1671, %v1670
      %v1687 = vpack.c.b16 %v1673, %v1672
      %v1688 = vpack.c.b16 %v1675, %v1674
      %v1689 = vpack.c.b16 %v1677, %v1676
      %v1690 = vpack.c.b16 %v1679, %v1678
      %v1691 = vpack.c.b16 %v1681, %v1680
      %v1692 = vpack.c.b16 %v1683, %v1682
      %v1693 = vpack.c.b16 %v1685, %v1684
      %1702 = vmatprep.subr.bf16.mxu0 0
      %1703 = vmatpush1.bf16.msra.mxu0 %v1686
      %1704 = vmatprep.subr.bf16.mxu0 0
      %1705 = vmatpush1.bf16.msra.mxu0 %v1687
      %1706 = vmatprep.subr.bf16.mxu0 0
      %1707 = vmatpush1.bf16.msra.mxu0 %v1688
      %1708 = vmatprep.subr.bf16.mxu0 0
      %1709 = vmatpush1.bf16.msra.mxu0 %v1689
      %1710 = vmatprep.subr.bf16.mxu0 0
      %1711 = vmatpush1.bf16.msra.mxu0 %v1690
      %1712 = vmatprep.subr.bf16.mxu0 0
      %1713 = vmatpush1.bf16.msra.mxu0 %v1691
      %1714 = vmatprep.subr.bf16.mxu0 0
      %1715 = vmatpush1.bf16.msra.mxu0 %v1692
      %1716 = vmatprep.subr.bf16.mxu0 0
      %1717 = vmatpush1.bf16.msra.mxu0 %v1693
      %1718 = vmatprep.subr.bf16.mxu0 0
      %1719 = vmatpush1.bf16.msra.mxu0 0
      %1720 = vmatprep.subr.bf16.mxu0 0
      %1721 = vmatpush1.bf16.msra.mxu0 0
      %1722 = vmatprep.subr.bf16.mxu0 0
      %1723 = vmatpush1.bf16.msra.mxu0 0
      %1724 = vmatprep.subr.bf16.mxu0 0
      %1725 = vmatpush1.bf16.msra.mxu0 0
      %1726 = vmatprep.subr.bf16.mxu0 0
      %1727 = vmatpush1.bf16.msra.mxu0 0
      %1728 = vmatprep.subr.bf16.mxu0 0
      %1729 = vmatpush1.bf16.msra.mxu0 0
      %1730 = vmatprep.subr.bf16.mxu0 0
      %1731 = vmatpush1.bf16.msra.mxu0 0
      %1732 = vmatprep.subr.bf16.mxu0 0
      %1733 = vmatpush1.bf16.msra.mxu0 0
      %1734 = vmatprep.mubr.bf16.mxu0 0
      %1735 = vmatmul.mubr.bf16.gmra.mrb[0].mxu0 %v1637
      %v1736 = vpop.f32.mrb[0].mxu0
      %v1737 = vadd.f32 0.0, %v1736
      %v1738 = vpop.f32.mrb[0].mxu0
      %v1739 = vpop.f32.mrb[0].mxu0
      %v1740 = vpop.f32.mrb[0].mxu0
      %1741 = vdwg.mxu0
      %1742 = vst.msk [vmem:[#allocation3] sm:$0xff] %vm404, %v1737
      %1744 = vrot.lane.b32.xlu0 %v1535, 96
      %v1745 = vpop.permute.xlu0 %1744
      %1747 = vst.msk [vmem:[#allocation2] sm:$0xff] %vm404, %v1745
      %1748 = vst [vmem:[%s337] sm:$0xff] %v1615
      %p1749 = scmp.lt.s32.totalorder %s21, 4
      %s1750 = scalar_select %p1749, %s21, 4
      %s1751 = smul.addr %s1750, 8
      %s1752 = scalar_lea.vmem %s10, %s1751
      // Predicated region
      $region65: #{s2vt_attention_forward.3} parent=59 // pred_check
        %p1753 = pneg %p249
      $region66: #{s2vt_attention_forward.3} parent=59 // pred_check_branch
        %1755 = sbr.rel (%p1753) target = $region68
      $region67: #{s2vt_attention_forward.3} parent=59 // pred_region
        _
      $region68: #{s2vt_attention_forward.3} parent=59 // pred_fallthru
        _
    $region60: #{s2vt_attention_forward.3} parent=5 // pred_fallthru
      _
    %p1756 = scmp.le.s32.totalorder 2, %s16
    // Predicated region
    $region69: #{s2vt_attention_forward.3} parent=5 // pred_check
      %p1757 = pneg %p1756
    $region70: #{s2vt_attention_forward.3} parent=5 // pred_check_branch
      %1759 = sbr.rel (%p1757) target = $region72
    $region71: #{s2vt_attention_forward.3} parent=5 // pred_region
      %s1760 = ssub.s32 %s16, 2
      // Predicated region
      $region73: #{s2vt_attention_forward.3} parent=71 // pred_check
        %p1761 = pneg %p255
      $region74: #{s2vt_attention_forward.3} parent=71 // pred_check_branch
        %1763 = sbr.rel (%p1761) target = $region76
      $region75: #{s2vt_attention_forward.3} parent=71 // pred_region
        %p1764 = scmp.lt.s32.totalorder %s22, 4
        %s1765 = scalar_select %p1764, %s22, 4
        %s1766 = smul.addr %s1765, 8
        %s1767 = scalar_lea.vmem %s10, %s1766
      $region76: #{s2vt_attention_forward.3} parent=71 // pred_fallthru
        _
    $region72: #{s2vt_attention_forward.3} parent=5 // pred_fallthru
      _
  $region6: #{s2vt_attention_forward.3} parent=0 // loop_footer
    %s20 = sadd.s32 1, %s16
  $region7: #{s2vt_attention_forward.3} parent=0 // loop_footer_branch
    %15 = sbr.rel target = $region3
  $region8: #{s2vt_attention_forward.3} parent=0 // loop_exit
    _

</llo_original>
